<compile_context>
chip_gen: v5e
topology: v5e:2x2
jax: 0.10.0
libtpu: 0.0.40
codegen_flags: <defaults>
</compile_context>

<pallas_src>
import jax
import jax.numpy as jnp
from jax import lax
from jax.experimental import pallas as pl
from jax.experimental.pallas import tpu as pltpu


# ----------------------------------------------------------------------------
# Fused Pallas kernel
# ----------------------------------------------------------------------------
def _lstm_cell(gates, c_prev, hid):
    """Gate order [i, f, o, g]: one contiguous sigmoid + one tanh per cell."""
    sig = jax.nn.sigmoid(gates[:, :3 * hid])
    i_g = sig[:, 0:hid]
    f_g = sig[:, hid:2 * hid]
    o_g = sig[:, 2 * hid:3 * hid]
    g_g = jnp.tanh(gates[:, 3 * hid:])
    c = f_g * c_prev + i_g * g_g
    h = o_g * jnp.tanh(c)
    return h, c


def _vpu_matmul(h, w_rows):
    """(B, K) @ (K, N) as K broadcast-FMAs on the VPU (K tiny, e.g. 6)."""
    acc = h[:, 0:1] * w_rows[0]
    for j in range(1, len(w_rows)):
        acc = acc + h[:, j:j + 1] * w_rows[j]
    return acc


def vinet_fused_kernel(
        patches_ref,      # (kk, B*HW)            im2col, lane axis b-major
        conv_ref,         # (cout, kk + 3)        [conv_w^T | bias | gamma | beta]
        imu_x_ref,        # (T*B, imu_dim)        time-major rows
        imu_w_ref,        # (D + 3*Hi + 2, 4*Hi)  [wx0; wh0; wx1; wh1; b0; b1]
        xyzq_ref,         # (B, xyzq_dim)
        core0_wx_ref,     # (flow_feat + Hi + xyzq_dim, 4*Hc)
        core1_wx_ref,     # (Hc, 4*Hc)
        core_b_ref,       # (2, 4*Hc)             [core0_b; core1_b]
        head_w_ref,       # (Hc + lin1, lin1)     [lin1_w; lin2_w (col-padded)]
        head_b_ref,       # (2, lin1)             [lin1_b; lin2_b (col-padded)]
        o_ref):           # (B, out_dim)
    f32 = jnp.float32
    B = xyzq_ref.shape[0]
    BHW = patches_ref.shape[1]
    HW = BHW // B
    cout = conv_ref.shape[0]
    kk = conv_ref.shape[1] - 3
    D = imu_x_ref.shape[1]
    Hi = imu_w_ref.shape[1] // 4
    Ti = imu_x_ref.shape[0] // B
    Hc = core1_wx_ref.shape[0]
    lin1 = head_w_ref.shape[1]
    out_dim = o_ref.shape[1]

    # ---- FlowNetC stand-in: conv(3x3/s4) + BN(batch stats) + LeakyReLU(0.1) -
    # One batched matmul over all samples: (cout, kk) @ (kk, B*HW).
    y = jnp.dot(conv_ref[:, :kk], patches_ref[...],
                preferred_element_type=f32) + conv_ref[:, kk:kk + 1]
    mean = jnp.mean(y, axis=1, keepdims=True)                       # (cout, 1)
    var = jnp.mean((y - mean) * (y - mean), axis=1, keepdims=True)  # two-pass
    scale = lax.rsqrt(var + 1e-5) * conv_ref[:, kk + 1:kk + 2]
    flow = (y - mean) * scale + conv_ref[:, kk + 2:kk + 3]
    flow = jnp.where(flow > 0, flow, 0.1 * flow)                    # (cout, B*HW)

    # Per-sample NCHW flatten (c-major, then hw) -> (B, cout*HW), built with
    # static slices + lane concats only (no scratch, no per-row matmuls).
    rows = []
    for b in range(B):                                   # static, unrolled
        fb = flow[:, b * HW:(b + 1) * HW]                # (cout, HW)
        rows.append(jnp.concatenate(
            [fb[c:c + 1, :] for c in range(cout)], axis=1))          # (1, cout*HW)
    flow_rows = jnp.concatenate(rows, axis=0)            # (B, cout*HW)

    # ---- imu LSTM: 2 layers interleaved, state carried in vregs -------------
    wx0 = imu_w_ref[0:D, :]
    b0 = imu_w_ref[D + 3 * Hi:D + 3 * Hi + 1, :]
    b1 = imu_w_ref[D + 3 * Hi + 1:D + 3 * Hi + 2, :]
    # Hoisted layer-0 input projection over the whole sequence (one MXU matmul)
    gx0 = jnp.dot(imu_x_ref[...], wx0, preferred_element_type=f32) + b0

    # Tiny recurrent / layer-1-input products go to the VPU (hoisted row slices)
    wh0_rows = [imu_w_ref[D + j:D + j + 1, :] for j in range(Hi)]
    wx1_rows = [imu_w_ref[D + Hi + j:D + Hi + j + 1, :] for j in range(Hi)]
    wh1_rows = [imu_w_ref[D + 2 * Hi + j:D + 2 * Hi + j + 1, :] for j in range(Hi)]

    h0 = jnp.zeros((B, Hi), f32)
    c0 = jnp.zeros((B, Hi), f32)
    h1 = jnp.zeros((B, Hi), f32)
    c1 = jnp.zeros((B, Hi), f32)
    for t in range(Ti):                                  # static, unrolled
        g0 = gx0[t * B:(t + 1) * B, :] + _vpu_matmul(h0, wh0_rows)
        h0, c0 = _lstm_cell(g0, c0, Hi)
        g1 = _vpu_matmul(h0, wx1_rows) + _vpu_matmul(h1, wh1_rows) + b1
        h1, c1 = _lstm_cell(g1, c1, Hi)
    imu_out = h1                                         # (B, Hi)

    # ---- core LSTM (2 layers, seq len 1, zero init state) -------------------
    # concat(flow | imu | xyzQ) folded into ONE gate matmul; with zero initial
    # state the h @ W_hh and f * c_prev terms are exactly zero and skipped.
    cat = jnp.concatenate([flow_rows, imu_out, xyzq_ref[...]], axis=1)
    g = (jnp.dot(cat, core0_wx_ref[...], preferred_element_type=f32)
         + core_b_ref[0:1, :])
    hc0, _ = _lstm_cell(g, jnp.zeros((B, Hc), f32), Hc)
    g = (jnp.dot(hc0, core1_wx_ref[...], preferred_element_type=f32)
         + core_b_ref[1:2, :])
    hc1, _ = _lstm_cell(g, jnp.zeros((B, Hc), f32), Hc)

    # ---- head: linear1 -> linear2 -------------------------------------------
    l1 = (jnp.dot(hc1, head_w_ref[0:Hc, :], preferred_element_type=f32)
          + head_b_ref[0:1, :])
    o_ref[...] = (jnp.dot(l1, head_w_ref[Hc:Hc + lin1, 0:out_dim],
                          preferred_element_type=f32)
                  + head_b_ref[1:2, 0:out_dim])


_VMEM = pl.BlockSpec(memory_space=pltpu.MemorySpace.VMEM)


# ----------------------------------------------------------------------------
# Glue: im2col, gate-order conversion, parameter init, full forward
# ----------------------------------------------------------------------------
def im2col_nhwc(x_nhwc, k, stride, pad):
    B, H, W, Cin = x_nhwc.shape
    xp = jnp.pad(x_nhwc, ((0, 0), (pad, pad), (pad, pad), (0, 0)))
    OH = (H + 2 * pad - k) // stride + 1
    OW = (W + 2 * pad - k) // stride + 1
    cols = []
    for i in range(k):
        for j in range(k):
            cols.append(xp[:, i:i + stride * OH:stride,
                           j:j + stride * OW:stride, :])
    return jnp.concatenate(cols, axis=-1), OH, OW        # (B, OH, OW, k*k*Cin)


def _ifgo_to_ifog(x):
    """Repack torch LSTM gate blocks [i|f|g|o] -> [i|f|o|g] along last axis."""
    i, f, g, o = jnp.split(x, 4, axis=-1)
    return jnp.concatenate([i, f, o, g], axis=-1)


def init_lstm_layer(key, in_dim, hid):
    # torch-style packing [i|f|g|o]; bias is b_ih + b_hh pre-summed.
    k1, k2, k3 = jax.random.split(key, 3)
    wx = jax.random.normal(k1, (in_dim, 4 * hid), jnp.float32) * 0.1
    wh = jax.random.normal(k2, (hid, 4 * hid), jnp.float32) * 0.1
    b = jax.random.normal(k3, (1, 4 * hid), jnp.float32) * 0.01
    return wx, wh, b


def init_params(key, tc, flow_cout, flow_feat, imu_dim, xyzq_dim, core_hid,
                lin1_out, lin2_out):
    keys = jax.random.split(key, 8)
    kk = 3 * 3 * tc
    return {
        "conv_w": jax.random.normal(keys[0], (kk, flow_cout), jnp.float32) * 0.1,
        "conv_b": jnp.zeros((1, flow_cout), jnp.float32),
        "bn_gamma": jnp.ones((1, flow_cout), jnp.float32),
        "bn_beta": jnp.zeros((1, flow_cout), jnp.float32),
        "imu_l0": init_lstm_layer(keys[1], imu_dim, imu_dim),
        "imu_l1": init_lstm_layer(keys[2], imu_dim, imu_dim),
        "core_l0": init_lstm_layer(keys[3],
                                   flow_feat + imu_dim + xyzq_dim, core_hid),
        "core_l1": init_lstm_layer(keys[4], core_hid, core_hid),
        "lin1_w": jax.random.normal(keys[5], (core_hid, lin1_out),
                                    jnp.float32) * 0.1,
        "lin1_b": jnp.zeros((1, lin1_out), jnp.float32),
        "lin2_w": jax.random.normal(keys[6], (lin1_out, lin2_out),
                                    jnp.float32) * 0.1,
        "lin2_b": jnp.zeros((1, lin2_out), jnp.float32),
    }


@jax.jit
def vinet_forward(params, image, imu, xyzQ):
    B, T, C, H, W = image.shape
    # c_in = image.view(B, T*C, H, W) (NCHW); im2col runs on its NHWC form.
    c_in = image.reshape(B, T * C, H, W)
    x_nhwc = jnp.transpose(c_in, (0, 2, 3, 1))
    patches, OH, OW = im2col_nhwc(x_nhwc, k=3, stride=4, pad=1)
    kk = patches.shape[-1]
    HW = OH * OW
    # (kk, B*HW): lane axis is b-major then hw, so the kernel does ONE batched
    # conv matmul and per-channel BN stats are single lane reductions.
    patches2 = jnp.transpose(patches.reshape(B, HW, kk),
                             (2, 0, 1)).reshape(kk, B * HW)

    cout = params["conv_w"].shape[1]
    conv_slab = jnp.concatenate(
        [jnp.transpose(params["conv_w"]),                 # (cout, kk)
         params["conv_b"].reshape(cout, 1),
         params["bn_gamma"].reshape(cout, 1),
         params["bn_beta"].reshape(cout, 1)], axis=1)     # (cout, kk+3)

    imu0_wx, imu0_wh, imu0_b = params["imu_l0"]
    imu1_wx, imu1_wh, imu1_b = params["imu_l1"]
    T_imu = imu.shape[1]
    # time-major flatten: row t*B + b is timestep t of batch sample b
    imu_flat = jnp.transpose(imu, (1, 0, 2)).reshape(T_imu * B, imu.shape[2])
    imu_slab = jnp.concatenate(
        [_ifgo_to_ifog(imu0_wx), _ifgo_to_ifog(imu0_wh),
         _ifgo_to_ifog(imu1_wx), _ifgo_to_ifog(imu1_wh),
         _ifgo_to_ifog(imu0_b), _ifgo_to_ifog(imu1_b)],
        axis=0)                                           # (D + 3*Hi + 2, 4*Hi)

    xyzq2 = xyzQ[:, 0, :]                                 # (B, xyzq_dim)

    core0_wx, _core0_wh, core0_b = params["core_l0"]      # W_hh inert (seq len 1)
    core1_wx, _core1_wh, core1_b = params["core_l1"]
    core0_wx = _ifgo_to_ifog(core0_wx)                    # rows stay in NCHW-flat
    core1_wx = _ifgo_to_ifog(core1_wx)                    # order for the flow block
    core_b = jnp.concatenate([_ifgo_to_ifog(core0_b),
                              _ifgo_to_ifog(core1_b)], axis=0)   # (2, 4*Hc)

    lin1_out = params["lin1_w"].shape[1]
    out_dim = params["lin2_w"].shape[1]
    lin2_w_pad = jnp.pad(params["lin2_w"], ((0, 0), (0, lin1_out - out_dim)))
    lin2_b_pad = jnp.pad(params["lin2_b"], ((0, 0), (0, lin1_out - out_dim)))
    head_w = jnp.concatenate([params["lin1_w"], lin2_w_pad], axis=0)
    head_b = jnp.concatenate([params["lin1_b"], lin2_b_pad], axis=0)

    args = (patches2, conv_slab, imu_flat, imu_slab, xyzq2,
            core0_wx, core1_wx, core_b, head_w, head_b)

    return pl.pallas_call(
        vinet_fused_kernel,
        out_shape=jax.ShapeDtypeStruct((B, out_dim), jnp.float32),
        in_specs=[_VMEM] * len(args),
        out_specs=_VMEM,
    )(*args)


if __name__ == "__main__":
    # Small shapes consistent with the module structure:
    B, T, C, H, W = 2, 2, 3, 16, 16
    T_IMU, IMU_DIM = 8, 6
    XYZQ_DIM = 7                       # xyz + quaternion
    FLOW_COUT = 2                      # flow channels
    OH = OW = 4                        # 16 / stride 4
    FLOW_FEAT = FLOW_COUT * OH * OW
    CORE_HID, LIN1_OUT, LIN2_OUT = 32, 16, 6

    key = jax.random.PRNGKey(0)
    k_img, k_imu, k_xyz, k_par = jax.random.split(key, 4)

    image = jax.random.normal(k_img, (B, T, C, H, W), jnp.float32)
    imu = jax.random.normal(k_imu, (B, T_IMU, IMU_DIM), jnp.float32)
    xyzQ = jax.random.normal(k_xyz, (B, 1, XYZQ_DIM), jnp.float32)

    params = init_params(k_par, T * C, FLOW_COUT, FLOW_FEAT, IMU_DIM,
                         XYZQ_DIM, CORE_HID, LIN1_OUT, LIN2_OUT)

    out = jax.block_until_ready(vinet_forward(params, image, imu, xyzQ))
    assert out.shape == (B, LIN2_OUT), out.shape
    print("KERNEL_OK")
</pallas_src>

<mosaic_0001>
module attributes {stable_mosaic.version = 11 : i64} {
  func.func @vinet_fused_kernel(%arg0: memref<54x32xf32, #tpu.memory_space<vmem>>, %arg1: memref<2x57xf32, #tpu.memory_space<vmem>>, %arg2: memref<16x6xf32, #tpu.memory_space<vmem>>, %arg3: memref<26x24xf32, #tpu.memory_space<vmem>>, %arg4: memref<2x7xf32, #tpu.memory_space<vmem>>, %arg5: memref<45x128xf32, #tpu.memory_space<vmem>>, %arg6: memref<32x128xf32, #tpu.memory_space<vmem>>, %arg7: memref<2x128xf32, #tpu.memory_space<vmem>>, %arg8: memref<48x16xf32, #tpu.memory_space<vmem>>, %arg9: memref<2x16xf32, #tpu.memory_space<vmem>>, %arg10: memref<2x6xf32, #tpu.memory_space<vmem>>) attributes {dimension_semantics = [], scalar_prefetch = 0 : i64, scratch_operands = 0 : i64, tpu.core_type = #tpu.core_type<tc>} {
    %c0 = arith.constant 0 : index
    %c0_0 = arith.constant 0 : index
    %0 = vector.load %arg1[%c0, %c0_0] : memref<2x57xf32, #tpu.memory_space<vmem>>, vector<2x54xf32>
    %c0_1 = arith.constant 0 : index
    %c0_2 = arith.constant 0 : index
    %1 = vector.load %arg0[%c0_1, %c0_2] : memref<54x32xf32, #tpu.memory_space<vmem>>, vector<54x32xf32>
    %cst = arith.constant dense<0.000000e+00> : vector<2x32xf32>
    %2 = tpu.matmul %0, %1, %cst {dimension_numbers = #tpu.dot_dimension_numbers<[1], [0], [0], [1], [0, 0, 1, 1], [], []>} : vector<2x54xf32>, vector<54x32xf32>, vector<2x32xf32> -> vector<2x32xf32>
    %c0_3 = arith.constant 0 : index
    %c54 = arith.constant 54 : index
    %3 = vector.load %arg1[%c0_3, %c54] : memref<2x57xf32, #tpu.memory_space<vmem>>, vector<2x1xf32>
    %4 = vector.broadcast %3 : vector<2x1xf32> to vector<2x32xf32>
    %5 = arith.addf %2, %4 : vector<2x32xf32>
    %cst_4 = arith.constant dense<0.000000e+00> : vector<2xf32>
    %6 = vector.multi_reduction <add>, %5, %cst_4 [1] : vector<2x32xf32> to vector<2xf32>
    %7 = vector.shape_cast %6 : vector<2xf32> to vector<2x1xf32>
    %cst_5 = arith.constant 3.200000e+01 : f32
    %8 = vector.broadcast %cst_5 : f32 to vector<2x1xf32>
    %9 = arith.divf %7, %8 : vector<2x1xf32>
    %10 = vector.broadcast %9 : vector<2x1xf32> to vector<2x32xf32>
    %11 = arith.subf %5, %10 : vector<2x32xf32>
    %12 = vector.broadcast %9 : vector<2x1xf32> to vector<2x32xf32>
    %13 = arith.subf %5, %12 : vector<2x32xf32>
    %14 = arith.mulf %11, %13 : vector<2x32xf32>
    %cst_6 = arith.constant dense<0.000000e+00> : vector<2xf32>
    %15 = vector.multi_reduction <add>, %14, %cst_6 [1] : vector<2x32xf32> to vector<2xf32>
    %16 = vector.shape_cast %15 : vector<2xf32> to vector<2x1xf32>
    %cst_7 = arith.constant 3.200000e+01 : f32
    %17 = vector.broadcast %cst_7 : f32 to vector<2x1xf32>
    %18 = arith.divf %16, %17 : vector<2x1xf32>
    %cst_8 = arith.constant 9.99999974E-6 : f32
    %19 = vector.broadcast %cst_8 : f32 to vector<2x1xf32>
    %20 = arith.addf %18, %19 : vector<2x1xf32>
    %21 = math.rsqrt %20 : vector<2x1xf32>
    %c0_9 = arith.constant 0 : index
    %c55 = arith.constant 55 : index
    %22 = vector.load %arg1[%c0_9, %c55] : memref<2x57xf32, #tpu.memory_space<vmem>>, vector<2x1xf32>
    %23 = arith.mulf %21, %22 : vector<2x1xf32>
    %24 = vector.broadcast %9 : vector<2x1xf32> to vector<2x32xf32>
    %25 = arith.subf %5, %24 : vector<2x32xf32>
    %26 = vector.broadcast %23 : vector<2x1xf32> to vector<2x32xf32>
    %27 = arith.mulf %25, %26 : vector<2x32xf32>
    %c0_10 = arith.constant 0 : index
    %c56 = arith.constant 56 : index
    %28 = vector.load %arg1[%c0_10, %c56] : memref<2x57xf32, #tpu.memory_space<vmem>>, vector<2x1xf32>
    %29 = vector.broadcast %28 : vector<2x1xf32> to vector<2x32xf32>
    %30 = arith.addf %27, %29 : vector<2x32xf32>
    %cst_11 = arith.constant 0.000000e+00 : f32
    %31 = vector.broadcast %cst_11 : f32 to vector<2x32xf32>
    %32 = arith.cmpf ogt, %30, %31 : vector<2x32xf32>
    %cst_12 = arith.constant 1.000000e-01 : f32
    %33 = vector.broadcast %cst_12 : f32 to vector<2x32xf32>
    %34 = arith.mulf %33, %30 : vector<2x32xf32>
    %35 = arith.select %32, %30, %34 : vector<2x32xi1>, vector<2x32xf32>
    %36 = vector.extract_strided_slice %35 {offsets = [0, 0], sizes = [2, 16], strides = [1, 1]} : vector<2x32xf32> to vector<2x16xf32>
    %37 = vector.extract_strided_slice %36 {offsets = [0, 0], sizes = [1, 16], strides = [1, 1]} : vector<2x16xf32> to vector<1x16xf32>
    %38 = vector.extract_strided_slice %36 {offsets = [1, 0], sizes = [1, 16], strides = [1, 1]} : vector<2x16xf32> to vector<1x16xf32>
    %39 = tpu.concatenate %37, %38 in 1 : vector<1x16xf32>, vector<1x16xf32> -> vector<1x32xf32>
    %40 = vector.extract_strided_slice %35 {offsets = [0, 16], sizes = [2, 16], strides = [1, 1]} : vector<2x32xf32> to vector<2x16xf32>
    %41 = vector.extract_strided_slice %40 {offsets = [0, 0], sizes = [1, 16], strides = [1, 1]} : vector<2x16xf32> to vector<1x16xf32>
    %42 = vector.extract_strided_slice %40 {offsets = [1, 0], sizes = [1, 16], strides = [1, 1]} : vector<2x16xf32> to vector<1x16xf32>
    %43 = tpu.concatenate %41, %42 in 1 : vector<1x16xf32>, vector<1x16xf32> -> vector<1x32xf32>
    %44 = tpu.concatenate %39, %43 in 0 : vector<1x32xf32>, vector<1x32xf32> -> vector<2x32xf32>
    %c0_13 = arith.constant 0 : index
    %c0_14 = arith.constant 0 : index
    %45 = vector.load %arg3[%c0_13, %c0_14] : memref<26x24xf32, #tpu.memory_space<vmem>>, vector<6x24xf32>
    %c24 = arith.constant 24 : index
    %c0_15 = arith.constant 0 : index
    %46 = vector.load %arg3[%c24, %c0_15] : memref<26x24xf32, #tpu.memory_space<vmem>>, vector<1x24xf32>
    %c25 = arith.constant 25 : index
    %c0_16 = arith.constant 0 : index
    %47 = vector.load %arg3[%c25, %c0_16] : memref<26x24xf32, #tpu.memory_space<vmem>>, vector<1x24xf32>
    %c0_17 = arith.constant 0 : index
    %c0_18 = arith.constant 0 : index
    %48 = vector.load %arg2[%c0_17, %c0_18] : memref<16x6xf32, #tpu.memory_space<vmem>>, vector<16x6xf32>
    %cst_19 = arith.constant dense<0.000000e+00> : vector<16x24xf32>
    %49 = tpu.matmul %48, %45, %cst_19 {dimension_numbers = #tpu.dot_dimension_numbers<[1], [0], [0], [1], [0, 0, 1, 1], [], []>} : vector<16x6xf32>, vector<6x24xf32>, vector<16x24xf32> -> vector<16x24xf32>
    %50 = vector.broadcast %46 : vector<1x24xf32> to vector<16x24xf32>
    %51 = arith.addf %49, %50 : vector<16x24xf32>
    %c6 = arith.constant 6 : index
    %c0_20 = arith.constant 0 : index
    %52 = vector.load %arg3[%c6, %c0_20] : memref<26x24xf32, #tpu.memory_space<vmem>>, vector<1x24xf32>
    %c7 = arith.constant 7 : index
    %c0_21 = arith.constant 0 : index
    %53 = vector.load %arg3[%c7, %c0_21] : memref<26x24xf32, #tpu.memory_space<vmem>>, vector<1x24xf32>
    %c8 = arith.constant 8 : index
    %c0_22 = arith.constant 0 : index
    %54 = vector.load %arg3[%c8, %c0_22] : memref<26x24xf32, #tpu.memory_space<vmem>>, vector<1x24xf32>
    %c9 = arith.constant 9 : index
    %c0_23 = arith.constant 0 : index
    %55 = vector.load %arg3[%c9, %c0_23] : memref<26x24xf32, #tpu.memory_space<vmem>>, vector<1x24xf32>
    %c10 = arith.constant 10 : index
    %c0_24 = arith.constant 0 : index
    %56 = vector.load %arg3[%c10, %c0_24] : memref<26x24xf32, #tpu.memory_space<vmem>>, vector<1x24xf32>
    %c11 = arith.constant 11 : index
    %c0_25 = arith.constant 0 : index
    %57 = vector.load %arg3[%c11, %c0_25] : memref<26x24xf32, #tpu.memory_space<vmem>>, vector<1x24xf32>
    %c12 = arith.constant 12 : index
    %c0_26 = arith.constant 0 : index
    %58 = vector.load %arg3[%c12, %c0_26] : memref<26x24xf32, #tpu.memory_space<vmem>>, vector<1x24xf32>
    %c13 = arith.constant 13 : index
    %c0_27 = arith.constant 0 : index
    %59 = vector.load %arg3[%c13, %c0_27] : memref<26x24xf32, #tpu.memory_space<vmem>>, vector<1x24xf32>
    %c14 = arith.constant 14 : index
    %c0_28 = arith.constant 0 : index
    %60 = vector.load %arg3[%c14, %c0_28] : memref<26x24xf32, #tpu.memory_space<vmem>>, vector<1x24xf32>
    %c15 = arith.constant 15 : index
    %c0_29 = arith.constant 0 : index
    %61 = vector.load %arg3[%c15, %c0_29] : memref<26x24xf32, #tpu.memory_space<vmem>>, vector<1x24xf32>
    %c16 = arith.constant 16 : index
    %c0_30 = arith.constant 0 : index
    %62 = vector.load %arg3[%c16, %c0_30] : memref<26x24xf32, #tpu.memory_space<vmem>>, vector<1x24xf32>
    %c17 = arith.constant 17 : index
    %c0_31 = arith.constant 0 : index
    %63 = vector.load %arg3[%c17, %c0_31] : memref<26x24xf32, #tpu.memory_space<vmem>>, vector<1x24xf32>
    %c18 = arith.constant 18 : index
    %c0_32 = arith.constant 0 : index
    %64 = vector.load %arg3[%c18, %c0_32] : memref<26x24xf32, #tpu.memory_space<vmem>>, vector<1x24xf32>
    %c19 = arith.constant 19 : index
    %c0_33 = arith.constant 0 : index
    %65 = vector.load %arg3[%c19, %c0_33] : memref<26x24xf32, #tpu.memory_space<vmem>>, vector<1x24xf32>
    %c20 = arith.constant 20 : index
    %c0_34 = arith.constant 0 : index
    %66 = vector.load %arg3[%c20, %c0_34] : memref<26x24xf32, #tpu.memory_space<vmem>>, vector<1x24xf32>
    %c21 = arith.constant 21 : index
    %c0_35 = arith.constant 0 : index
    %67 = vector.load %arg3[%c21, %c0_35] : memref<26x24xf32, #tpu.memory_space<vmem>>, vector<1x24xf32>
    %c22 = arith.constant 22 : index
    %c0_36 = arith.constant 0 : index
    %68 = vector.load %arg3[%c22, %c0_36] : memref<26x24xf32, #tpu.memory_space<vmem>>, vector<1x24xf32>
    %c23 = arith.constant 23 : index
    %c0_37 = arith.constant 0 : index
    %69 = vector.load %arg3[%c23, %c0_37] : memref<26x24xf32, #tpu.memory_space<vmem>>, vector<1x24xf32>
    %cst_38 = arith.constant 0.000000e+00 : f32
    %70 = vector.broadcast %cst_38 : f32 to vector<2x6xf32>
    %cst_39 = arith.constant 0.000000e+00 : f32
    %71 = vector.broadcast %cst_39 : f32 to vector<2x6xf32>
    %cst_40 = arith.constant 0.000000e+00 : f32
    %72 = vector.broadcast %cst_40 : f32 to vector<2x6xf32>
    %cst_41 = arith.constant 0.000000e+00 : f32
    %73 = vector.broadcast %cst_41 : f32 to vector<2x6xf32>
    %74 = vector.extract_strided_slice %51 {offsets = [0, 0], sizes = [2, 24], strides = [1, 1]} : vector<16x24xf32> to vector<2x24xf32>
    %75 = vector.extract_strided_slice %70 {offsets = [0, 0], sizes = [2, 1], strides = [1, 1]} : vector<2x6xf32> to vector<2x1xf32>
    %76 = vector.broadcast %75 : vector<2x1xf32> to vector<2x24xf32>
    %77 = vector.broadcast %52 : vector<1x24xf32> to vector<2x24xf32>
    %78 = arith.mulf %76, %77 : vector<2x24xf32>
    %79 = vector.extract_strided_slice %70 {offsets = [0, 1], sizes = [2, 1], strides = [1, 1]} : vector<2x6xf32> to vector<2x1xf32>
    %80 = vector.broadcast %79 : vector<2x1xf32> to vector<2x24xf32>
    %81 = vector.broadcast %53 : vector<1x24xf32> to vector<2x24xf32>
    %82 = arith.mulf %80, %81 : vector<2x24xf32>
    %83 = arith.addf %78, %82 : vector<2x24xf32>
    %84 = vector.extract_strided_slice %70 {offsets = [0, 2], sizes = [2, 1], strides = [1, 1]} : vector<2x6xf32> to vector<2x1xf32>
    %85 = vector.broadcast %84 : vector<2x1xf32> to vector<2x24xf32>
    %86 = vector.broadcast %54 : vector<1x24xf32> to vector<2x24xf32>
    %87 = arith.mulf %85, %86 : vector<2x24xf32>
    %88 = arith.addf %83, %87 : vector<2x24xf32>
    %89 = vector.extract_strided_slice %70 {offsets = [0, 3], sizes = [2, 1], strides = [1, 1]} : vector<2x6xf32> to vector<2x1xf32>
    %90 = vector.broadcast %89 : vector<2x1xf32> to vector<2x24xf32>
    %91 = vector.broadcast %55 : vector<1x24xf32> to vector<2x24xf32>
    %92 = arith.mulf %90, %91 : vector<2x24xf32>
    %93 = arith.addf %88, %92 : vector<2x24xf32>
    %94 = vector.extract_strided_slice %70 {offsets = [0, 4], sizes = [2, 1], strides = [1, 1]} : vector<2x6xf32> to vector<2x1xf32>
    %95 = vector.broadcast %94 : vector<2x1xf32> to vector<2x24xf32>
    %96 = vector.broadcast %56 : vector<1x24xf32> to vector<2x24xf32>
    %97 = arith.mulf %95, %96 : vector<2x24xf32>
    %98 = arith.addf %93, %97 : vector<2x24xf32>
    %99 = vector.extract_strided_slice %70 {offsets = [0, 5], sizes = [2, 1], strides = [1, 1]} : vector<2x6xf32> to vector<2x1xf32>
    %100 = vector.broadcast %99 : vector<2x1xf32> to vector<2x24xf32>
    %101 = vector.broadcast %57 : vector<1x24xf32> to vector<2x24xf32>
    %102 = arith.mulf %100, %101 : vector<2x24xf32>
    %103 = arith.addf %98, %102 : vector<2x24xf32>
    %104 = arith.addf %74, %103 : vector<2x24xf32>
    %105 = vector.extract_strided_slice %104 {offsets = [0, 0], sizes = [2, 18], strides = [1, 1]} : vector<2x24xf32> to vector<2x18xf32>
    %106 = arith.negf %105 : vector<2x18xf32>
    %107 = math.exp %106 : vector<2x18xf32>
    %cst_42 = arith.constant 1.000000e+00 : f32
    %108 = vector.broadcast %cst_42 : f32 to vector<2x18xf32>
    %109 = arith.addf %108, %107 : vector<2x18xf32>
    %110 = arith.divf %108, %109 : vector<2x18xf32>
    %111 = vector.extract_strided_slice %110 {offsets = [0, 0], sizes = [2, 6], strides = [1, 1]} : vector<2x18xf32> to vector<2x6xf32>
    %112 = vector.extract_strided_slice %110 {offsets = [0, 6], sizes = [2, 6], strides = [1, 1]} : vector<2x18xf32> to vector<2x6xf32>
    %113 = vector.extract_strided_slice %110 {offsets = [0, 12], sizes = [2, 6], strides = [1, 1]} : vector<2x18xf32> to vector<2x6xf32>
    %114 = vector.extract_strided_slice %104 {offsets = [0, 18], sizes = [2, 6], strides = [1, 1]} : vector<2x24xf32> to vector<2x6xf32>
    %115 = math.tanh %114 : vector<2x6xf32>
    %116 = arith.mulf %112, %71 : vector<2x6xf32>
    %117 = arith.mulf %111, %115 : vector<2x6xf32>
    %118 = arith.addf %116, %117 : vector<2x6xf32>
    %119 = math.tanh %118 : vector<2x6xf32>
    %120 = arith.mulf %113, %119 : vector<2x6xf32>
    %121 = vector.extract_strided_slice %120 {offsets = [0, 0], sizes = [2, 1], strides = [1, 1]} : vector<2x6xf32> to vector<2x1xf32>
    %122 = vector.broadcast %121 : vector<2x1xf32> to vector<2x24xf32>
    %123 = vector.broadcast %58 : vector<1x24xf32> to vector<2x24xf32>
    %124 = arith.mulf %122, %123 : vector<2x24xf32>
    %125 = vector.extract_strided_slice %120 {offsets = [0, 1], sizes = [2, 1], strides = [1, 1]} : vector<2x6xf32> to vector<2x1xf32>
    %126 = vector.broadcast %125 : vector<2x1xf32> to vector<2x24xf32>
    %127 = vector.broadcast %59 : vector<1x24xf32> to vector<2x24xf32>
    %128 = arith.mulf %126, %127 : vector<2x24xf32>
    %129 = arith.addf %124, %128 : vector<2x24xf32>
    %130 = vector.extract_strided_slice %120 {offsets = [0, 2], sizes = [2, 1], strides = [1, 1]} : vector<2x6xf32> to vector<2x1xf32>
    %131 = vector.broadcast %130 : vector<2x1xf32> to vector<2x24xf32>
    %132 = vector.broadcast %60 : vector<1x24xf32> to vector<2x24xf32>
    %133 = arith.mulf %131, %132 : vector<2x24xf32>
    %134 = arith.addf %129, %133 : vector<2x24xf32>
    %135 = vector.extract_strided_slice %120 {offsets = [0, 3], sizes = [2, 1], strides = [1, 1]} : vector<2x6xf32> to vector<2x1xf32>
    %136 = vector.broadcast %135 : vector<2x1xf32> to vector<2x24xf32>
    %137 = vector.broadcast %61 : vector<1x24xf32> to vector<2x24xf32>
    %138 = arith.mulf %136, %137 : vector<2x24xf32>
    %139 = arith.addf %134, %138 : vector<2x24xf32>
    %140 = vector.extract_strided_slice %120 {offsets = [0, 4], sizes = [2, 1], strides = [1, 1]} : vector<2x6xf32> to vector<2x1xf32>
    %141 = vector.broadcast %140 : vector<2x1xf32> to vector<2x24xf32>
    %142 = vector.broadcast %62 : vector<1x24xf32> to vector<2x24xf32>
    %143 = arith.mulf %141, %142 : vector<2x24xf32>
    %144 = arith.addf %139, %143 : vector<2x24xf32>
    %145 = vector.extract_strided_slice %120 {offsets = [0, 5], sizes = [2, 1], strides = [1, 1]} : vector<2x6xf32> to vector<2x1xf32>
    %146 = vector.broadcast %145 : vector<2x1xf32> to vector<2x24xf32>
    %147 = vector.broadcast %63 : vector<1x24xf32> to vector<2x24xf32>
    %148 = arith.mulf %146, %147 : vector<2x24xf32>
    %149 = arith.addf %144, %148 : vector<2x24xf32>
    %150 = vector.extract_strided_slice %72 {offsets = [0, 0], sizes = [2, 1], strides = [1, 1]} : vector<2x6xf32> to vector<2x1xf32>
    %151 = vector.broadcast %150 : vector<2x1xf32> to vector<2x24xf32>
    %152 = vector.broadcast %64 : vector<1x24xf32> to vector<2x24xf32>
    %153 = arith.mulf %151, %152 : vector<2x24xf32>
    %154 = vector.extract_strided_slice %72 {offsets = [0, 1], sizes = [2, 1], strides = [1, 1]} : vector<2x6xf32> to vector<2x1xf32>
    %155 = vector.broadcast %154 : vector<2x1xf32> to vector<2x24xf32>
    %156 = vector.broadcast %65 : vector<1x24xf32> to vector<2x24xf32>
    %157 = arith.mulf %155, %156 : vector<2x24xf32>
    %158 = arith.addf %153, %157 : vector<2x24xf32>
    %159 = vector.extract_strided_slice %72 {offsets = [0, 2], sizes = [2, 1], strides = [1, 1]} : vector<2x6xf32> to vector<2x1xf32>
    %160 = vector.broadcast %159 : vector<2x1xf32> to vector<2x24xf32>
    %161 = vector.broadcast %66 : vector<1x24xf32> to vector<2x24xf32>
    %162 = arith.mulf %160, %161 : vector<2x24xf32>
    %163 = arith.addf %158, %162 : vector<2x24xf32>
    %164 = vector.extract_strided_slice %72 {offsets = [0, 3], sizes = [2, 1], strides = [1, 1]} : vector<2x6xf32> to vector<2x1xf32>
    %165 = vector.broadcast %164 : vector<2x1xf32> to vector<2x24xf32>
    %166 = vector.broadcast %67 : vector<1x24xf32> to vector<2x24xf32>
    %167 = arith.mulf %165, %166 : vector<2x24xf32>
    %168 = arith.addf %163, %167 : vector<2x24xf32>
    %169 = vector.extract_strided_slice %72 {offsets = [0, 4], sizes = [2, 1], strides = [1, 1]} : vector<2x6xf32> to vector<2x1xf32>
    %170 = vector.broadcast %169 : vector<2x1xf32> to vector<2x24xf32>
    %171 = vector.broadcast %68 : vector<1x24xf32> to vector<2x24xf32>
    %172 = arith.mulf %170, %171 : vector<2x24xf32>
    %173 = arith.addf %168, %172 : vector<2x24xf32>
    %174 = vector.extract_strided_slice %72 {offsets = [0, 5], sizes = [2, 1], strides = [1, 1]} : vector<2x6xf32> to vector<2x1xf32>
    %175 = vector.broadcast %174 : vector<2x1xf32> to vector<2x24xf32>
    %176 = vector.broadcast %69 : vector<1x24xf32> to vector<2x24xf32>
    %177 = arith.mulf %175, %176 : vector<2x24xf32>
    %178 = arith.addf %173, %177 : vector<2x24xf32>
    %179 = arith.addf %149, %178 : vector<2x24xf32>
    %180 = vector.broadcast %47 : vector<1x24xf32> to vector<2x24xf32>
    %181 = arith.addf %179, %180 : vector<2x24xf32>
    %182 = vector.extract_strided_slice %181 {offsets = [0, 0], sizes = [2, 18], strides = [1, 1]} : vector<2x24xf32> to vector<2x18xf32>
    %183 = arith.negf %182 : vector<2x18xf32>
    %184 = math.exp %183 : vector<2x18xf32>
    %cst_43 = arith.constant 1.000000e+00 : f32
    %185 = vector.broadcast %cst_43 : f32 to vector<2x18xf32>
    %186 = arith.addf %185, %184 : vector<2x18xf32>
    %187 = arith.divf %185, %186 : vector<2x18xf32>
    %188 = vector.extract_strided_slice %187 {offsets = [0, 0], sizes = [2, 6], strides = [1, 1]} : vector<2x18xf32> to vector<2x6xf32>
    %189 = vector.extract_strided_slice %187 {offsets = [0, 6], sizes = [2, 6], strides = [1, 1]} : vector<2x18xf32> to vector<2x6xf32>
    %190 = vector.extract_strided_slice %187 {offsets = [0, 12], sizes = [2, 6], strides = [1, 1]} : vector<2x18xf32> to vector<2x6xf32>
    %191 = vector.extract_strided_slice %181 {offsets = [0, 18], sizes = [2, 6], strides = [1, 1]} : vector<2x24xf32> to vector<2x6xf32>
    %192 = math.tanh %191 : vector<2x6xf32>
    %193 = arith.mulf %189, %73 : vector<2x6xf32>
    %194 = arith.mulf %188, %192 : vector<2x6xf32>
    %195 = arith.addf %193, %194 : vector<2x6xf32>
    %196 = math.tanh %195 : vector<2x6xf32>
    %197 = arith.mulf %190, %196 : vector<2x6xf32>
    %198 = vector.extract_strided_slice %51 {offsets = [2, 0], sizes = [2, 24], strides = [1, 1]} : vector<16x24xf32> to vector<2x24xf32>
    %199 = vector.extract_strided_slice %120 {offsets = [0, 0], sizes = [2, 1], strides = [1, 1]} : vector<2x6xf32> to vector<2x1xf32>
    %200 = vector.broadcast %199 : vector<2x1xf32> to vector<2x24xf32>
    %201 = vector.broadcast %52 : vector<1x24xf32> to vector<2x24xf32>
    %202 = arith.mulf %200, %201 : vector<2x24xf32>
    %203 = vector.extract_strided_slice %120 {offsets = [0, 1], sizes = [2, 1], strides = [1, 1]} : vector<2x6xf32> to vector<2x1xf32>
    %204 = vector.broadcast %203 : vector<2x1xf32> to vector<2x24xf32>
    %205 = vector.broadcast %53 : vector<1x24xf32> to vector<2x24xf32>
    %206 = arith.mulf %204, %205 : vector<2x24xf32>
    %207 = arith.addf %202, %206 : vector<2x24xf32>
    %208 = vector.extract_strided_slice %120 {offsets = [0, 2], sizes = [2, 1], strides = [1, 1]} : vector<2x6xf32> to vector<2x1xf32>
    %209 = vector.broadcast %208 : vector<2x1xf32> to vector<2x24xf32>
    %210 = vector.broadcast %54 : vector<1x24xf32> to vector<2x24xf32>
    %211 = arith.mulf %209, %210 : vector<2x24xf32>
    %212 = arith.addf %207, %211 : vector<2x24xf32>
    %213 = vector.extract_strided_slice %120 {offsets = [0, 3], sizes = [2, 1], strides = [1, 1]} : vector<2x6xf32> to vector<2x1xf32>
    %214 = vector.broadcast %213 : vector<2x1xf32> to vector<2x24xf32>
    %215 = vector.broadcast %55 : vector<1x24xf32> to vector<2x24xf32>
    %216 = arith.mulf %214, %215 : vector<2x24xf32>
    %217 = arith.addf %212, %216 : vector<2x24xf32>
    %218 = vector.extract_strided_slice %120 {offsets = [0, 4], sizes = [2, 1], strides = [1, 1]} : vector<2x6xf32> to vector<2x1xf32>
    %219 = vector.broadcast %218 : vector<2x1xf32> to vector<2x24xf32>
    %220 = vector.broadcast %56 : vector<1x24xf32> to vector<2x24xf32>
    %221 = arith.mulf %219, %220 : vector<2x24xf32>
    %222 = arith.addf %217, %221 : vector<2x24xf32>
    %223 = vector.extract_strided_slice %120 {offsets = [0, 5], sizes = [2, 1], strides = [1, 1]} : vector<2x6xf32> to vector<2x1xf32>
    %224 = vector.broadcast %223 : vector<2x1xf32> to vector<2x24xf32>
    %225 = vector.broadcast %57 : vector<1x24xf32> to vector<2x24xf32>
    %226 = arith.mulf %224, %225 : vector<2x24xf32>
    %227 = arith.addf %222, %226 : vector<2x24xf32>
    %228 = arith.addf %198, %227 : vector<2x24xf32>
    %229 = vector.extract_strided_slice %228 {offsets = [0, 0], sizes = [2, 18], strides = [1, 1]} : vector<2x24xf32> to vector<2x18xf32>
    %230 = arith.negf %229 : vector<2x18xf32>
    %231 = math.exp %230 : vector<2x18xf32>
    %cst_44 = arith.constant 1.000000e+00 : f32
    %232 = vector.broadcast %cst_44 : f32 to vector<2x18xf32>
    %233 = arith.addf %232, %231 : vector<2x18xf32>
    %234 = arith.divf %232, %233 : vector<2x18xf32>
    %235 = vector.extract_strided_slice %234 {offsets = [0, 0], sizes = [2, 6], strides = [1, 1]} : vector<2x18xf32> to vector<2x6xf32>
    %236 = vector.extract_strided_slice %234 {offsets = [0, 6], sizes = [2, 6], strides = [1, 1]} : vector<2x18xf32> to vector<2x6xf32>
    %237 = vector.extract_strided_slice %234 {offsets = [0, 12], sizes = [2, 6], strides = [1, 1]} : vector<2x18xf32> to vector<2x6xf32>
    %238 = vector.extract_strided_slice %228 {offsets = [0, 18], sizes = [2, 6], strides = [1, 1]} : vector<2x24xf32> to vector<2x6xf32>
    %239 = math.tanh %238 : vector<2x6xf32>
    %240 = arith.mulf %236, %118 : vector<2x6xf32>
    %241 = arith.mulf %235, %239 : vector<2x6xf32>
    %242 = arith.addf %240, %241 : vector<2x6xf32>
    %243 = math.tanh %242 : vector<2x6xf32>
    %244 = arith.mulf %237, %243 : vector<2x6xf32>
    %245 = vector.extract_strided_slice %244 {offsets = [0, 0], sizes = [2, 1], strides = [1, 1]} : vector<2x6xf32> to vector<2x1xf32>
    %246 = vector.broadcast %245 : vector<2x1xf32> to vector<2x24xf32>
    %247 = vector.broadcast %58 : vector<1x24xf32> to vector<2x24xf32>
    %248 = arith.mulf %246, %247 : vector<2x24xf32>
    %249 = vector.extract_strided_slice %244 {offsets = [0, 1], sizes = [2, 1], strides = [1, 1]} : vector<2x6xf32> to vector<2x1xf32>
    %250 = vector.broadcast %249 : vector<2x1xf32> to vector<2x24xf32>
    %251 = vector.broadcast %59 : vector<1x24xf32> to vector<2x24xf32>
    %252 = arith.mulf %250, %251 : vector<2x24xf32>
    %253 = arith.addf %248, %252 : vector<2x24xf32>
    %254 = vector.extract_strided_slice %244 {offsets = [0, 2], sizes = [2, 1], strides = [1, 1]} : vector<2x6xf32> to vector<2x1xf32>
    %255 = vector.broadcast %254 : vector<2x1xf32> to vector<2x24xf32>
    %256 = vector.broadcast %60 : vector<1x24xf32> to vector<2x24xf32>
    %257 = arith.mulf %255, %256 : vector<2x24xf32>
    %258 = arith.addf %253, %257 : vector<2x24xf32>
    %259 = vector.extract_strided_slice %244 {offsets = [0, 3], sizes = [2, 1], strides = [1, 1]} : vector<2x6xf32> to vector<2x1xf32>
    %260 = vector.broadcast %259 : vector<2x1xf32> to vector<2x24xf32>
    %261 = vector.broadcast %61 : vector<1x24xf32> to vector<2x24xf32>
    %262 = arith.mulf %260, %261 : vector<2x24xf32>
    %263 = arith.addf %258, %262 : vector<2x24xf32>
    %264 = vector.extract_strided_slice %244 {offsets = [0, 4], sizes = [2, 1], strides = [1, 1]} : vector<2x6xf32> to vector<2x1xf32>
    %265 = vector.broadcast %264 : vector<2x1xf32> to vector<2x24xf32>
    %266 = vector.broadcast %62 : vector<1x24xf32> to vector<2x24xf32>
    %267 = arith.mulf %265, %266 : vector<2x24xf32>
    %268 = arith.addf %263, %267 : vector<2x24xf32>
    %269 = vector.extract_strided_slice %244 {offsets = [0, 5], sizes = [2, 1], strides = [1, 1]} : vector<2x6xf32> to vector<2x1xf32>
    %270 = vector.broadcast %269 : vector<2x1xf32> to vector<2x24xf32>
    %271 = vector.broadcast %63 : vector<1x24xf32> to vector<2x24xf32>
    %272 = arith.mulf %270, %271 : vector<2x24xf32>
    %273 = arith.addf %268, %272 : vector<2x24xf32>
    %274 = vector.extract_strided_slice %197 {offsets = [0, 0], sizes = [2, 1], strides = [1, 1]} : vector<2x6xf32> to vector<2x1xf32>
    %275 = vector.broadcast %274 : vector<2x1xf32> to vector<2x24xf32>
    %276 = vector.broadcast %64 : vector<1x24xf32> to vector<2x24xf32>
    %277 = arith.mulf %275, %276 : vector<2x24xf32>
    %278 = vector.extract_strided_slice %197 {offsets = [0, 1], sizes = [2, 1], strides = [1, 1]} : vector<2x6xf32> to vector<2x1xf32>
    %279 = vector.broadcast %278 : vector<2x1xf32> to vector<2x24xf32>
    %280 = vector.broadcast %65 : vector<1x24xf32> to vector<2x24xf32>
    %281 = arith.mulf %279, %280 : vector<2x24xf32>
    %282 = arith.addf %277, %281 : vector<2x24xf32>
    %283 = vector.extract_strided_slice %197 {offsets = [0, 2], sizes = [2, 1], strides = [1, 1]} : vector<2x6xf32> to vector<2x1xf32>
    %284 = vector.broadcast %283 : vector<2x1xf32> to vector<2x24xf32>
    %285 = vector.broadcast %66 : vector<1x24xf32> to vector<2x24xf32>
    %286 = arith.mulf %284, %285 : vector<2x24xf32>
    %287 = arith.addf %282, %286 : vector<2x24xf32>
    %288 = vector.extract_strided_slice %197 {offsets = [0, 3], sizes = [2, 1], strides = [1, 1]} : vector<2x6xf32> to vector<2x1xf32>
    %289 = vector.broadcast %288 : vector<2x1xf32> to vector<2x24xf32>
    %290 = vector.broadcast %67 : vector<1x24xf32> to vector<2x24xf32>
    %291 = arith.mulf %289, %290 : vector<2x24xf32>
    %292 = arith.addf %287, %291 : vector<2x24xf32>
    %293 = vector.extract_strided_slice %197 {offsets = [0, 4], sizes = [2, 1], strides = [1, 1]} : vector<2x6xf32> to vector<2x1xf32>
    %294 = vector.broadcast %293 : vector<2x1xf32> to vector<2x24xf32>
    %295 = vector.broadcast %68 : vector<1x24xf32> to vector<2x24xf32>
    %296 = arith.mulf %294, %295 : vector<2x24xf32>
    %297 = arith.addf %292, %296 : vector<2x24xf32>
    %298 = vector.extract_strided_slice %197 {offsets = [0, 5], sizes = [2, 1], strides = [1, 1]} : vector<2x6xf32> to vector<2x1xf32>
    %299 = vector.broadcast %298 : vector<2x1xf32> to vector<2x24xf32>
    %300 = vector.broadcast %69 : vector<1x24xf32> to vector<2x24xf32>
    %301 = arith.mulf %299, %300 : vector<2x24xf32>
    %302 = arith.addf %297, %301 : vector<2x24xf32>
    %303 = arith.addf %273, %302 : vector<2x24xf32>
    %304 = vector.broadcast %47 : vector<1x24xf32> to vector<2x24xf32>
    %305 = arith.addf %303, %304 : vector<2x24xf32>
    %306 = vector.extract_strided_slice %305 {offsets = [0, 0], sizes = [2, 18], strides = [1, 1]} : vector<2x24xf32> to vector<2x18xf32>
    %307 = arith.negf %306 : vector<2x18xf32>
    %308 = math.exp %307 : vector<2x18xf32>
    %cst_45 = arith.constant 1.000000e+00 : f32
    %309 = vector.broadcast %cst_45 : f32 to vector<2x18xf32>
    %310 = arith.addf %309, %308 : vector<2x18xf32>
    %311 = arith.divf %309, %310 : vector<2x18xf32>
    %312 = vector.extract_strided_slice %311 {offsets = [0, 0], sizes = [2, 6], strides = [1, 1]} : vector<2x18xf32> to vector<2x6xf32>
    %313 = vector.extract_strided_slice %311 {offsets = [0, 6], sizes = [2, 6], strides = [1, 1]} : vector<2x18xf32> to vector<2x6xf32>
    %314 = vector.extract_strided_slice %311 {offsets = [0, 12], sizes = [2, 6], strides = [1, 1]} : vector<2x18xf32> to vector<2x6xf32>
    %315 = vector.extract_strided_slice %305 {offsets = [0, 18], sizes = [2, 6], strides = [1, 1]} : vector<2x24xf32> to vector<2x6xf32>
    %316 = math.tanh %315 : vector<2x6xf32>
    %317 = arith.mulf %313, %195 : vector<2x6xf32>
    %318 = arith.mulf %312, %316 : vector<2x6xf32>
    %319 = arith.addf %317, %318 : vector<2x6xf32>
    %320 = math.tanh %319 : vector<2x6xf32>
    %321 = arith.mulf %314, %320 : vector<2x6xf32>
    %322 = vector.extract_strided_slice %51 {offsets = [4, 0], sizes = [2, 24], strides = [1, 1]} : vector<16x24xf32> to vector<2x24xf32>
    %323 = vector.extract_strided_slice %244 {offsets = [0, 0], sizes = [2, 1], strides = [1, 1]} : vector<2x6xf32> to vector<2x1xf32>
    %324 = vector.broadcast %323 : vector<2x1xf32> to vector<2x24xf32>
    %325 = vector.broadcast %52 : vector<1x24xf32> to vector<2x24xf32>
    %326 = arith.mulf %324, %325 : vector<2x24xf32>
    %327 = vector.extract_strided_slice %244 {offsets = [0, 1], sizes = [2, 1], strides = [1, 1]} : vector<2x6xf32> to vector<2x1xf32>
    %328 = vector.broadcast %327 : vector<2x1xf32> to vector<2x24xf32>
    %329 = vector.broadcast %53 : vector<1x24xf32> to vector<2x24xf32>
    %330 = arith.mulf %328, %329 : vector<2x24xf32>
    %331 = arith.addf %326, %330 : vector<2x24xf32>
    %332 = vector.extract_strided_slice %244 {offsets = [0, 2], sizes = [2, 1], strides = [1, 1]} : vector<2x6xf32> to vector<2x1xf32>
    %333 = vector.broadcast %332 : vector<2x1xf32> to vector<2x24xf32>
    %334 = vector.broadcast %54 : vector<1x24xf32> to vector<2x24xf32>
    %335 = arith.mulf %333, %334 : vector<2x24xf32>
    %336 = arith.addf %331, %335 : vector<2x24xf32>
    %337 = vector.extract_strided_slice %244 {offsets = [0, 3], sizes = [2, 1], strides = [1, 1]} : vector<2x6xf32> to vector<2x1xf32>
    %338 = vector.broadcast %337 : vector<2x1xf32> to vector<2x24xf32>
    %339 = vector.broadcast %55 : vector<1x24xf32> to vector<2x24xf32>
    %340 = arith.mulf %338, %339 : vector<2x24xf32>
    %341 = arith.addf %336, %340 : vector<2x24xf32>
    %342 = vector.extract_strided_slice %244 {offsets = [0, 4], sizes = [2, 1], strides = [1, 1]} : vector<2x6xf32> to vector<2x1xf32>
    %343 = vector.broadcast %342 : vector<2x1xf32> to vector<2x24xf32>
    %344 = vector.broadcast %56 : vector<1x24xf32> to vector<2x24xf32>
    %345 = arith.mulf %343, %344 : vector<2x24xf32>
    %346 = arith.addf %341, %345 : vector<2x24xf32>
    %347 = vector.extract_strided_slice %244 {offsets = [0, 5], sizes = [2, 1], strides = [1, 1]} : vector<2x6xf32> to vector<2x1xf32>
    %348 = vector.broadcast %347 : vector<2x1xf32> to vector<2x24xf32>
    %349 = vector.broadcast %57 : vector<1x24xf32> to vector<2x24xf32>
    %350 = arith.mulf %348, %349 : vector<2x24xf32>
    %351 = arith.addf %346, %350 : vector<2x24xf32>
    %352 = arith.addf %322, %351 : vector<2x24xf32>
    %353 = vector.extract_strided_slice %352 {offsets = [0, 0], sizes = [2, 18], strides = [1, 1]} : vector<2x24xf32> to vector<2x18xf32>
    %354 = arith.negf %353 : vector<2x18xf32>
    %355 = math.exp %354 : vector<2x18xf32>
    %cst_46 = arith.constant 1.000000e+00 : f32
    %356 = vector.broadcast %cst_46 : f32 to vector<2x18xf32>
    %357 = arith.addf %356, %355 : vector<2x18xf32>
    %358 = arith.divf %356, %357 : vector<2x18xf32>
    %359 = vector.extract_strided_slice %358 {offsets = [0, 0], sizes = [2, 6], strides = [1, 1]} : vector<2x18xf32> to vector<2x6xf32>
    %360 = vector.extract_strided_slice %358 {offsets = [0, 6], sizes = [2, 6], strides = [1, 1]} : vector<2x18xf32> to vector<2x6xf32>
    %361 = vector.extract_strided_slice %358 {offsets = [0, 12], sizes = [2, 6], strides = [1, 1]} : vector<2x18xf32> to vector<2x6xf32>
    %362 = vector.extract_strided_slice %352 {offsets = [0, 18], sizes = [2, 6], strides = [1, 1]} : vector<2x24xf32> to vector<2x6xf32>
    %363 = math.tanh %362 : vector<2x6xf32>
    %364 = arith.mulf %360, %242 : vector<2x6xf32>
    %365 = arith.mulf %359, %363 : vector<2x6xf32>
    %366 = arith.addf %364, %365 : vector<2x6xf32>
    %367 = math.tanh %366 : vector<2x6xf32>
    %368 = arith.mulf %361, %367 : vector<2x6xf32>
    %369 = vector.extract_strided_slice %368 {offsets = [0, 0], sizes = [2, 1], strides = [1, 1]} : vector<2x6xf32> to vector<2x1xf32>
    %370 = vector.broadcast %369 : vector<2x1xf32> to vector<2x24xf32>
    %371 = vector.broadcast %58 : vector<1x24xf32> to vector<2x24xf32>
    %372 = arith.mulf %370, %371 : vector<2x24xf32>
    %373 = vector.extract_strided_slice %368 {offsets = [0, 1], sizes = [2, 1], strides = [1, 1]} : vector<2x6xf32> to vector<2x1xf32>
    %374 = vector.broadcast %373 : vector<2x1xf32> to vector<2x24xf32>
    %375 = vector.broadcast %59 : vector<1x24xf32> to vector<2x24xf32>
    %376 = arith.mulf %374, %375 : vector<2x24xf32>
    %377 = arith.addf %372, %376 : vector<2x24xf32>
    %378 = vector.extract_strided_slice %368 {offsets = [0, 2], sizes = [2, 1], strides = [1, 1]} : vector<2x6xf32> to vector<2x1xf32>
    %379 = vector.broadcast %378 : vector<2x1xf32> to vector<2x24xf32>
    %380 = vector.broadcast %60 : vector<1x24xf32> to vector<2x24xf32>
    %381 = arith.mulf %379, %380 : vector<2x24xf32>
    %382 = arith.addf %377, %381 : vector<2x24xf32>
    %383 = vector.extract_strided_slice %368 {offsets = [0, 3], sizes = [2, 1], strides = [1, 1]} : vector<2x6xf32> to vector<2x1xf32>
    %384 = vector.broadcast %383 : vector<2x1xf32> to vector<2x24xf32>
    %385 = vector.broadcast %61 : vector<1x24xf32> to vector<2x24xf32>
    %386 = arith.mulf %384, %385 : vector<2x24xf32>
    %387 = arith.addf %382, %386 : vector<2x24xf32>
    %388 = vector.extract_strided_slice %368 {offsets = [0, 4], sizes = [2, 1], strides = [1, 1]} : vector<2x6xf32> to vector<2x1xf32>
    %389 = vector.broadcast %388 : vector<2x1xf32> to vector<2x24xf32>
    %390 = vector.broadcast %62 : vector<1x24xf32> to vector<2x24xf32>
    %391 = arith.mulf %389, %390 : vector<2x24xf32>
    %392 = arith.addf %387, %391 : vector<2x24xf32>
    %393 = vector.extract_strided_slice %368 {offsets = [0, 5], sizes = [2, 1], strides = [1, 1]} : vector<2x6xf32> to vector<2x1xf32>
    %394 = vector.broadcast %393 : vector<2x1xf32> to vector<2x24xf32>
    %395 = vector.broadcast %63 : vector<1x24xf32> to vector<2x24xf32>
    %396 = arith.mulf %394, %395 : vector<2x24xf32>
    %397 = arith.addf %392, %396 : vector<2x24xf32>
    %398 = vector.extract_strided_slice %321 {offsets = [0, 0], sizes = [2, 1], strides = [1, 1]} : vector<2x6xf32> to vector<2x1xf32>
    %399 = vector.broadcast %398 : vector<2x1xf32> to vector<2x24xf32>
    %400 = vector.broadcast %64 : vector<1x24xf32> to vector<2x24xf32>
    %401 = arith.mulf %399, %400 : vector<2x24xf32>
    %402 = vector.extract_strided_slice %321 {offsets = [0, 1], sizes = [2, 1], strides = [1, 1]} : vector<2x6xf32> to vector<2x1xf32>
    %403 = vector.broadcast %402 : vector<2x1xf32> to vector<2x24xf32>
    %404 = vector.broadcast %65 : vector<1x24xf32> to vector<2x24xf32>
    %405 = arith.mulf %403, %404 : vector<2x24xf32>
    %406 = arith.addf %401, %405 : vector<2x24xf32>
    %407 = vector.extract_strided_slice %321 {offsets = [0, 2], sizes = [2, 1], strides = [1, 1]} : vector<2x6xf32> to vector<2x1xf32>
    %408 = vector.broadcast %407 : vector<2x1xf32> to vector<2x24xf32>
    %409 = vector.broadcast %66 : vector<1x24xf32> to vector<2x24xf32>
    %410 = arith.mulf %408, %409 : vector<2x24xf32>
    %411 = arith.addf %406, %410 : vector<2x24xf32>
    %412 = vector.extract_strided_slice %321 {offsets = [0, 3], sizes = [2, 1], strides = [1, 1]} : vector<2x6xf32> to vector<2x1xf32>
    %413 = vector.broadcast %412 : vector<2x1xf32> to vector<2x24xf32>
    %414 = vector.broadcast %67 : vector<1x24xf32> to vector<2x24xf32>
    %415 = arith.mulf %413, %414 : vector<2x24xf32>
    %416 = arith.addf %411, %415 : vector<2x24xf32>
    %417 = vector.extract_strided_slice %321 {offsets = [0, 4], sizes = [2, 1], strides = [1, 1]} : vector<2x6xf32> to vector<2x1xf32>
    %418 = vector.broadcast %417 : vector<2x1xf32> to vector<2x24xf32>
    %419 = vector.broadcast %68 : vector<1x24xf32> to vector<2x24xf32>
    %420 = arith.mulf %418, %419 : vector<2x24xf32>
    %421 = arith.addf %416, %420 : vector<2x24xf32>
    %422 = vector.extract_strided_slice %321 {offsets = [0, 5], sizes = [2, 1], strides = [1, 1]} : vector<2x6xf32> to vector<2x1xf32>
    %423 = vector.broadcast %422 : vector<2x1xf32> to vector<2x24xf32>
    %424 = vector.broadcast %69 : vector<1x24xf32> to vector<2x24xf32>
    %425 = arith.mulf %423, %424 : vector<2x24xf32>
    %426 = arith.addf %421, %425 : vector<2x24xf32>
    %427 = arith.addf %397, %426 : vector<2x24xf32>
    %428 = vector.broadcast %47 : vector<1x24xf32> to vector<2x24xf32>
    %429 = arith.addf %427, %428 : vector<2x24xf32>
    %430 = vector.extract_strided_slice %429 {offsets = [0, 0], sizes = [2, 18], strides = [1, 1]} : vector<2x24xf32> to vector<2x18xf32>
    %431 = arith.negf %430 : vector<2x18xf32>
    %432 = math.exp %431 : vector<2x18xf32>
    %cst_47 = arith.constant 1.000000e+00 : f32
    %433 = vector.broadcast %cst_47 : f32 to vector<2x18xf32>
    %434 = arith.addf %433, %432 : vector<2x18xf32>
    %435 = arith.divf %433, %434 : vector<2x18xf32>
    %436 = vector.extract_strided_slice %435 {offsets = [0, 0], sizes = [2, 6], strides = [1, 1]} : vector<2x18xf32> to vector<2x6xf32>
    %437 = vector.extract_strided_slice %435 {offsets = [0, 6], sizes = [2, 6], strides = [1, 1]} : vector<2x18xf32> to vector<2x6xf32>
    %438 = vector.extract_strided_slice %435 {offsets = [0, 12], sizes = [2, 6], strides = [1, 1]} : vector<2x18xf32> to vector<2x6xf32>
    %439 = vector.extract_strided_slice %429 {offsets = [0, 18], sizes = [2, 6], strides = [1, 1]} : vector<2x24xf32> to vector<2x6xf32>
    %440 = math.tanh %439 : vector<2x6xf32>
    %441 = arith.mulf %437, %319 : vector<2x6xf32>
    %442 = arith.mulf %436, %440 : vector<2x6xf32>
    %443 = arith.addf %441, %442 : vector<2x6xf32>
    %444 = math.tanh %443 : vector<2x6xf32>
    %445 = arith.mulf %438, %444 : vector<2x6xf32>
    %446 = vector.extract_strided_slice %51 {offsets = [6, 0], sizes = [2, 24], strides = [1, 1]} : vector<16x24xf32> to vector<2x24xf32>
    %447 = vector.extract_strided_slice %368 {offsets = [0, 0], sizes = [2, 1], strides = [1, 1]} : vector<2x6xf32> to vector<2x1xf32>
    %448 = vector.broadcast %447 : vector<2x1xf32> to vector<2x24xf32>
    %449 = vector.broadcast %52 : vector<1x24xf32> to vector<2x24xf32>
    %450 = arith.mulf %448, %449 : vector<2x24xf32>
    %451 = vector.extract_strided_slice %368 {offsets = [0, 1], sizes = [2, 1], strides = [1, 1]} : vector<2x6xf32> to vector<2x1xf32>
    %452 = vector.broadcast %451 : vector<2x1xf32> to vector<2x24xf32>
    %453 = vector.broadcast %53 : vector<1x24xf32> to vector<2x24xf32>
    %454 = arith.mulf %452, %453 : vector<2x24xf32>
    %455 = arith.addf %450, %454 : vector<2x24xf32>
    %456 = vector.extract_strided_slice %368 {offsets = [0, 2], sizes = [2, 1], strides = [1, 1]} : vector<2x6xf32> to vector<2x1xf32>
    %457 = vector.broadcast %456 : vector<2x1xf32> to vector<2x24xf32>
    %458 = vector.broadcast %54 : vector<1x24xf32> to vector<2x24xf32>
    %459 = arith.mulf %457, %458 : vector<2x24xf32>
    %460 = arith.addf %455, %459 : vector<2x24xf32>
    %461 = vector.extract_strided_slice %368 {offsets = [0, 3], sizes = [2, 1], strides = [1, 1]} : vector<2x6xf32> to vector<2x1xf32>
    %462 = vector.broadcast %461 : vector<2x1xf32> to vector<2x24xf32>
    %463 = vector.broadcast %55 : vector<1x24xf32> to vector<2x24xf32>
    %464 = arith.mulf %462, %463 : vector<2x24xf32>
    %465 = arith.addf %460, %464 : vector<2x24xf32>
    %466 = vector.extract_strided_slice %368 {offsets = [0, 4], sizes = [2, 1], strides = [1, 1]} : vector<2x6xf32> to vector<2x1xf32>
    %467 = vector.broadcast %466 : vector<2x1xf32> to vector<2x24xf32>
    %468 = vector.broadcast %56 : vector<1x24xf32> to vector<2x24xf32>
    %469 = arith.mulf %467, %468 : vector<2x24xf32>
    %470 = arith.addf %465, %469 : vector<2x24xf32>
    %471 = vector.extract_strided_slice %368 {offsets = [0, 5], sizes = [2, 1], strides = [1, 1]} : vector<2x6xf32> to vector<2x1xf32>
    %472 = vector.broadcast %471 : vector<2x1xf32> to vector<2x24xf32>
    %473 = vector.broadcast %57 : vector<1x24xf32> to vector<2x24xf32>
    %474 = arith.mulf %472, %473 : vector<2x24xf32>
    %475 = arith.addf %470, %474 : vector<2x24xf32>
    %476 = arith.addf %446, %475 : vector<2x24xf32>
    %477 = vector.extract_strided_slice %476 {offsets = [0, 0], sizes = [2, 18], strides = [1, 1]} : vector<2x24xf32> to vector<2x18xf32>
    %478 = arith.negf %477 : vector<2x18xf32>
    %479 = math.exp %478 : vector<2x18xf32>
    %cst_48 = arith.constant 1.000000e+00 : f32
    %480 = vector.broadcast %cst_48 : f32 to vector<2x18xf32>
    %481 = arith.addf %480, %479 : vector<2x18xf32>
    %482 = arith.divf %480, %481 : vector<2x18xf32>
    %483 = vector.extract_strided_slice %482 {offsets = [0, 0], sizes = [2, 6], strides = [1, 1]} : vector<2x18xf32> to vector<2x6xf32>
    %484 = vector.extract_strided_slice %482 {offsets = [0, 6], sizes = [2, 6], strides = [1, 1]} : vector<2x18xf32> to vector<2x6xf32>
    %485 = vector.extract_strided_slice %482 {offsets = [0, 12], sizes = [2, 6], strides = [1, 1]} : vector<2x18xf32> to vector<2x6xf32>
    %486 = vector.extract_strided_slice %476 {offsets = [0, 18], sizes = [2, 6], strides = [1, 1]} : vector<2x24xf32> to vector<2x6xf32>
    %487 = math.tanh %486 : vector<2x6xf32>
    %488 = arith.mulf %484, %366 : vector<2x6xf32>
    %489 = arith.mulf %483, %487 : vector<2x6xf32>
    %490 = arith.addf %488, %489 : vector<2x6xf32>
    %491 = math.tanh %490 : vector<2x6xf32>
    %492 = arith.mulf %485, %491 : vector<2x6xf32>
    %493 = vector.extract_strided_slice %492 {offsets = [0, 0], sizes = [2, 1], strides = [1, 1]} : vector<2x6xf32> to vector<2x1xf32>
    %494 = vector.broadcast %493 : vector<2x1xf32> to vector<2x24xf32>
    %495 = vector.broadcast %58 : vector<1x24xf32> to vector<2x24xf32>
    %496 = arith.mulf %494, %495 : vector<2x24xf32>
    %497 = vector.extract_strided_slice %492 {offsets = [0, 1], sizes = [2, 1], strides = [1, 1]} : vector<2x6xf32> to vector<2x1xf32>
    %498 = vector.broadcast %497 : vector<2x1xf32> to vector<2x24xf32>
    %499 = vector.broadcast %59 : vector<1x24xf32> to vector<2x24xf32>
    %500 = arith.mulf %498, %499 : vector<2x24xf32>
    %501 = arith.addf %496, %500 : vector<2x24xf32>
    %502 = vector.extract_strided_slice %492 {offsets = [0, 2], sizes = [2, 1], strides = [1, 1]} : vector<2x6xf32> to vector<2x1xf32>
    %503 = vector.broadcast %502 : vector<2x1xf32> to vector<2x24xf32>
    %504 = vector.broadcast %60 : vector<1x24xf32> to vector<2x24xf32>
    %505 = arith.mulf %503, %504 : vector<2x24xf32>
    %506 = arith.addf %501, %505 : vector<2x24xf32>
    %507 = vector.extract_strided_slice %492 {offsets = [0, 3], sizes = [2, 1], strides = [1, 1]} : vector<2x6xf32> to vector<2x1xf32>
    %508 = vector.broadcast %507 : vector<2x1xf32> to vector<2x24xf32>
    %509 = vector.broadcast %61 : vector<1x24xf32> to vector<2x24xf32>
    %510 = arith.mulf %508, %509 : vector<2x24xf32>
    %511 = arith.addf %506, %510 : vector<2x24xf32>
    %512 = vector.extract_strided_slice %492 {offsets = [0, 4], sizes = [2, 1], strides = [1, 1]} : vector<2x6xf32> to vector<2x1xf32>
    %513 = vector.broadcast %512 : vector<2x1xf32> to vector<2x24xf32>
    %514 = vector.broadcast %62 : vector<1x24xf32> to vector<2x24xf32>
    %515 = arith.mulf %513, %514 : vector<2x24xf32>
    %516 = arith.addf %511, %515 : vector<2x24xf32>
    %517 = vector.extract_strided_slice %492 {offsets = [0, 5], sizes = [2, 1], strides = [1, 1]} : vector<2x6xf32> to vector<2x1xf32>
    %518 = vector.broadcast %517 : vector<2x1xf32> to vector<2x24xf32>
    %519 = vector.broadcast %63 : vector<1x24xf32> to vector<2x24xf32>
    %520 = arith.mulf %518, %519 : vector<2x24xf32>
    %521 = arith.addf %516, %520 : vector<2x24xf32>
    %522 = vector.extract_strided_slice %445 {offsets = [0, 0], sizes = [2, 1], strides = [1, 1]} : vector<2x6xf32> to vector<2x1xf32>
    %523 = vector.broadcast %522 : vector<2x1xf32> to vector<2x24xf32>
    %524 = vector.broadcast %64 : vector<1x24xf32> to vector<2x24xf32>
    %525 = arith.mulf %523, %524 : vector<2x24xf32>
    %526 = vector.extract_strided_slice %445 {offsets = [0, 1], sizes = [2, 1], strides = [1, 1]} : vector<2x6xf32> to vector<2x1xf32>
    %527 = vector.broadcast %526 : vector<2x1xf32> to vector<2x24xf32>
    %528 = vector.broadcast %65 : vector<1x24xf32> to vector<2x24xf32>
    %529 = arith.mulf %527, %528 : vector<2x24xf32>
    %530 = arith.addf %525, %529 : vector<2x24xf32>
    %531 = vector.extract_strided_slice %445 {offsets = [0, 2], sizes = [2, 1], strides = [1, 1]} : vector<2x6xf32> to vector<2x1xf32>
    %532 = vector.broadcast %531 : vector<2x1xf32> to vector<2x24xf32>
    %533 = vector.broadcast %66 : vector<1x24xf32> to vector<2x24xf32>
    %534 = arith.mulf %532, %533 : vector<2x24xf32>
    %535 = arith.addf %530, %534 : vector<2x24xf32>
    %536 = vector.extract_strided_slice %445 {offsets = [0, 3], sizes = [2, 1], strides = [1, 1]} : vector<2x6xf32> to vector<2x1xf32>
    %537 = vector.broadcast %536 : vector<2x1xf32> to vector<2x24xf32>
    %538 = vector.broadcast %67 : vector<1x24xf32> to vector<2x24xf32>
    %539 = arith.mulf %537, %538 : vector<2x24xf32>
    %540 = arith.addf %535, %539 : vector<2x24xf32>
    %541 = vector.extract_strided_slice %445 {offsets = [0, 4], sizes = [2, 1], strides = [1, 1]} : vector<2x6xf32> to vector<2x1xf32>
    %542 = vector.broadcast %541 : vector<2x1xf32> to vector<2x24xf32>
    %543 = vector.broadcast %68 : vector<1x24xf32> to vector<2x24xf32>
    %544 = arith.mulf %542, %543 : vector<2x24xf32>
    %545 = arith.addf %540, %544 : vector<2x24xf32>
    %546 = vector.extract_strided_slice %445 {offsets = [0, 5], sizes = [2, 1], strides = [1, 1]} : vector<2x6xf32> to vector<2x1xf32>
    %547 = vector.broadcast %546 : vector<2x1xf32> to vector<2x24xf32>
    %548 = vector.broadcast %69 : vector<1x24xf32> to vector<2x24xf32>
    %549 = arith.mulf %547, %548 : vector<2x24xf32>
    %550 = arith.addf %545, %549 : vector<2x24xf32>
    %551 = arith.addf %521, %550 : vector<2x24xf32>
    %552 = vector.broadcast %47 : vector<1x24xf32> to vector<2x24xf32>
    %553 = arith.addf %551, %552 : vector<2x24xf32>
    %554 = vector.extract_strided_slice %553 {offsets = [0, 0], sizes = [2, 18], strides = [1, 1]} : vector<2x24xf32> to vector<2x18xf32>
    %555 = arith.negf %554 : vector<2x18xf32>
    %556 = math.exp %555 : vector<2x18xf32>
    %cst_49 = arith.constant 1.000000e+00 : f32
    %557 = vector.broadcast %cst_49 : f32 to vector<2x18xf32>
    %558 = arith.addf %557, %556 : vector<2x18xf32>
    %559 = arith.divf %557, %558 : vector<2x18xf32>
    %560 = vector.extract_strided_slice %559 {offsets = [0, 0], sizes = [2, 6], strides = [1, 1]} : vector<2x18xf32> to vector<2x6xf32>
    %561 = vector.extract_strided_slice %559 {offsets = [0, 6], sizes = [2, 6], strides = [1, 1]} : vector<2x18xf32> to vector<2x6xf32>
    %562 = vector.extract_strided_slice %559 {offsets = [0, 12], sizes = [2, 6], strides = [1, 1]} : vector<2x18xf32> to vector<2x6xf32>
    %563 = vector.extract_strided_slice %553 {offsets = [0, 18], sizes = [2, 6], strides = [1, 1]} : vector<2x24xf32> to vector<2x6xf32>
    %564 = math.tanh %563 : vector<2x6xf32>
    %565 = arith.mulf %561, %443 : vector<2x6xf32>
    %566 = arith.mulf %560, %564 : vector<2x6xf32>
    %567 = arith.addf %565, %566 : vector<2x6xf32>
    %568 = math.tanh %567 : vector<2x6xf32>
    %569 = arith.mulf %562, %568 : vector<2x6xf32>
    %570 = vector.extract_strided_slice %51 {offsets = [8, 0], sizes = [2, 24], strides = [1, 1]} : vector<16x24xf32> to vector<2x24xf32>
    %571 = vector.extract_strided_slice %492 {offsets = [0, 0], sizes = [2, 1], strides = [1, 1]} : vector<2x6xf32> to vector<2x1xf32>
    %572 = vector.broadcast %571 : vector<2x1xf32> to vector<2x24xf32>
    %573 = vector.broadcast %52 : vector<1x24xf32> to vector<2x24xf32>
    %574 = arith.mulf %572, %573 : vector<2x24xf32>
    %575 = vector.extract_strided_slice %492 {offsets = [0, 1], sizes = [2, 1], strides = [1, 1]} : vector<2x6xf32> to vector<2x1xf32>
    %576 = vector.broadcast %575 : vector<2x1xf32> to vector<2x24xf32>
    %577 = vector.broadcast %53 : vector<1x24xf32> to vector<2x24xf32>
    %578 = arith.mulf %576, %577 : vector<2x24xf32>
    %579 = arith.addf %574, %578 : vector<2x24xf32>
    %580 = vector.extract_strided_slice %492 {offsets = [0, 2], sizes = [2, 1], strides = [1, 1]} : vector<2x6xf32> to vector<2x1xf32>
    %581 = vector.broadcast %580 : vector<2x1xf32> to vector<2x24xf32>
    %582 = vector.broadcast %54 : vector<1x24xf32> to vector<2x24xf32>
    %583 = arith.mulf %581, %582 : vector<2x24xf32>
    %584 = arith.addf %579, %583 : vector<2x24xf32>
    %585 = vector.extract_strided_slice %492 {offsets = [0, 3], sizes = [2, 1], strides = [1, 1]} : vector<2x6xf32> to vector<2x1xf32>
    %586 = vector.broadcast %585 : vector<2x1xf32> to vector<2x24xf32>
    %587 = vector.broadcast %55 : vector<1x24xf32> to vector<2x24xf32>
    %588 = arith.mulf %586, %587 : vector<2x24xf32>
    %589 = arith.addf %584, %588 : vector<2x24xf32>
    %590 = vector.extract_strided_slice %492 {offsets = [0, 4], sizes = [2, 1], strides = [1, 1]} : vector<2x6xf32> to vector<2x1xf32>
    %591 = vector.broadcast %590 : vector<2x1xf32> to vector<2x24xf32>
    %592 = vector.broadcast %56 : vector<1x24xf32> to vector<2x24xf32>
    %593 = arith.mulf %591, %592 : vector<2x24xf32>
    %594 = arith.addf %589, %593 : vector<2x24xf32>
    %595 = vector.extract_strided_slice %492 {offsets = [0, 5], sizes = [2, 1], strides = [1, 1]} : vector<2x6xf32> to vector<2x1xf32>
    %596 = vector.broadcast %595 : vector<2x1xf32> to vector<2x24xf32>
    %597 = vector.broadcast %57 : vector<1x24xf32> to vector<2x24xf32>
    %598 = arith.mulf %596, %597 : vector<2x24xf32>
    %599 = arith.addf %594, %598 : vector<2x24xf32>
    %600 = arith.addf %570, %599 : vector<2x24xf32>
    %601 = vector.extract_strided_slice %600 {offsets = [0, 0], sizes = [2, 18], strides = [1, 1]} : vector<2x24xf32> to vector<2x18xf32>
    %602 = arith.negf %601 : vector<2x18xf32>
    %603 = math.exp %602 : vector<2x18xf32>
    %cst_50 = arith.constant 1.000000e+00 : f32
    %604 = vector.broadcast %cst_50 : f32 to vector<2x18xf32>
    %605 = arith.addf %604, %603 : vector<2x18xf32>
    %606 = arith.divf %604, %605 : vector<2x18xf32>
    %607 = vector.extract_strided_slice %606 {offsets = [0, 0], sizes = [2, 6], strides = [1, 1]} : vector<2x18xf32> to vector<2x6xf32>
    %608 = vector.extract_strided_slice %606 {offsets = [0, 6], sizes = [2, 6], strides = [1, 1]} : vector<2x18xf32> to vector<2x6xf32>
    %609 = vector.extract_strided_slice %606 {offsets = [0, 12], sizes = [2, 6], strides = [1, 1]} : vector<2x18xf32> to vector<2x6xf32>
    %610 = vector.extract_strided_slice %600 {offsets = [0, 18], sizes = [2, 6], strides = [1, 1]} : vector<2x24xf32> to vector<2x6xf32>
    %611 = math.tanh %610 : vector<2x6xf32>
    %612 = arith.mulf %608, %490 : vector<2x6xf32>
    %613 = arith.mulf %607, %611 : vector<2x6xf32>
    %614 = arith.addf %612, %613 : vector<2x6xf32>
    %615 = math.tanh %614 : vector<2x6xf32>
    %616 = arith.mulf %609, %615 : vector<2x6xf32>
    %617 = vector.extract_strided_slice %616 {offsets = [0, 0], sizes = [2, 1], strides = [1, 1]} : vector<2x6xf32> to vector<2x1xf32>
    %618 = vector.broadcast %617 : vector<2x1xf32> to vector<2x24xf32>
    %619 = vector.broadcast %58 : vector<1x24xf32> to vector<2x24xf32>
    %620 = arith.mulf %618, %619 : vector<2x24xf32>
    %621 = vector.extract_strided_slice %616 {offsets = [0, 1], sizes = [2, 1], strides = [1, 1]} : vector<2x6xf32> to vector<2x1xf32>
    %622 = vector.broadcast %621 : vector<2x1xf32> to vector<2x24xf32>
    %623 = vector.broadcast %59 : vector<1x24xf32> to vector<2x24xf32>
    %624 = arith.mulf %622, %623 : vector<2x24xf32>
    %625 = arith.addf %620, %624 : vector<2x24xf32>
    %626 = vector.extract_strided_slice %616 {offsets = [0, 2], sizes = [2, 1], strides = [1, 1]} : vector<2x6xf32> to vector<2x1xf32>
    %627 = vector.broadcast %626 : vector<2x1xf32> to vector<2x24xf32>
    %628 = vector.broadcast %60 : vector<1x24xf32> to vector<2x24xf32>
    %629 = arith.mulf %627, %628 : vector<2x24xf32>
    %630 = arith.addf %625, %629 : vector<2x24xf32>
    %631 = vector.extract_strided_slice %616 {offsets = [0, 3], sizes = [2, 1], strides = [1, 1]} : vector<2x6xf32> to vector<2x1xf32>
    %632 = vector.broadcast %631 : vector<2x1xf32> to vector<2x24xf32>
    %633 = vector.broadcast %61 : vector<1x24xf32> to vector<2x24xf32>
    %634 = arith.mulf %632, %633 : vector<2x24xf32>
    %635 = arith.addf %630, %634 : vector<2x24xf32>
    %636 = vector.extract_strided_slice %616 {offsets = [0, 4], sizes = [2, 1], strides = [1, 1]} : vector<2x6xf32> to vector<2x1xf32>
    %637 = vector.broadcast %636 : vector<2x1xf32> to vector<2x24xf32>
    %638 = vector.broadcast %62 : vector<1x24xf32> to vector<2x24xf32>
    %639 = arith.mulf %637, %638 : vector<2x24xf32>
    %640 = arith.addf %635, %639 : vector<2x24xf32>
    %641 = vector.extract_strided_slice %616 {offsets = [0, 5], sizes = [2, 1], strides = [1, 1]} : vector<2x6xf32> to vector<2x1xf32>
    %642 = vector.broadcast %641 : vector<2x1xf32> to vector<2x24xf32>
    %643 = vector.broadcast %63 : vector<1x24xf32> to vector<2x24xf32>
    %644 = arith.mulf %642, %643 : vector<2x24xf32>
    %645 = arith.addf %640, %644 : vector<2x24xf32>
    %646 = vector.extract_strided_slice %569 {offsets = [0, 0], sizes = [2, 1], strides = [1, 1]} : vector<2x6xf32> to vector<2x1xf32>
    %647 = vector.broadcast %646 : vector<2x1xf32> to vector<2x24xf32>
    %648 = vector.broadcast %64 : vector<1x24xf32> to vector<2x24xf32>
    %649 = arith.mulf %647, %648 : vector<2x24xf32>
    %650 = vector.extract_strided_slice %569 {offsets = [0, 1], sizes = [2, 1], strides = [1, 1]} : vector<2x6xf32> to vector<2x1xf32>
    %651 = vector.broadcast %650 : vector<2x1xf32> to vector<2x24xf32>
    %652 = vector.broadcast %65 : vector<1x24xf32> to vector<2x24xf32>
    %653 = arith.mulf %651, %652 : vector<2x24xf32>
    %654 = arith.addf %649, %653 : vector<2x24xf32>
    %655 = vector.extract_strided_slice %569 {offsets = [0, 2], sizes = [2, 1], strides = [1, 1]} : vector<2x6xf32> to vector<2x1xf32>
    %656 = vector.broadcast %655 : vector<2x1xf32> to vector<2x24xf32>
    %657 = vector.broadcast %66 : vector<1x24xf32> to vector<2x24xf32>
    %658 = arith.mulf %656, %657 : vector<2x24xf32>
    %659 = arith.addf %654, %658 : vector<2x24xf32>
    %660 = vector.extract_strided_slice %569 {offsets = [0, 3], sizes = [2, 1], strides = [1, 1]} : vector<2x6xf32> to vector<2x1xf32>
    %661 = vector.broadcast %660 : vector<2x1xf32> to vector<2x24xf32>
    %662 = vector.broadcast %67 : vector<1x24xf32> to vector<2x24xf32>
    %663 = arith.mulf %661, %662 : vector<2x24xf32>
    %664 = arith.addf %659, %663 : vector<2x24xf32>
    %665 = vector.extract_strided_slice %569 {offsets = [0, 4], sizes = [2, 1], strides = [1, 1]} : vector<2x6xf32> to vector<2x1xf32>
    %666 = vector.broadcast %665 : vector<2x1xf32> to vector<2x24xf32>
    %667 = vector.broadcast %68 : vector<1x24xf32> to vector<2x24xf32>
    %668 = arith.mulf %666, %667 : vector<2x24xf32>
    %669 = arith.addf %664, %668 : vector<2x24xf32>
    %670 = vector.extract_strided_slice %569 {offsets = [0, 5], sizes = [2, 1], strides = [1, 1]} : vector<2x6xf32> to vector<2x1xf32>
    %671 = vector.broadcast %670 : vector<2x1xf32> to vector<2x24xf32>
    %672 = vector.broadcast %69 : vector<1x24xf32> to vector<2x24xf32>
    %673 = arith.mulf %671, %672 : vector<2x24xf32>
    %674 = arith.addf %669, %673 : vector<2x24xf32>
    %675 = arith.addf %645, %674 : vector<2x24xf32>
    %676 = vector.broadcast %47 : vector<1x24xf32> to vector<2x24xf32>
    %677 = arith.addf %675, %676 : vector<2x24xf32>
    %678 = vector.extract_strided_slice %677 {offsets = [0, 0], sizes = [2, 18], strides = [1, 1]} : vector<2x24xf32> to vector<2x18xf32>
    %679 = arith.negf %678 : vector<2x18xf32>
    %680 = math.exp %679 : vector<2x18xf32>
    %cst_51 = arith.constant 1.000000e+00 : f32
    %681 = vector.broadcast %cst_51 : f32 to vector<2x18xf32>
    %682 = arith.addf %681, %680 : vector<2x18xf32>
    %683 = arith.divf %681, %682 : vector<2x18xf32>
    %684 = vector.extract_strided_slice %683 {offsets = [0, 0], sizes = [2, 6], strides = [1, 1]} : vector<2x18xf32> to vector<2x6xf32>
    %685 = vector.extract_strided_slice %683 {offsets = [0, 6], sizes = [2, 6], strides = [1, 1]} : vector<2x18xf32> to vector<2x6xf32>
    %686 = vector.extract_strided_slice %683 {offsets = [0, 12], sizes = [2, 6], strides = [1, 1]} : vector<2x18xf32> to vector<2x6xf32>
    %687 = vector.extract_strided_slice %677 {offsets = [0, 18], sizes = [2, 6], strides = [1, 1]} : vector<2x24xf32> to vector<2x6xf32>
    %688 = math.tanh %687 : vector<2x6xf32>
    %689 = arith.mulf %685, %567 : vector<2x6xf32>
    %690 = arith.mulf %684, %688 : vector<2x6xf32>
    %691 = arith.addf %689, %690 : vector<2x6xf32>
    %692 = math.tanh %691 : vector<2x6xf32>
    %693 = arith.mulf %686, %692 : vector<2x6xf32>
    %694 = vector.extract_strided_slice %51 {offsets = [10, 0], sizes = [2, 24], strides = [1, 1]} : vector<16x24xf32> to vector<2x24xf32>
    %695 = vector.extract_strided_slice %616 {offsets = [0, 0], sizes = [2, 1], strides = [1, 1]} : vector<2x6xf32> to vector<2x1xf32>
    %696 = vector.broadcast %695 : vector<2x1xf32> to vector<2x24xf32>
    %697 = vector.broadcast %52 : vector<1x24xf32> to vector<2x24xf32>
    %698 = arith.mulf %696, %697 : vector<2x24xf32>
    %699 = vector.extract_strided_slice %616 {offsets = [0, 1], sizes = [2, 1], strides = [1, 1]} : vector<2x6xf32> to vector<2x1xf32>
    %700 = vector.broadcast %699 : vector<2x1xf32> to vector<2x24xf32>
    %701 = vector.broadcast %53 : vector<1x24xf32> to vector<2x24xf32>
    %702 = arith.mulf %700, %701 : vector<2x24xf32>
    %703 = arith.addf %698, %702 : vector<2x24xf32>
    %704 = vector.extract_strided_slice %616 {offsets = [0, 2], sizes = [2, 1], strides = [1, 1]} : vector<2x6xf32> to vector<2x1xf32>
    %705 = vector.broadcast %704 : vector<2x1xf32> to vector<2x24xf32>
    %706 = vector.broadcast %54 : vector<1x24xf32> to vector<2x24xf32>
    %707 = arith.mulf %705, %706 : vector<2x24xf32>
    %708 = arith.addf %703, %707 : vector<2x24xf32>
    %709 = vector.extract_strided_slice %616 {offsets = [0, 3], sizes = [2, 1], strides = [1, 1]} : vector<2x6xf32> to vector<2x1xf32>
    %710 = vector.broadcast %709 : vector<2x1xf32> to vector<2x24xf32>
    %711 = vector.broadcast %55 : vector<1x24xf32> to vector<2x24xf32>
    %712 = arith.mulf %710, %711 : vector<2x24xf32>
    %713 = arith.addf %708, %712 : vector<2x24xf32>
    %714 = vector.extract_strided_slice %616 {offsets = [0, 4], sizes = [2, 1], strides = [1, 1]} : vector<2x6xf32> to vector<2x1xf32>
    %715 = vector.broadcast %714 : vector<2x1xf32> to vector<2x24xf32>
    %716 = vector.broadcast %56 : vector<1x24xf32> to vector<2x24xf32>
    %717 = arith.mulf %715, %716 : vector<2x24xf32>
    %718 = arith.addf %713, %717 : vector<2x24xf32>
    %719 = vector.extract_strided_slice %616 {offsets = [0, 5], sizes = [2, 1], strides = [1, 1]} : vector<2x6xf32> to vector<2x1xf32>
    %720 = vector.broadcast %719 : vector<2x1xf32> to vector<2x24xf32>
    %721 = vector.broadcast %57 : vector<1x24xf32> to vector<2x24xf32>
    %722 = arith.mulf %720, %721 : vector<2x24xf32>
    %723 = arith.addf %718, %722 : vector<2x24xf32>
    %724 = arith.addf %694, %723 : vector<2x24xf32>
    %725 = vector.extract_strided_slice %724 {offsets = [0, 0], sizes = [2, 18], strides = [1, 1]} : vector<2x24xf32> to vector<2x18xf32>
    %726 = arith.negf %725 : vector<2x18xf32>
    %727 = math.exp %726 : vector<2x18xf32>
    %cst_52 = arith.constant 1.000000e+00 : f32
    %728 = vector.broadcast %cst_52 : f32 to vector<2x18xf32>
    %729 = arith.addf %728, %727 : vector<2x18xf32>
    %730 = arith.divf %728, %729 : vector<2x18xf32>
    %731 = vector.extract_strided_slice %730 {offsets = [0, 0], sizes = [2, 6], strides = [1, 1]} : vector<2x18xf32> to vector<2x6xf32>
    %732 = vector.extract_strided_slice %730 {offsets = [0, 6], sizes = [2, 6], strides = [1, 1]} : vector<2x18xf32> to vector<2x6xf32>
    %733 = vector.extract_strided_slice %730 {offsets = [0, 12], sizes = [2, 6], strides = [1, 1]} : vector<2x18xf32> to vector<2x6xf32>
    %734 = vector.extract_strided_slice %724 {offsets = [0, 18], sizes = [2, 6], strides = [1, 1]} : vector<2x24xf32> to vector<2x6xf32>
    %735 = math.tanh %734 : vector<2x6xf32>
    %736 = arith.mulf %732, %614 : vector<2x6xf32>
    %737 = arith.mulf %731, %735 : vector<2x6xf32>
    %738 = arith.addf %736, %737 : vector<2x6xf32>
    %739 = math.tanh %738 : vector<2x6xf32>
    %740 = arith.mulf %733, %739 : vector<2x6xf32>
    %741 = vector.extract_strided_slice %740 {offsets = [0, 0], sizes = [2, 1], strides = [1, 1]} : vector<2x6xf32> to vector<2x1xf32>
    %742 = vector.broadcast %741 : vector<2x1xf32> to vector<2x24xf32>
    %743 = vector.broadcast %58 : vector<1x24xf32> to vector<2x24xf32>
    %744 = arith.mulf %742, %743 : vector<2x24xf32>
    %745 = vector.extract_strided_slice %740 {offsets = [0, 1], sizes = [2, 1], strides = [1, 1]} : vector<2x6xf32> to vector<2x1xf32>
    %746 = vector.broadcast %745 : vector<2x1xf32> to vector<2x24xf32>
    %747 = vector.broadcast %59 : vector<1x24xf32> to vector<2x24xf32>
    %748 = arith.mulf %746, %747 : vector<2x24xf32>
    %749 = arith.addf %744, %748 : vector<2x24xf32>
    %750 = vector.extract_strided_slice %740 {offsets = [0, 2], sizes = [2, 1], strides = [1, 1]} : vector<2x6xf32> to vector<2x1xf32>
    %751 = vector.broadcast %750 : vector<2x1xf32> to vector<2x24xf32>
    %752 = vector.broadcast %60 : vector<1x24xf32> to vector<2x24xf32>
    %753 = arith.mulf %751, %752 : vector<2x24xf32>
    %754 = arith.addf %749, %753 : vector<2x24xf32>
    %755 = vector.extract_strided_slice %740 {offsets = [0, 3], sizes = [2, 1], strides = [1, 1]} : vector<2x6xf32> to vector<2x1xf32>
    %756 = vector.broadcast %755 : vector<2x1xf32> to vector<2x24xf32>
    %757 = vector.broadcast %61 : vector<1x24xf32> to vector<2x24xf32>
    %758 = arith.mulf %756, %757 : vector<2x24xf32>
    %759 = arith.addf %754, %758 : vector<2x24xf32>
    %760 = vector.extract_strided_slice %740 {offsets = [0, 4], sizes = [2, 1], strides = [1, 1]} : vector<2x6xf32> to vector<2x1xf32>
    %761 = vector.broadcast %760 : vector<2x1xf32> to vector<2x24xf32>
    %762 = vector.broadcast %62 : vector<1x24xf32> to vector<2x24xf32>
    %763 = arith.mulf %761, %762 : vector<2x24xf32>
    %764 = arith.addf %759, %763 : vector<2x24xf32>
    %765 = vector.extract_strided_slice %740 {offsets = [0, 5], sizes = [2, 1], strides = [1, 1]} : vector<2x6xf32> to vector<2x1xf32>
    %766 = vector.broadcast %765 : vector<2x1xf32> to vector<2x24xf32>
    %767 = vector.broadcast %63 : vector<1x24xf32> to vector<2x24xf32>
    %768 = arith.mulf %766, %767 : vector<2x24xf32>
    %769 = arith.addf %764, %768 : vector<2x24xf32>
    %770 = vector.extract_strided_slice %693 {offsets = [0, 0], sizes = [2, 1], strides = [1, 1]} : vector<2x6xf32> to vector<2x1xf32>
    %771 = vector.broadcast %770 : vector<2x1xf32> to vector<2x24xf32>
    %772 = vector.broadcast %64 : vector<1x24xf32> to vector<2x24xf32>
    %773 = arith.mulf %771, %772 : vector<2x24xf32>
    %774 = vector.extract_strided_slice %693 {offsets = [0, 1], sizes = [2, 1], strides = [1, 1]} : vector<2x6xf32> to vector<2x1xf32>
    %775 = vector.broadcast %774 : vector<2x1xf32> to vector<2x24xf32>
    %776 = vector.broadcast %65 : vector<1x24xf32> to vector<2x24xf32>
    %777 = arith.mulf %775, %776 : vector<2x24xf32>
    %778 = arith.addf %773, %777 : vector<2x24xf32>
    %779 = vector.extract_strided_slice %693 {offsets = [0, 2], sizes = [2, 1], strides = [1, 1]} : vector<2x6xf32> to vector<2x1xf32>
    %780 = vector.broadcast %779 : vector<2x1xf32> to vector<2x24xf32>
    %781 = vector.broadcast %66 : vector<1x24xf32> to vector<2x24xf32>
    %782 = arith.mulf %780, %781 : vector<2x24xf32>
    %783 = arith.addf %778, %782 : vector<2x24xf32>
    %784 = vector.extract_strided_slice %693 {offsets = [0, 3], sizes = [2, 1], strides = [1, 1]} : vector<2x6xf32> to vector<2x1xf32>
    %785 = vector.broadcast %784 : vector<2x1xf32> to vector<2x24xf32>
    %786 = vector.broadcast %67 : vector<1x24xf32> to vector<2x24xf32>
    %787 = arith.mulf %785, %786 : vector<2x24xf32>
    %788 = arith.addf %783, %787 : vector<2x24xf32>
    %789 = vector.extract_strided_slice %693 {offsets = [0, 4], sizes = [2, 1], strides = [1, 1]} : vector<2x6xf32> to vector<2x1xf32>
    %790 = vector.broadcast %789 : vector<2x1xf32> to vector<2x24xf32>
    %791 = vector.broadcast %68 : vector<1x24xf32> to vector<2x24xf32>
    %792 = arith.mulf %790, %791 : vector<2x24xf32>
    %793 = arith.addf %788, %792 : vector<2x24xf32>
    %794 = vector.extract_strided_slice %693 {offsets = [0, 5], sizes = [2, 1], strides = [1, 1]} : vector<2x6xf32> to vector<2x1xf32>
    %795 = vector.broadcast %794 : vector<2x1xf32> to vector<2x24xf32>
    %796 = vector.broadcast %69 : vector<1x24xf32> to vector<2x24xf32>
    %797 = arith.mulf %795, %796 : vector<2x24xf32>
    %798 = arith.addf %793, %797 : vector<2x24xf32>
    %799 = arith.addf %769, %798 : vector<2x24xf32>
    %800 = vector.broadcast %47 : vector<1x24xf32> to vector<2x24xf32>
    %801 = arith.addf %799, %800 : vector<2x24xf32>
    %802 = vector.extract_strided_slice %801 {offsets = [0, 0], sizes = [2, 18], strides = [1, 1]} : vector<2x24xf32> to vector<2x18xf32>
    %803 = arith.negf %802 : vector<2x18xf32>
    %804 = math.exp %803 : vector<2x18xf32>
    %cst_53 = arith.constant 1.000000e+00 : f32
    %805 = vector.broadcast %cst_53 : f32 to vector<2x18xf32>
    %806 = arith.addf %805, %804 : vector<2x18xf32>
    %807 = arith.divf %805, %806 : vector<2x18xf32>
    %808 = vector.extract_strided_slice %807 {offsets = [0, 0], sizes = [2, 6], strides = [1, 1]} : vector<2x18xf32> to vector<2x6xf32>
    %809 = vector.extract_strided_slice %807 {offsets = [0, 6], sizes = [2, 6], strides = [1, 1]} : vector<2x18xf32> to vector<2x6xf32>
    %810 = vector.extract_strided_slice %807 {offsets = [0, 12], sizes = [2, 6], strides = [1, 1]} : vector<2x18xf32> to vector<2x6xf32>
    %811 = vector.extract_strided_slice %801 {offsets = [0, 18], sizes = [2, 6], strides = [1, 1]} : vector<2x24xf32> to vector<2x6xf32>
    %812 = math.tanh %811 : vector<2x6xf32>
    %813 = arith.mulf %809, %691 : vector<2x6xf32>
    %814 = arith.mulf %808, %812 : vector<2x6xf32>
    %815 = arith.addf %813, %814 : vector<2x6xf32>
    %816 = math.tanh %815 : vector<2x6xf32>
    %817 = arith.mulf %810, %816 : vector<2x6xf32>
    %818 = vector.extract_strided_slice %51 {offsets = [12, 0], sizes = [2, 24], strides = [1, 1]} : vector<16x24xf32> to vector<2x24xf32>
    %819 = vector.extract_strided_slice %740 {offsets = [0, 0], sizes = [2, 1], strides = [1, 1]} : vector<2x6xf32> to vector<2x1xf32>
    %820 = vector.broadcast %819 : vector<2x1xf32> to vector<2x24xf32>
    %821 = vector.broadcast %52 : vector<1x24xf32> to vector<2x24xf32>
    %822 = arith.mulf %820, %821 : vector<2x24xf32>
    %823 = vector.extract_strided_slice %740 {offsets = [0, 1], sizes = [2, 1], strides = [1, 1]} : vector<2x6xf32> to vector<2x1xf32>
    %824 = vector.broadcast %823 : vector<2x1xf32> to vector<2x24xf32>
    %825 = vector.broadcast %53 : vector<1x24xf32> to vector<2x24xf32>
    %826 = arith.mulf %824, %825 : vector<2x24xf32>
    %827 = arith.addf %822, %826 : vector<2x24xf32>
    %828 = vector.extract_strided_slice %740 {offsets = [0, 2], sizes = [2, 1], strides = [1, 1]} : vector<2x6xf32> to vector<2x1xf32>
    %829 = vector.broadcast %828 : vector<2x1xf32> to vector<2x24xf32>
    %830 = vector.broadcast %54 : vector<1x24xf32> to vector<2x24xf32>
    %831 = arith.mulf %829, %830 : vector<2x24xf32>
    %832 = arith.addf %827, %831 : vector<2x24xf32>
    %833 = vector.extract_strided_slice %740 {offsets = [0, 3], sizes = [2, 1], strides = [1, 1]} : vector<2x6xf32> to vector<2x1xf32>
    %834 = vector.broadcast %833 : vector<2x1xf32> to vector<2x24xf32>
    %835 = vector.broadcast %55 : vector<1x24xf32> to vector<2x24xf32>
    %836 = arith.mulf %834, %835 : vector<2x24xf32>
    %837 = arith.addf %832, %836 : vector<2x24xf32>
    %838 = vector.extract_strided_slice %740 {offsets = [0, 4], sizes = [2, 1], strides = [1, 1]} : vector<2x6xf32> to vector<2x1xf32>
    %839 = vector.broadcast %838 : vector<2x1xf32> to vector<2x24xf32>
    %840 = vector.broadcast %56 : vector<1x24xf32> to vector<2x24xf32>
    %841 = arith.mulf %839, %840 : vector<2x24xf32>
    %842 = arith.addf %837, %841 : vector<2x24xf32>
    %843 = vector.extract_strided_slice %740 {offsets = [0, 5], sizes = [2, 1], strides = [1, 1]} : vector<2x6xf32> to vector<2x1xf32>
    %844 = vector.broadcast %843 : vector<2x1xf32> to vector<2x24xf32>
    %845 = vector.broadcast %57 : vector<1x24xf32> to vector<2x24xf32>
    %846 = arith.mulf %844, %845 : vector<2x24xf32>
    %847 = arith.addf %842, %846 : vector<2x24xf32>
    %848 = arith.addf %818, %847 : vector<2x24xf32>
    %849 = vector.extract_strided_slice %848 {offsets = [0, 0], sizes = [2, 18], strides = [1, 1]} : vector<2x24xf32> to vector<2x18xf32>
    %850 = arith.negf %849 : vector<2x18xf32>
    %851 = math.exp %850 : vector<2x18xf32>
    %cst_54 = arith.constant 1.000000e+00 : f32
    %852 = vector.broadcast %cst_54 : f32 to vector<2x18xf32>
    %853 = arith.addf %852, %851 : vector<2x18xf32>
    %854 = arith.divf %852, %853 : vector<2x18xf32>
    %855 = vector.extract_strided_slice %854 {offsets = [0, 0], sizes = [2, 6], strides = [1, 1]} : vector<2x18xf32> to vector<2x6xf32>
    %856 = vector.extract_strided_slice %854 {offsets = [0, 6], sizes = [2, 6], strides = [1, 1]} : vector<2x18xf32> to vector<2x6xf32>
    %857 = vector.extract_strided_slice %854 {offsets = [0, 12], sizes = [2, 6], strides = [1, 1]} : vector<2x18xf32> to vector<2x6xf32>
    %858 = vector.extract_strided_slice %848 {offsets = [0, 18], sizes = [2, 6], strides = [1, 1]} : vector<2x24xf32> to vector<2x6xf32>
    %859 = math.tanh %858 : vector<2x6xf32>
    %860 = arith.mulf %856, %738 : vector<2x6xf32>
    %861 = arith.mulf %855, %859 : vector<2x6xf32>
    %862 = arith.addf %860, %861 : vector<2x6xf32>
    %863 = math.tanh %862 : vector<2x6xf32>
    %864 = arith.mulf %857, %863 : vector<2x6xf32>
    %865 = vector.extract_strided_slice %864 {offsets = [0, 0], sizes = [2, 1], strides = [1, 1]} : vector<2x6xf32> to vector<2x1xf32>
    %866 = vector.broadcast %865 : vector<2x1xf32> to vector<2x24xf32>
    %867 = vector.broadcast %58 : vector<1x24xf32> to vector<2x24xf32>
    %868 = arith.mulf %866, %867 : vector<2x24xf32>
    %869 = vector.extract_strided_slice %864 {offsets = [0, 1], sizes = [2, 1], strides = [1, 1]} : vector<2x6xf32> to vector<2x1xf32>
    %870 = vector.broadcast %869 : vector<2x1xf32> to vector<2x24xf32>
    %871 = vector.broadcast %59 : vector<1x24xf32> to vector<2x24xf32>
    %872 = arith.mulf %870, %871 : vector<2x24xf32>
    %873 = arith.addf %868, %872 : vector<2x24xf32>
    %874 = vector.extract_strided_slice %864 {offsets = [0, 2], sizes = [2, 1], strides = [1, 1]} : vector<2x6xf32> to vector<2x1xf32>
    %875 = vector.broadcast %874 : vector<2x1xf32> to vector<2x24xf32>
    %876 = vector.broadcast %60 : vector<1x24xf32> to vector<2x24xf32>
    %877 = arith.mulf %875, %876 : vector<2x24xf32>
    %878 = arith.addf %873, %877 : vector<2x24xf32>
    %879 = vector.extract_strided_slice %864 {offsets = [0, 3], sizes = [2, 1], strides = [1, 1]} : vector<2x6xf32> to vector<2x1xf32>
    %880 = vector.broadcast %879 : vector<2x1xf32> to vector<2x24xf32>
    %881 = vector.broadcast %61 : vector<1x24xf32> to vector<2x24xf32>
    %882 = arith.mulf %880, %881 : vector<2x24xf32>
    %883 = arith.addf %878, %882 : vector<2x24xf32>
    %884 = vector.extract_strided_slice %864 {offsets = [0, 4], sizes = [2, 1], strides = [1, 1]} : vector<2x6xf32> to vector<2x1xf32>
    %885 = vector.broadcast %884 : vector<2x1xf32> to vector<2x24xf32>
    %886 = vector.broadcast %62 : vector<1x24xf32> to vector<2x24xf32>
    %887 = arith.mulf %885, %886 : vector<2x24xf32>
    %888 = arith.addf %883, %887 : vector<2x24xf32>
    %889 = vector.extract_strided_slice %864 {offsets = [0, 5], sizes = [2, 1], strides = [1, 1]} : vector<2x6xf32> to vector<2x1xf32>
    %890 = vector.broadcast %889 : vector<2x1xf32> to vector<2x24xf32>
    %891 = vector.broadcast %63 : vector<1x24xf32> to vector<2x24xf32>
    %892 = arith.mulf %890, %891 : vector<2x24xf32>
    %893 = arith.addf %888, %892 : vector<2x24xf32>
    %894 = vector.extract_strided_slice %817 {offsets = [0, 0], sizes = [2, 1], strides = [1, 1]} : vector<2x6xf32> to vector<2x1xf32>
    %895 = vector.broadcast %894 : vector<2x1xf32> to vector<2x24xf32>
    %896 = vector.broadcast %64 : vector<1x24xf32> to vector<2x24xf32>
    %897 = arith.mulf %895, %896 : vector<2x24xf32>
    %898 = vector.extract_strided_slice %817 {offsets = [0, 1], sizes = [2, 1], strides = [1, 1]} : vector<2x6xf32> to vector<2x1xf32>
    %899 = vector.broadcast %898 : vector<2x1xf32> to vector<2x24xf32>
    %900 = vector.broadcast %65 : vector<1x24xf32> to vector<2x24xf32>
    %901 = arith.mulf %899, %900 : vector<2x24xf32>
    %902 = arith.addf %897, %901 : vector<2x24xf32>
    %903 = vector.extract_strided_slice %817 {offsets = [0, 2], sizes = [2, 1], strides = [1, 1]} : vector<2x6xf32> to vector<2x1xf32>
    %904 = vector.broadcast %903 : vector<2x1xf32> to vector<2x24xf32>
    %905 = vector.broadcast %66 : vector<1x24xf32> to vector<2x24xf32>
    %906 = arith.mulf %904, %905 : vector<2x24xf32>
    %907 = arith.addf %902, %906 : vector<2x24xf32>
    %908 = vector.extract_strided_slice %817 {offsets = [0, 3], sizes = [2, 1], strides = [1, 1]} : vector<2x6xf32> to vector<2x1xf32>
    %909 = vector.broadcast %908 : vector<2x1xf32> to vector<2x24xf32>
    %910 = vector.broadcast %67 : vector<1x24xf32> to vector<2x24xf32>
    %911 = arith.mulf %909, %910 : vector<2x24xf32>
    %912 = arith.addf %907, %911 : vector<2x24xf32>
    %913 = vector.extract_strided_slice %817 {offsets = [0, 4], sizes = [2, 1], strides = [1, 1]} : vector<2x6xf32> to vector<2x1xf32>
    %914 = vector.broadcast %913 : vector<2x1xf32> to vector<2x24xf32>
    %915 = vector.broadcast %68 : vector<1x24xf32> to vector<2x24xf32>
    %916 = arith.mulf %914, %915 : vector<2x24xf32>
    %917 = arith.addf %912, %916 : vector<2x24xf32>
    %918 = vector.extract_strided_slice %817 {offsets = [0, 5], sizes = [2, 1], strides = [1, 1]} : vector<2x6xf32> to vector<2x1xf32>
    %919 = vector.broadcast %918 : vector<2x1xf32> to vector<2x24xf32>
    %920 = vector.broadcast %69 : vector<1x24xf32> to vector<2x24xf32>
    %921 = arith.mulf %919, %920 : vector<2x24xf32>
    %922 = arith.addf %917, %921 : vector<2x24xf32>
    %923 = arith.addf %893, %922 : vector<2x24xf32>
    %924 = vector.broadcast %47 : vector<1x24xf32> to vector<2x24xf32>
    %925 = arith.addf %923, %924 : vector<2x24xf32>
    %926 = vector.extract_strided_slice %925 {offsets = [0, 0], sizes = [2, 18], strides = [1, 1]} : vector<2x24xf32> to vector<2x18xf32>
    %927 = arith.negf %926 : vector<2x18xf32>
    %928 = math.exp %927 : vector<2x18xf32>
    %cst_55 = arith.constant 1.000000e+00 : f32
    %929 = vector.broadcast %cst_55 : f32 to vector<2x18xf32>
    %930 = arith.addf %929, %928 : vector<2x18xf32>
    %931 = arith.divf %929, %930 : vector<2x18xf32>
    %932 = vector.extract_strided_slice %931 {offsets = [0, 0], sizes = [2, 6], strides = [1, 1]} : vector<2x18xf32> to vector<2x6xf32>
    %933 = vector.extract_strided_slice %931 {offsets = [0, 6], sizes = [2, 6], strides = [1, 1]} : vector<2x18xf32> to vector<2x6xf32>
    %934 = vector.extract_strided_slice %931 {offsets = [0, 12], sizes = [2, 6], strides = [1, 1]} : vector<2x18xf32> to vector<2x6xf32>
    %935 = vector.extract_strided_slice %925 {offsets = [0, 18], sizes = [2, 6], strides = [1, 1]} : vector<2x24xf32> to vector<2x6xf32>
    %936 = math.tanh %935 : vector<2x6xf32>
    %937 = arith.mulf %933, %815 : vector<2x6xf32>
    %938 = arith.mulf %932, %936 : vector<2x6xf32>
    %939 = arith.addf %937, %938 : vector<2x6xf32>
    %940 = math.tanh %939 : vector<2x6xf32>
    %941 = arith.mulf %934, %940 : vector<2x6xf32>
    %942 = vector.extract_strided_slice %51 {offsets = [14, 0], sizes = [2, 24], strides = [1, 1]} : vector<16x24xf32> to vector<2x24xf32>
    %943 = vector.extract_strided_slice %864 {offsets = [0, 0], sizes = [2, 1], strides = [1, 1]} : vector<2x6xf32> to vector<2x1xf32>
    %944 = vector.broadcast %943 : vector<2x1xf32> to vector<2x24xf32>
    %945 = vector.broadcast %52 : vector<1x24xf32> to vector<2x24xf32>
    %946 = arith.mulf %944, %945 : vector<2x24xf32>
    %947 = vector.extract_strided_slice %864 {offsets = [0, 1], sizes = [2, 1], strides = [1, 1]} : vector<2x6xf32> to vector<2x1xf32>
    %948 = vector.broadcast %947 : vector<2x1xf32> to vector<2x24xf32>
    %949 = vector.broadcast %53 : vector<1x24xf32> to vector<2x24xf32>
    %950 = arith.mulf %948, %949 : vector<2x24xf32>
    %951 = arith.addf %946, %950 : vector<2x24xf32>
    %952 = vector.extract_strided_slice %864 {offsets = [0, 2], sizes = [2, 1], strides = [1, 1]} : vector<2x6xf32> to vector<2x1xf32>
    %953 = vector.broadcast %952 : vector<2x1xf32> to vector<2x24xf32>
    %954 = vector.broadcast %54 : vector<1x24xf32> to vector<2x24xf32>
    %955 = arith.mulf %953, %954 : vector<2x24xf32>
    %956 = arith.addf %951, %955 : vector<2x24xf32>
    %957 = vector.extract_strided_slice %864 {offsets = [0, 3], sizes = [2, 1], strides = [1, 1]} : vector<2x6xf32> to vector<2x1xf32>
    %958 = vector.broadcast %957 : vector<2x1xf32> to vector<2x24xf32>
    %959 = vector.broadcast %55 : vector<1x24xf32> to vector<2x24xf32>
    %960 = arith.mulf %958, %959 : vector<2x24xf32>
    %961 = arith.addf %956, %960 : vector<2x24xf32>
    %962 = vector.extract_strided_slice %864 {offsets = [0, 4], sizes = [2, 1], strides = [1, 1]} : vector<2x6xf32> to vector<2x1xf32>
    %963 = vector.broadcast %962 : vector<2x1xf32> to vector<2x24xf32>
    %964 = vector.broadcast %56 : vector<1x24xf32> to vector<2x24xf32>
    %965 = arith.mulf %963, %964 : vector<2x24xf32>
    %966 = arith.addf %961, %965 : vector<2x24xf32>
    %967 = vector.extract_strided_slice %864 {offsets = [0, 5], sizes = [2, 1], strides = [1, 1]} : vector<2x6xf32> to vector<2x1xf32>
    %968 = vector.broadcast %967 : vector<2x1xf32> to vector<2x24xf32>
    %969 = vector.broadcast %57 : vector<1x24xf32> to vector<2x24xf32>
    %970 = arith.mulf %968, %969 : vector<2x24xf32>
    %971 = arith.addf %966, %970 : vector<2x24xf32>
    %972 = arith.addf %942, %971 : vector<2x24xf32>
    %973 = vector.extract_strided_slice %972 {offsets = [0, 0], sizes = [2, 18], strides = [1, 1]} : vector<2x24xf32> to vector<2x18xf32>
    %974 = arith.negf %973 : vector<2x18xf32>
    %975 = math.exp %974 : vector<2x18xf32>
    %cst_56 = arith.constant 1.000000e+00 : f32
    %976 = vector.broadcast %cst_56 : f32 to vector<2x18xf32>
    %977 = arith.addf %976, %975 : vector<2x18xf32>
    %978 = arith.divf %976, %977 : vector<2x18xf32>
    %979 = vector.extract_strided_slice %978 {offsets = [0, 0], sizes = [2, 6], strides = [1, 1]} : vector<2x18xf32> to vector<2x6xf32>
    %980 = vector.extract_strided_slice %978 {offsets = [0, 6], sizes = [2, 6], strides = [1, 1]} : vector<2x18xf32> to vector<2x6xf32>
    %981 = vector.extract_strided_slice %978 {offsets = [0, 12], sizes = [2, 6], strides = [1, 1]} : vector<2x18xf32> to vector<2x6xf32>
    %982 = vector.extract_strided_slice %972 {offsets = [0, 18], sizes = [2, 6], strides = [1, 1]} : vector<2x24xf32> to vector<2x6xf32>
    %983 = math.tanh %982 : vector<2x6xf32>
    %984 = arith.mulf %980, %862 : vector<2x6xf32>
    %985 = arith.mulf %979, %983 : vector<2x6xf32>
    %986 = arith.addf %984, %985 : vector<2x6xf32>
    %987 = math.tanh %986 : vector<2x6xf32>
    %988 = arith.mulf %981, %987 : vector<2x6xf32>
    %989 = vector.extract_strided_slice %988 {offsets = [0, 0], sizes = [2, 1], strides = [1, 1]} : vector<2x6xf32> to vector<2x1xf32>
    %990 = vector.broadcast %989 : vector<2x1xf32> to vector<2x24xf32>
    %991 = vector.broadcast %58 : vector<1x24xf32> to vector<2x24xf32>
    %992 = arith.mulf %990, %991 : vector<2x24xf32>
    %993 = vector.extract_strided_slice %988 {offsets = [0, 1], sizes = [2, 1], strides = [1, 1]} : vector<2x6xf32> to vector<2x1xf32>
    %994 = vector.broadcast %993 : vector<2x1xf32> to vector<2x24xf32>
    %995 = vector.broadcast %59 : vector<1x24xf32> to vector<2x24xf32>
    %996 = arith.mulf %994, %995 : vector<2x24xf32>
    %997 = arith.addf %992, %996 : vector<2x24xf32>
    %998 = vector.extract_strided_slice %988 {offsets = [0, 2], sizes = [2, 1], strides = [1, 1]} : vector<2x6xf32> to vector<2x1xf32>
    %999 = vector.broadcast %998 : vector<2x1xf32> to vector<2x24xf32>
    %1000 = vector.broadcast %60 : vector<1x24xf32> to vector<2x24xf32>
    %1001 = arith.mulf %999, %1000 : vector<2x24xf32>
    %1002 = arith.addf %997, %1001 : vector<2x24xf32>
    %1003 = vector.extract_strided_slice %988 {offsets = [0, 3], sizes = [2, 1], strides = [1, 1]} : vector<2x6xf32> to vector<2x1xf32>
    %1004 = vector.broadcast %1003 : vector<2x1xf32> to vector<2x24xf32>
    %1005 = vector.broadcast %61 : vector<1x24xf32> to vector<2x24xf32>
    %1006 = arith.mulf %1004, %1005 : vector<2x24xf32>
    %1007 = arith.addf %1002, %1006 : vector<2x24xf32>
    %1008 = vector.extract_strided_slice %988 {offsets = [0, 4], sizes = [2, 1], strides = [1, 1]} : vector<2x6xf32> to vector<2x1xf32>
    %1009 = vector.broadcast %1008 : vector<2x1xf32> to vector<2x24xf32>
    %1010 = vector.broadcast %62 : vector<1x24xf32> to vector<2x24xf32>
    %1011 = arith.mulf %1009, %1010 : vector<2x24xf32>
    %1012 = arith.addf %1007, %1011 : vector<2x24xf32>
    %1013 = vector.extract_strided_slice %988 {offsets = [0, 5], sizes = [2, 1], strides = [1, 1]} : vector<2x6xf32> to vector<2x1xf32>
    %1014 = vector.broadcast %1013 : vector<2x1xf32> to vector<2x24xf32>
    %1015 = vector.broadcast %63 : vector<1x24xf32> to vector<2x24xf32>
    %1016 = arith.mulf %1014, %1015 : vector<2x24xf32>
    %1017 = arith.addf %1012, %1016 : vector<2x24xf32>
    %1018 = vector.extract_strided_slice %941 {offsets = [0, 0], sizes = [2, 1], strides = [1, 1]} : vector<2x6xf32> to vector<2x1xf32>
    %1019 = vector.broadcast %1018 : vector<2x1xf32> to vector<2x24xf32>
    %1020 = vector.broadcast %64 : vector<1x24xf32> to vector<2x24xf32>
    %1021 = arith.mulf %1019, %1020 : vector<2x24xf32>
    %1022 = vector.extract_strided_slice %941 {offsets = [0, 1], sizes = [2, 1], strides = [1, 1]} : vector<2x6xf32> to vector<2x1xf32>
    %1023 = vector.broadcast %1022 : vector<2x1xf32> to vector<2x24xf32>
    %1024 = vector.broadcast %65 : vector<1x24xf32> to vector<2x24xf32>
    %1025 = arith.mulf %1023, %1024 : vector<2x24xf32>
    %1026 = arith.addf %1021, %1025 : vector<2x24xf32>
    %1027 = vector.extract_strided_slice %941 {offsets = [0, 2], sizes = [2, 1], strides = [1, 1]} : vector<2x6xf32> to vector<2x1xf32>
    %1028 = vector.broadcast %1027 : vector<2x1xf32> to vector<2x24xf32>
    %1029 = vector.broadcast %66 : vector<1x24xf32> to vector<2x24xf32>
    %1030 = arith.mulf %1028, %1029 : vector<2x24xf32>
    %1031 = arith.addf %1026, %1030 : vector<2x24xf32>
    %1032 = vector.extract_strided_slice %941 {offsets = [0, 3], sizes = [2, 1], strides = [1, 1]} : vector<2x6xf32> to vector<2x1xf32>
    %1033 = vector.broadcast %1032 : vector<2x1xf32> to vector<2x24xf32>
    %1034 = vector.broadcast %67 : vector<1x24xf32> to vector<2x24xf32>
    %1035 = arith.mulf %1033, %1034 : vector<2x24xf32>
    %1036 = arith.addf %1031, %1035 : vector<2x24xf32>
    %1037 = vector.extract_strided_slice %941 {offsets = [0, 4], sizes = [2, 1], strides = [1, 1]} : vector<2x6xf32> to vector<2x1xf32>
    %1038 = vector.broadcast %1037 : vector<2x1xf32> to vector<2x24xf32>
    %1039 = vector.broadcast %68 : vector<1x24xf32> to vector<2x24xf32>
    %1040 = arith.mulf %1038, %1039 : vector<2x24xf32>
    %1041 = arith.addf %1036, %1040 : vector<2x24xf32>
    %1042 = vector.extract_strided_slice %941 {offsets = [0, 5], sizes = [2, 1], strides = [1, 1]} : vector<2x6xf32> to vector<2x1xf32>
    %1043 = vector.broadcast %1042 : vector<2x1xf32> to vector<2x24xf32>
    %1044 = vector.broadcast %69 : vector<1x24xf32> to vector<2x24xf32>
    %1045 = arith.mulf %1043, %1044 : vector<2x24xf32>
    %1046 = arith.addf %1041, %1045 : vector<2x24xf32>
    %1047 = arith.addf %1017, %1046 : vector<2x24xf32>
    %1048 = vector.broadcast %47 : vector<1x24xf32> to vector<2x24xf32>
    %1049 = arith.addf %1047, %1048 : vector<2x24xf32>
    %1050 = vector.extract_strided_slice %1049 {offsets = [0, 0], sizes = [2, 18], strides = [1, 1]} : vector<2x24xf32> to vector<2x18xf32>
    %1051 = arith.negf %1050 : vector<2x18xf32>
    %1052 = math.exp %1051 : vector<2x18xf32>
    %cst_57 = arith.constant 1.000000e+00 : f32
    %1053 = vector.broadcast %cst_57 : f32 to vector<2x18xf32>
    %1054 = arith.addf %1053, %1052 : vector<2x18xf32>
    %1055 = arith.divf %1053, %1054 : vector<2x18xf32>
    %1056 = vector.extract_strided_slice %1055 {offsets = [0, 0], sizes = [2, 6], strides = [1, 1]} : vector<2x18xf32> to vector<2x6xf32>
    %1057 = vector.extract_strided_slice %1055 {offsets = [0, 6], sizes = [2, 6], strides = [1, 1]} : vector<2x18xf32> to vector<2x6xf32>
    %1058 = vector.extract_strided_slice %1055 {offsets = [0, 12], sizes = [2, 6], strides = [1, 1]} : vector<2x18xf32> to vector<2x6xf32>
    %1059 = vector.extract_strided_slice %1049 {offsets = [0, 18], sizes = [2, 6], strides = [1, 1]} : vector<2x24xf32> to vector<2x6xf32>
    %1060 = math.tanh %1059 : vector<2x6xf32>
    %1061 = arith.mulf %1057, %939 : vector<2x6xf32>
    %1062 = arith.mulf %1056, %1060 : vector<2x6xf32>
    %1063 = arith.addf %1061, %1062 : vector<2x6xf32>
    %1064 = math.tanh %1063 : vector<2x6xf32>
    %1065 = arith.mulf %1058, %1064 : vector<2x6xf32>
    %c0_58 = arith.constant 0 : index
    %c0_59 = arith.constant 0 : index
    %1066 = vector.load %arg4[%c0_58, %c0_59] : memref<2x7xf32, #tpu.memory_space<vmem>>, vector<2x7xf32>
    %1067 = tpu.concatenate %44, %1065, %1066 in 1 : vector<2x32xf32>, vector<2x6xf32>, vector<2x7xf32> -> vector<2x45xf32>
    %c0_60 = arith.constant 0 : index
    %c0_61 = arith.constant 0 : index
    %1068 = vector.load %arg5[%c0_60, %c0_61] : memref<45x128xf32, #tpu.memory_space<vmem>>, vector<45x128xf32>
    %cst_62 = arith.constant dense<0.000000e+00> : vector<2x128xf32>
    %1069 = tpu.matmul %1067, %1068, %cst_62 {dimension_numbers = #tpu.dot_dimension_numbers<[1], [0], [0], [1], [0, 0, 1, 1], [], []>} : vector<2x45xf32>, vector<45x128xf32>, vector<2x128xf32> -> vector<2x128xf32>
    %c0_63 = arith.constant 0 : index
    %c0_64 = arith.constant 0 : index
    %1070 = vector.load %arg7[%c0_63, %c0_64] : memref<2x128xf32, #tpu.memory_space<vmem>>, vector<1x128xf32>
    %1071 = vector.broadcast %1070 : vector<1x128xf32> to vector<2x128xf32>
    %1072 = arith.addf %1069, %1071 : vector<2x128xf32>
    %cst_65 = arith.constant 0.000000e+00 : f32
    %1073 = vector.broadcast %cst_65 : f32 to vector<2x32xf32>
    %1074 = vector.extract_strided_slice %1072 {offsets = [0, 0], sizes = [2, 96], strides = [1, 1]} : vector<2x128xf32> to vector<2x96xf32>
    %1075 = arith.negf %1074 : vector<2x96xf32>
    %1076 = math.exp %1075 : vector<2x96xf32>
    %cst_66 = arith.constant 1.000000e+00 : f32
    %1077 = vector.broadcast %cst_66 : f32 to vector<2x96xf32>
    %1078 = arith.addf %1077, %1076 : vector<2x96xf32>
    %1079 = arith.divf %1077, %1078 : vector<2x96xf32>
    %1080 = vector.extract_strided_slice %1079 {offsets = [0, 0], sizes = [2, 32], strides = [1, 1]} : vector<2x96xf32> to vector<2x32xf32>
    %1081 = vector.extract_strided_slice %1079 {offsets = [0, 32], sizes = [2, 32], strides = [1, 1]} : vector<2x96xf32> to vector<2x32xf32>
    %1082 = vector.extract_strided_slice %1079 {offsets = [0, 64], sizes = [2, 32], strides = [1, 1]} : vector<2x96xf32> to vector<2x32xf32>
    %1083 = vector.extract_strided_slice %1072 {offsets = [0, 96], sizes = [2, 32], strides = [1, 1]} : vector<2x128xf32> to vector<2x32xf32>
    %1084 = math.tanh %1083 : vector<2x32xf32>
    %1085 = arith.mulf %1081, %1073 : vector<2x32xf32>
    %1086 = arith.mulf %1080, %1084 : vector<2x32xf32>
    %1087 = arith.addf %1085, %1086 : vector<2x32xf32>
    %1088 = math.tanh %1087 : vector<2x32xf32>
    %1089 = arith.mulf %1082, %1088 : vector<2x32xf32>
    %c0_67 = arith.constant 0 : index
    %c0_68 = arith.constant 0 : index
    %1090 = vector.load %arg6[%c0_67, %c0_68] : memref<32x128xf32, #tpu.memory_space<vmem>>, vector<32x128xf32>
    %cst_69 = arith.constant dense<0.000000e+00> : vector<2x128xf32>
    %1091 = tpu.matmul %1089, %1090, %cst_69 {dimension_numbers = #tpu.dot_dimension_numbers<[1], [0], [0], [1], [0, 0, 1, 1], [], []>} : vector<2x32xf32>, vector<32x128xf32>, vector<2x128xf32> -> vector<2x128xf32>
    %c1 = arith.constant 1 : index
    %c0_70 = arith.constant 0 : index
    %1092 = vector.load %arg7[%c1, %c0_70] : memref<2x128xf32, #tpu.memory_space<vmem>>, vector<1x128xf32>
    %1093 = vector.broadcast %1092 : vector<1x128xf32> to vector<2x128xf32>
    %1094 = arith.addf %1091, %1093 : vector<2x128xf32>
    %cst_71 = arith.constant 0.000000e+00 : f32
    %1095 = vector.broadcast %cst_71 : f32 to vector<2x32xf32>
    %1096 = vector.extract_strided_slice %1094 {offsets = [0, 0], sizes = [2, 96], strides = [1, 1]} : vector<2x128xf32> to vector<2x96xf32>
    %1097 = arith.negf %1096 : vector<2x96xf32>
    %1098 = math.exp %1097 : vector<2x96xf32>
    %cst_72 = arith.constant 1.000000e+00 : f32
    %1099 = vector.broadcast %cst_72 : f32 to vector<2x96xf32>
    %1100 = arith.addf %1099, %1098 : vector<2x96xf32>
    %1101 = arith.divf %1099, %1100 : vector<2x96xf32>
    %1102 = vector.extract_strided_slice %1101 {offsets = [0, 0], sizes = [2, 32], strides = [1, 1]} : vector<2x96xf32> to vector<2x32xf32>
    %1103 = vector.extract_strided_slice %1101 {offsets = [0, 32], sizes = [2, 32], strides = [1, 1]} : vector<2x96xf32> to vector<2x32xf32>
    %1104 = vector.extract_strided_slice %1101 {offsets = [0, 64], sizes = [2, 32], strides = [1, 1]} : vector<2x96xf32> to vector<2x32xf32>
    %1105 = vector.extract_strided_slice %1094 {offsets = [0, 96], sizes = [2, 32], strides = [1, 1]} : vector<2x128xf32> to vector<2x32xf32>
    %1106 = math.tanh %1105 : vector<2x32xf32>
    %1107 = arith.mulf %1103, %1095 : vector<2x32xf32>
    %1108 = arith.mulf %1102, %1106 : vector<2x32xf32>
    %1109 = arith.addf %1107, %1108 : vector<2x32xf32>
    %1110 = math.tanh %1109 : vector<2x32xf32>
    %1111 = arith.mulf %1104, %1110 : vector<2x32xf32>
    %c0_73 = arith.constant 0 : index
    %c0_74 = arith.constant 0 : index
    %1112 = vector.load %arg8[%c0_73, %c0_74] : memref<48x16xf32, #tpu.memory_space<vmem>>, vector<32x16xf32>
    %cst_75 = arith.constant dense<0.000000e+00> : vector<2x16xf32>
    %1113 = tpu.matmul %1111, %1112, %cst_75 {dimension_numbers = #tpu.dot_dimension_numbers<[1], [0], [0], [1], [0, 0, 1, 1], [], []>} : vector<2x32xf32>, vector<32x16xf32>, vector<2x16xf32> -> vector<2x16xf32>
    %c0_76 = arith.constant 0 : index
    %c0_77 = arith.constant 0 : index
    %1114 = vector.load %arg9[%c0_76, %c0_77] : memref<2x16xf32, #tpu.memory_space<vmem>>, vector<1x16xf32>
    %1115 = vector.broadcast %1114 : vector<1x16xf32> to vector<2x16xf32>
    %1116 = arith.addf %1113, %1115 : vector<2x16xf32>
    %c32 = arith.constant 32 : index
    %c0_78 = arith.constant 0 : index
    %1117 = vector.load %arg8[%c32, %c0_78] : memref<48x16xf32, #tpu.memory_space<vmem>>, vector<16x6xf32>
    %cst_79 = arith.constant dense<0.000000e+00> : vector<2x6xf32>
    %1118 = tpu.matmul %1116, %1117, %cst_79 {dimension_numbers = #tpu.dot_dimension_numbers<[1], [0], [0], [1], [0, 0, 1, 1], [], []>} : vector<2x16xf32>, vector<16x6xf32>, vector<2x6xf32> -> vector<2x6xf32>
    %c1_80 = arith.constant 1 : index
    %c0_81 = arith.constant 0 : index
    %1119 = vector.load %arg9[%c1_80, %c0_81] : memref<2x16xf32, #tpu.memory_space<vmem>>, vector<1x6xf32>
    %1120 = vector.broadcast %1119 : vector<1x6xf32> to vector<2x6xf32>
    %1121 = arith.addf %1118, %1120 : vector<2x6xf32>
    %c0_82 = arith.constant 0 : index
    %c0_83 = arith.constant 0 : index
    %1122 = vector.load %arg10[%c0_82, %c0_83] : memref<2x6xf32, #tpu.memory_space<vmem>>, vector<2x6xf32>
    tpu.vector_store %arg10[%c0_82, %c0_83], %1121 {strides = array<i32>} : memref<2x6xf32, #tpu.memory_space<vmem>>, vector<2x6xf32>,
    return
  }
}

</mosaic_0001>

<llo_original>
// kernel: vinet_forward.1
$region0: #{vinet_forward.1}
  #allocation0 [shape = 'u32[]', space=smem, size = 0x4, offset = 0x4, fixed_abs, tag = 'smem constant byte address 0x4 - core index']
  #allocation1 [shape = 'u32[72,128]{1,0:T(1,128)}', space=vmem, size = 0x9000, scoped, tag = 'internal scratch']
  %s0 = inlined_call_operand.vmem [shape: f32[54,32], index: 0, kind: input, shape index: {}]
  %s1 = inlined_call_operand.vmem [shape: f32[2,57], index: 1, kind: input, shape index: {}]
  %s2 = inlined_call_operand.vmem [shape: f32[16,6], index: 2, kind: input, shape index: {}]
  %s3 = inlined_call_operand.vmem [shape: f32[26,24], index: 3, kind: input, shape index: {}]
  %s4 = inlined_call_operand.vmem [shape: f32[2,7], index: 4, kind: input, shape index: {}]
  %s5 = inlined_call_operand.vmem [shape: f32[45,128], index: 5, kind: input, shape index: {}]
  %s6 = inlined_call_operand.vmem [shape: f32[32,128], index: 6, kind: input, shape index: {}]
  %s7 = inlined_call_operand.vmem [shape: f32[2,128], index: 7, kind: input, shape index: {}]
  %s8 = inlined_call_operand.vmem [shape: f32[48,16], index: 8, kind: input, shape index: {}]
  %s9 = inlined_call_operand.vmem [shape: f32[2,16], index: 9, kind: input, shape index: {}]
  %s10 = inlined_call_operand.hbm [shape: f32[2,6], index: 10, kind: output, shape index: {}]
  %s11 = sld [smem:[#allocation0]]
  $region50: #{vinet_forward.1} parent=0
    _
  %s13 = ssub.s32 1, %s11
  %s14 = scalar_select 0, %s13, %s11
  $region1: #{vinet_forward.1} parent=0
    #allocation2 [shape = 'u8[1024]{0}', space=vmem, size = 0x400, scoped, tag = 'output window, operand 0, single buffered']
    #allocation3 [shape = 's32[1]{0}', space=sflag, size = 0x4, scoped, tag = 'scoped memory for vinet_forward.1']
    %15 = vsyncpa [#allocation3], 0
    // Predicated region
    $region2: #{vinet_forward.1} parent=1 // pred_check
      _
    $region3: #{vinet_forward.1} parent=1 // pred_check_branch
      %17 = sbr.rel (0) target = $region5
    $region4: #{vinet_forward.1} parent=1 // pred_region
      _
    $region5: #{vinet_forward.1} parent=1 // pred_fallthru
      _
    // Predicated region
    $region6: #{vinet_forward.1} parent=1 // pred_check
      _
    $region7: #{vinet_forward.1} parent=1 // pred_check_branch
      %19 = sbr.rel (0) target = $region9
    $region8: #{vinet_forward.1} parent=1 // pred_region
      _
    $region9: #{vinet_forward.1} parent=1 // pred_fallthru
      _
    // Predicated region
    $region10: #{vinet_forward.1} parent=1 // pred_check
      _
    $region11: #{vinet_forward.1} parent=1 // pred_check_branch
      %21 = sbr.rel (0) target = $region13
    $region12: #{vinet_forward.1} parent=1 // pred_region
      _
    $region13: #{vinet_forward.1} parent=1 // pred_fallthru
      _
    // Predicated region
    $region14: #{vinet_forward.1} parent=1 // pred_check
      _
    $region15: #{vinet_forward.1} parent=1 // pred_check_branch
      %23 = sbr.rel (0) target = $region17
    $region16: #{vinet_forward.1} parent=1 // pred_region
      _
    $region17: #{vinet_forward.1} parent=1 // pred_fallthru
      _
    // Predicated region
    $region18: #{vinet_forward.1} parent=1 // pred_check
      _
    $region19: #{vinet_forward.1} parent=1 // pred_check_branch
      %25 = sbr.rel (0) target = $region21
    $region20: #{vinet_forward.1} parent=1 // pred_region
      _
    $region21: #{vinet_forward.1} parent=1 // pred_fallthru
      _
    // Predicated region
    $region22: #{vinet_forward.1} parent=1 // pred_check
      _
    $region23: #{vinet_forward.1} parent=1 // pred_check_branch
      %27 = sbr.rel (0) target = $region25
    $region24: #{vinet_forward.1} parent=1 // pred_region
      _
    $region25: #{vinet_forward.1} parent=1 // pred_fallthru
      _
    // Predicated region
    $region26: #{vinet_forward.1} parent=1 // pred_check
      _
    $region27: #{vinet_forward.1} parent=1 // pred_check_branch
      %29 = sbr.rel (0) target = $region29
    $region28: #{vinet_forward.1} parent=1 // pred_region
      _
    $region29: #{vinet_forward.1} parent=1 // pred_fallthru
      _
    // Predicated region
    $region30: #{vinet_forward.1} parent=1 // pred_check
      _
    $region31: #{vinet_forward.1} parent=1 // pred_check_branch
      %31 = sbr.rel (0) target = $region33
    $region32: #{vinet_forward.1} parent=1 // pred_region
      _
    $region33: #{vinet_forward.1} parent=1 // pred_fallthru
      _
    // Predicated region
    $region34: #{vinet_forward.1} parent=1 // pred_check
      _
    $region35: #{vinet_forward.1} parent=1 // pred_check_branch
      %33 = sbr.rel (0) target = $region37
    $region36: #{vinet_forward.1} parent=1 // pred_region
      _
    $region37: #{vinet_forward.1} parent=1 // pred_fallthru
      _
    // Predicated region
    $region38: #{vinet_forward.1} parent=1 // pred_check
      _
    $region39: #{vinet_forward.1} parent=1 // pred_check_branch
      %35 = sbr.rel (0) target = $region41
    $region40: #{vinet_forward.1} parent=1 // pred_region
      _
    $region41: #{vinet_forward.1} parent=1 // pred_fallthru
      _
    %v36 = vld [vmem:[%s1] sm:$0x3]
    %v37 = vld [vmem:[%s0] sm:$0xff]
    %v38 = vld [vmem:[%s0 + $0x8] sm:$0xff]
    %v39 = vld [vmem:[%s0 + $0x10] sm:$0xff]
    %v40 = vld [vmem:[%s0 + $0x18] sm:$0xff]
    %v41 = vld [vmem:[%s0 + $0x20] sm:$0xff]
    %v42 = vld [vmem:[%s0 + $0x28] sm:$0xff]
    %v43 = vld [vmem:[%s0 + $0x30] sm:$0x3f]
    %45 = vset.pattern.permute.xlu0 54
    %46 = vperm.xlu0 %45, %v36
    %v47 = vpop.permute.xlu0 %46
    %vm49 = vcmask 441344
    %v50 = vsel %vm49, %v36, 0
    %vm52 = vcmask 1045504
    %v54 = vsel %vm52, %v43, 0
    %56 = vmatpush.msra.mxu0 0.0
    %57 = vmatpush.msra.mxu0 0.0
    %58 = vmatpush.msra.mxu0 0.0
    %59 = vmatpush.msra.mxu0 0.0
    %60 = vmatpush.msra.mxu0 0.0
    %61 = vmatpush.msra.mxu0 0.0
    %62 = vmatpush.msra.mxu0 0.0
    %63 = vmatpush.msra.mxu0 0.0
    %64 = vmatpush.msra.mxu0 0.0
    %65 = vmatpush.msra.mxu0 %v54
    %66 = vmatpush.msra.mxu0 %v42
    %67 = vmatpush.msra.mxu0 %v41
    %68 = vmatpush.msra.mxu0 %v40
    %69 = vmatpush.msra.mxu0 %v39
    %70 = vmatpush.msra.mxu0 %v38
    %71 = vmatpush.msra.mxu0 %v37
    %72 = vmatmul.f32.gmra.mxu0 %v50
    %v73 = vpop.f32.mrf.mxu0
    %v74 = vadd.f32 %v47, %v73
    %75 = vdwg.mxu0
    %vm76 = vcmask 254976
    %v77 = vsel %vm76, %v74, 0.0
    %78 = vadd.xlane.f32.xlu0 %v77
    %v79 = vpop.xlane.xlu0 %78
    %v80 = vrcp.pop 32.0
    %v81 = vmul.f32 32.0, %v80
    %v82 = vsub.f32 1.0, %v81
    %v83 = vmul.f32 %v80, %v82
    %v84 = vadd.f32 %v80, %v83
    %vm85 = vweird.f32 %v80
    %v86 = vsel %vm85, %v80, %v84
    %v87 = vmul.f32 %v79, %v86
    %v88 = vsub.f32 %v74, %v87
    %v89 = vmul.f32 %v88, %v88
    %v90 = vsel %vm76, %v89, 0.0
    %91 = vadd.xlane.f32.xlu0 %v90
    %v92 = vpop.xlane.xlu0 %91
    %v93 = vmul.f32 %v92, %v86
    %v94 = vadd.f32 %v93, 1e-05
    %v95 = vrsqrt.pop %v94
    %v96 = vmul.f32 %v95, %v94
    %v97 = vmul.f32 %v96, %v95
    %v98 = vmul.f32 0.5, %v97
    %v99 = vsub.f32 1.5, %v98
    %v100 = vmul.f32 %v95, %v99
    %vm101 = vweird.f32 %v94
    %vm102 = vweird.f32 %v95
    %vm103 = vmor %vm101, %vm102
    %v104 = vsel %vm103, %v95, %v100
    %v105 = vmul.f32 %v104, %v36
    %107 = vset.pattern.permute.xlu0 55
    %108 = vperm.xlu0 %107, %v105
    %v109 = vpop.permute.xlu0 %108
    %v111 = vmul.f32 %v88, %v109
    %112 = vset.pattern.permute.xlu0 56
    %113 = vperm.xlu0 %112, %v36
    %v114 = vpop.permute.xlu0 %113
    %v116 = vadd.f32 %v111, %v114
    %vm117 = vcmp.gt.f32.partialorder %v116, 0.0
    %v118 = vmul.f32 %v116, 0.1
    %v119 = vsel %vm117, %v116, %v118
    %v121 = vrot.slane %v119, 1
    %122 = vrot.lane.b32.xlu0 %v121, 16
    %v123 = vpop.permute.xlu0 %122
    %vm125 = vcmask 130048
    %v126 = vsel %vm125, %v119, %v123
    %127 = vrot.lane.b32.xlu0 %v119, 112
    %v128 = vpop.permute.xlu0 %127
    %v131 = vsel %vm125, %v128, %v121
    %v133 = vrot.slane %v131, 7
    %vm135 = vcmask 1040384
    %v136 = vsel %vm135, %v126, %v133
    %v137 = vld [vmem:[%s3] sm:$0x3f]
    %v138 = vld [vmem:[%s3 + $0x18] sm:$0x1]
    %v139 = vld [vmem:[%s3 + $0x19] sm:$0x1]
    %v140 = vld [vmem:[%s2] sm:$0xff]
    %v141 = vld [vmem:[%s2 + $0x8] sm:$0xff]
    %v142 = vperm.slane %v138, 0
    %vm143 = vcmask 48128
    %v145 = vsel %vm143, %v140, 0
    %v148 = vsel %vm143, %v141, 0
    %v151 = vsel %vm52, %v137, 0
    %153 = vmatpush.msra.mxu0 0.0
    %154 = vmatpush.msra.mxu0 0.0
    %155 = vmatpush.msra.mxu0 0.0
    %156 = vmatpush.msra.mxu0 0.0
    %157 = vmatpush.msra.mxu0 0.0
    %158 = vmatpush.msra.mxu0 0.0
    %159 = vmatpush.msra.mxu0 0.0
    %160 = vmatpush.msra.mxu0 0.0
    %161 = vmatpush.msra.mxu0 0.0
    %162 = vmatpush.msra.mxu0 0.0
    %163 = vmatpush.msra.mxu0 0.0
    %164 = vmatpush.msra.mxu0 0.0
    %165 = vmatpush.msra.mxu0 0.0
    %166 = vmatpush.msra.mxu0 0.0
    %167 = vmatpush.msra.mxu0 0.0
    %168 = vmatpush.msra.mxu0 %v151
    %169 = vmatmul.f32.gmra.mxu0 %v145
    %v170 = vpop.f32.mrf.mxu0
    %v171 = vadd.f32 %v142, %v170
    %172 = vmatmul.f32.gmra.mxu0 %v148
    %v173 = vpop.f32.mrf.mxu0
    %v174 = vadd.f32 %v142, %v173
    %175 = vdwg.mxu0
    %v176 = vld [vmem:[%s3 + $0x6] sm:$0x1]
    %v177 = vld [vmem:[%s3 + $0x7] sm:$0x1]
    %v178 = vld [vmem:[%s3 + $0x8] sm:$0x1]
    %v179 = vld [vmem:[%s3 + $0x9] sm:$0x1]
    %v180 = vld [vmem:[%s3 + $0xa] sm:$0x1]
    %v181 = vld [vmem:[%s3 + $0xb] sm:$0x1]
    %v182 = vld [vmem:[%s3 + $0xc] sm:$0x1]
    %v183 = vld [vmem:[%s3 + $0xd] sm:$0x1]
    %v184 = vld [vmem:[%s3 + $0xe] sm:$0x1]
    %v185 = vld [vmem:[%s3 + $0xf] sm:$0x1]
    %v186 = vld [vmem:[%s3 + $0x10] sm:$0x1]
    %v187 = vld [vmem:[%s3 + $0x11] sm:$0x1]
    %v188 = vld [vmem:[%s3 + $0x12] sm:$0x1]
    %v189 = vld [vmem:[%s3 + $0x13] sm:$0x1]
    %v190 = vld [vmem:[%s3 + $0x14] sm:$0x1]
    %v191 = vld [vmem:[%s3 + $0x15] sm:$0x1]
    %v192 = vld [vmem:[%s3 + $0x16] sm:$0x1]
    %v193 = vld [vmem:[%s3 + $0x17] sm:$0x1]
    %v194 = vperm.slane %v176, 0
    %v195 = vmul.f32 %v194, 0.0
    %v196 = vperm.slane %v177, 0
    %v197 = vmul.f32 %v196, 0.0
    %v198 = vadd.f32 %v195, %v197
    %v199 = vperm.slane %v178, 0
    %v200 = vmul.f32 %v199, 0.0
    %v201 = vadd.f32 %v198, %v200
    %v202 = vperm.slane %v179, 0
    %v203 = vmul.f32 %v202, 0.0
    %v204 = vadd.f32 %v201, %v203
    %v205 = vperm.slane %v180, 0
    %v206 = vmul.f32 %v205, 0.0
    %v207 = vadd.f32 %v204, %v206
    %v208 = vperm.slane %v181, 0
    %v209 = vmul.f32 %v208, 0.0
    %v210 = vadd.f32 %v207, %v209
    %v211 = vadd.f32 %v171, %v210
    %v212 = vxor.u32 %v211, 2147483648
    %v213 = vmul.f32 %v212, 1.442695
    %v214 = vpow.pop %v213
    %v215 = vadd.f32 %v214, 1.0
    %v216 = vrcp.pop %v215
    %v217 = vmul.f32 %v215, %v216
    %v218 = vsub.f32 1.0, %v217
    %v219 = vmul.f32 %v216, %v218
    %v220 = vadd.f32 %v216, %v219
    %vm221 = vweird.f32 %v215
    %vm222 = vweird.f32 %v216
    %vm223 = vmor %vm221, %vm222
    %v224 = vsel %vm223, %v216, %v220
    %v225 = vand.u32 2147483647, %v215
    %vm226 = vcmp.eq.f32.partialorder %v225, 8.507059e+37
    %v227 = vand.u32 %v215, 2147483648
    %v228 = vor.u32 1.1754944e-38, %v227
    %v229 = vsel %vm226, %v228, %v224
    %v230 = vmul.f32 1.0, %v229
    %v231 = vtanh.pop %v211
    %v232 = vmul.f32 %v230, 0.0
    %234 = vrot.lane.b32.xlu0 %v231, 110
    %v235 = vpop.permute.xlu0 %234
    %v237 = vmul.f32 %v230, %v235
    %239 = vrot.lane.b32.xlu0 %v237, 6
    %v240 = vpop.permute.xlu0 %239
    %v242 = vadd.f32 %v232, %v240
    %v243 = vtanh.pop %v242
    %245 = vrot.lane.b32.xlu0 %v243, 6
    %v246 = vpop.permute.xlu0 %245
    %v248 = vmul.f32 %v230, %v246
    %250 = vset.pattern.permute.xlu0 12
    %251 = vperm.xlu0 %250, %v248
    %v252 = vpop.permute.xlu0 %251
    %v254 = vperm.slane %v182, 0
    %v255 = vmul.f32 %v252, %v254
    %256 = vset.pattern.permute.xlu0 13
    %257 = vperm.xlu0 %256, %v248
    %v258 = vpop.permute.xlu0 %257
    %v260 = vperm.slane %v183, 0
    %v261 = vmul.f32 %v258, %v260
    %v262 = vadd.f32 %v255, %v261
    %263 = vset.pattern.permute.xlu0 14
    %264 = vperm.xlu0 %263, %v248
    %v265 = vpop.permute.xlu0 %264
    %v267 = vperm.slane %v184, 0
    %v268 = vmul.f32 %v265, %v267
    %v269 = vadd.f32 %v262, %v268
    %270 = vset.pattern.permute.xlu0 15
    %271 = vperm.xlu0 %270, %v248
    %v272 = vpop.permute.xlu0 %271
    %v274 = vperm.slane %v185, 0
    %v275 = vmul.f32 %v272, %v274
    %v276 = vadd.f32 %v269, %v275
    %277 = vset.pattern.permute.xlu0 16
    %278 = vperm.xlu0 %277, %v248
    %v279 = vpop.permute.xlu0 %278
    %v281 = vperm.slane %v186, 0
    %v282 = vmul.f32 %v279, %v281
    %v283 = vadd.f32 %v276, %v282
    %284 = vset.pattern.permute.xlu0 17
    %285 = vperm.xlu0 %284, %v248
    %v286 = vpop.permute.xlu0 %285
    %v288 = vperm.slane %v187, 0
    %v289 = vmul.f32 %v286, %v288
    %v290 = vadd.f32 %v283, %v289
    %v291 = vperm.slane %v188, 0
    %v292 = vmul.f32 %v291, 0.0
    %v293 = vperm.slane %v189, 0
    %v294 = vmul.f32 %v293, 0.0
    %v295 = vadd.f32 %v292, %v294
    %v296 = vperm.slane %v190, 0
    %v297 = vmul.f32 %v296, 0.0
    %v298 = vadd.f32 %v295, %v297
    %v299 = vperm.slane %v191, 0
    %v300 = vmul.f32 %v299, 0.0
    %v301 = vadd.f32 %v298, %v300
    %v302 = vperm.slane %v192, 0
    %v303 = vmul.f32 %v302, 0.0
    %v304 = vadd.f32 %v301, %v303
    %v305 = vperm.slane %v193, 0
    %v306 = vmul.f32 %v305, 0.0
    %v307 = vadd.f32 %v304, %v306
    %v308 = vadd.f32 %v290, %v307
    %v309 = vperm.slane %v139, 0
    %v310 = vadd.f32 %v308, %v309
    %v311 = vxor.u32 %v310, 2147483648
    %v312 = vmul.f32 %v311, 1.442695
    %v313 = vpow.pop %v312
    %v314 = vadd.f32 %v313, 1.0
    %v315 = vrcp.pop %v314
    %v316 = vmul.f32 %v314, %v315
    %v317 = vsub.f32 1.0, %v316
    %v318 = vmul.f32 %v315, %v317
    %v319 = vadd.f32 %v315, %v318
    %vm320 = vweird.f32 %v314
    %vm321 = vweird.f32 %v315
    %vm322 = vmor %vm320, %vm321
    %v323 = vsel %vm322, %v315, %v319
    %v324 = vand.u32 2147483647, %v314
    %vm325 = vcmp.eq.f32.partialorder %v324, 8.507059e+37
    %v326 = vand.u32 %v314, 2147483648
    %v327 = vor.u32 1.1754944e-38, %v326
    %v328 = vsel %vm325, %v327, %v323
    %v329 = vmul.f32 1.0, %v328
    %v330 = vtanh.pop %v310
    %v331 = vmul.f32 %v329, 0.0
    %333 = vrot.lane.b32.xlu0 %v330, 110
    %v334 = vpop.permute.xlu0 %333
    %v336 = vmul.f32 %v329, %v334
    %338 = vrot.lane.b32.xlu0 %v336, 6
    %v339 = vpop.permute.xlu0 %338
    %v341 = vadd.f32 %v331, %v339
    %v342 = vtanh.pop %v341
    %344 = vrot.lane.b32.xlu0 %v342, 6
    %v345 = vpop.permute.xlu0 %344
    %v347 = vmul.f32 %v329, %v345
    %v348 = vmul.f32 %v252, %v194
    %v349 = vmul.f32 %v258, %v196
    %v350 = vadd.f32 %v348, %v349
    %v351 = vmul.f32 %v265, %v199
    %v352 = vadd.f32 %v350, %v351
    %v353 = vmul.f32 %v272, %v202
    %v354 = vadd.f32 %v352, %v353
    %v355 = vmul.f32 %v279, %v205
    %v356 = vadd.f32 %v354, %v355
    %v357 = vmul.f32 %v286, %v208
    %v358 = vadd.f32 %v356, %v357
    %v360 = vrot.slane %v358, 6
    %v362 = vadd.f32 %v171, %v360
    %v363 = vxor.u32 %v362, 2147483648
    %v364 = vmul.f32 %v363, 1.442695
    %v365 = vpow.pop %v364
    %v366 = vadd.f32 %v365, 1.0
    %v367 = vrcp.pop %v366
    %v368 = vmul.f32 %v366, %v367
    %v369 = vsub.f32 1.0, %v368
    %v370 = vmul.f32 %v367, %v369
    %v371 = vadd.f32 %v367, %v370
    %vm372 = vweird.f32 %v366
    %vm373 = vweird.f32 %v367
    %vm374 = vmor %vm372, %vm373
    %v375 = vsel %vm374, %v367, %v371
    %v376 = vand.u32 2147483647, %v366
    %vm377 = vcmp.eq.f32.partialorder %v376, 8.507059e+37
    %v378 = vand.u32 %v366, 2147483648
    %v379 = vor.u32 1.1754944e-38, %v378
    %v380 = vsel %vm377, %v379, %v375
    %v381 = vmul.f32 1.0, %v380
    %v382 = vtanh.pop %v362
    %v384 = vrot.slane %v242, 6
    %v386 = vmul.f32 %v381, %v384
    %388 = vrot.lane.b32.xlu0 %v382, 110
    %v389 = vpop.permute.xlu0 %388
    %v391 = vmul.f32 %v381, %v389
    %393 = vrot.lane.b32.xlu0 %v391, 6
    %v394 = vpop.permute.xlu0 %393
    %v396 = vadd.f32 %v386, %v394
    %v397 = vtanh.pop %v396
    %399 = vrot.lane.b32.xlu0 %v397, 6
    %v400 = vpop.permute.xlu0 %399
    %v402 = vmul.f32 %v381, %v400
    %404 = vset.pattern.permute.xlu0 12
    %405 = vperm.xlu0 %404, %v402
    %v406 = vpop.permute.xlu0 %405
    %v408 = vmul.f32 %v406, %v254
    %409 = vset.pattern.permute.xlu0 13
    %410 = vperm.xlu0 %409, %v402
    %v411 = vpop.permute.xlu0 %410
    %v413 = vmul.f32 %v411, %v260
    %v414 = vadd.f32 %v408, %v413
    %415 = vset.pattern.permute.xlu0 14
    %416 = vperm.xlu0 %415, %v402
    %v417 = vpop.permute.xlu0 %416
    %v419 = vmul.f32 %v417, %v267
    %v420 = vadd.f32 %v414, %v419
    %421 = vset.pattern.permute.xlu0 15
    %422 = vperm.xlu0 %421, %v402
    %v423 = vpop.permute.xlu0 %422
    %v425 = vmul.f32 %v423, %v274
    %v426 = vadd.f32 %v420, %v425
    %427 = vset.pattern.permute.xlu0 16
    %428 = vperm.xlu0 %427, %v402
    %v429 = vpop.permute.xlu0 %428
    %v431 = vmul.f32 %v429, %v281
    %v432 = vadd.f32 %v426, %v431
    %433 = vset.pattern.permute.xlu0 17
    %434 = vperm.xlu0 %433, %v402
    %v435 = vpop.permute.xlu0 %434
    %v437 = vmul.f32 %v435, %v288
    %v438 = vadd.f32 %v432, %v437
    %440 = vset.pattern.permute.xlu0 12
    %441 = vperm.xlu0 %440, %v347
    %v442 = vpop.permute.xlu0 %441
    %v444 = vmul.f32 %v442, %v291
    %445 = vset.pattern.permute.xlu0 13
    %446 = vperm.xlu0 %445, %v347
    %v447 = vpop.permute.xlu0 %446
    %v449 = vmul.f32 %v447, %v293
    %v450 = vadd.f32 %v444, %v449
    %451 = vset.pattern.permute.xlu0 14
    %452 = vperm.xlu0 %451, %v347
    %v453 = vpop.permute.xlu0 %452
    %v455 = vmul.f32 %v453, %v296
    %v456 = vadd.f32 %v450, %v455
    %457 = vset.pattern.permute.xlu0 15
    %458 = vperm.xlu0 %457, %v347
    %v459 = vpop.permute.xlu0 %458
    %v461 = vmul.f32 %v459, %v299
    %v462 = vadd.f32 %v456, %v461
    %463 = vset.pattern.permute.xlu0 16
    %464 = vperm.xlu0 %463, %v347
    %v465 = vpop.permute.xlu0 %464
    %v467 = vmul.f32 %v465, %v302
    %v468 = vadd.f32 %v462, %v467
    %469 = vset.pattern.permute.xlu0 17
    %470 = vperm.xlu0 %469, %v347
    %v471 = vpop.permute.xlu0 %470
    %v473 = vmul.f32 %v471, %v305
    %v474 = vadd.f32 %v468, %v473
    %v476 = vrot.slane %v474, 6
    %v478 = vadd.f32 %v438, %v476
    %v479 = vadd.f32 %v478, %v309
    %v480 = vxor.u32 %v479, 2147483648
    %v481 = vmul.f32 %v480, 1.442695
    %v482 = vpow.pop %v481
    %v483 = vadd.f32 %v482, 1.0
    %v484 = vrcp.pop %v483
    %v485 = vmul.f32 %v483, %v484
    %v486 = vsub.f32 1.0, %v485
    %v487 = vmul.f32 %v484, %v486
    %v488 = vadd.f32 %v484, %v487
    %vm489 = vweird.f32 %v483
    %vm490 = vweird.f32 %v484
    %vm491 = vmor %vm489, %vm490
    %v492 = vsel %vm491, %v484, %v488
    %v493 = vand.u32 2147483647, %v483
    %vm494 = vcmp.eq.f32.partialorder %v493, 8.507059e+37
    %v495 = vand.u32 %v483, 2147483648
    %v496 = vor.u32 1.1754944e-38, %v495
    %v497 = vsel %vm494, %v496, %v492
    %v498 = vmul.f32 1.0, %v497
    %v499 = vtanh.pop %v479
    %v501 = vrot.slane %v341, 6
    %v503 = vmul.f32 %v498, %v501
    %505 = vrot.lane.b32.xlu0 %v499, 110
    %v506 = vpop.permute.xlu0 %505
    %v508 = vmul.f32 %v498, %v506
    %510 = vrot.lane.b32.xlu0 %v508, 6
    %v511 = vpop.permute.xlu0 %510
    %v513 = vadd.f32 %v503, %v511
    %v514 = vtanh.pop %v513
    %516 = vrot.lane.b32.xlu0 %v514, 6
    %v517 = vpop.permute.xlu0 %516
    %v519 = vmul.f32 %v498, %v517
    %v520 = vmul.f32 %v406, %v194
    %v521 = vmul.f32 %v411, %v196
    %v522 = vadd.f32 %v520, %v521
    %v523 = vmul.f32 %v417, %v199
    %v524 = vadd.f32 %v522, %v523
    %v525 = vmul.f32 %v423, %v202
    %v526 = vadd.f32 %v524, %v525
    %v527 = vmul.f32 %v429, %v205
    %v528 = vadd.f32 %v526, %v527
    %v529 = vmul.f32 %v435, %v208
    %v530 = vadd.f32 %v528, %v529
    %v532 = vrot.slane %v530, 6
    %v534 = vadd.f32 %v171, %v532
    %v535 = vxor.u32 %v534, 2147483648
    %v536 = vmul.f32 %v535, 1.442695
    %v537 = vpow.pop %v536
    %v538 = vadd.f32 %v537, 1.0
    %v539 = vrcp.pop %v538
    %v540 = vmul.f32 %v538, %v539
    %v541 = vsub.f32 1.0, %v540
    %v542 = vmul.f32 %v539, %v541
    %v543 = vadd.f32 %v539, %v542
    %vm544 = vweird.f32 %v538
    %vm545 = vweird.f32 %v539
    %vm546 = vmor %vm544, %vm545
    %v547 = vsel %vm546, %v539, %v543
    %v548 = vand.u32 2147483647, %v538
    %vm549 = vcmp.eq.f32.partialorder %v548, 8.507059e+37
    %v550 = vand.u32 %v538, 2147483648
    %v551 = vor.u32 1.1754944e-38, %v550
    %v552 = vsel %vm549, %v551, %v547
    %v553 = vmul.f32 1.0, %v552
    %v554 = vtanh.pop %v534
    %v556 = vrot.slane %v396, 6
    %v558 = vmul.f32 %v553, %v556
    %560 = vrot.lane.b32.xlu0 %v554, 110
    %v561 = vpop.permute.xlu0 %560
    %v563 = vmul.f32 %v553, %v561
    %565 = vrot.lane.b32.xlu0 %v563, 6
    %v566 = vpop.permute.xlu0 %565
    %v568 = vadd.f32 %v558, %v566
    %v569 = vtanh.pop %v568
    %571 = vrot.lane.b32.xlu0 %v569, 6
    %v572 = vpop.permute.xlu0 %571
    %v574 = vmul.f32 %v553, %v572
    %576 = vset.pattern.permute.xlu0 12
    %577 = vperm.xlu0 %576, %v574
    %v578 = vpop.permute.xlu0 %577
    %v580 = vmul.f32 %v578, %v254
    %581 = vset.pattern.permute.xlu0 13
    %582 = vperm.xlu0 %581, %v574
    %v583 = vpop.permute.xlu0 %582
    %v585 = vmul.f32 %v583, %v260
    %v586 = vadd.f32 %v580, %v585
    %587 = vset.pattern.permute.xlu0 14
    %588 = vperm.xlu0 %587, %v574
    %v589 = vpop.permute.xlu0 %588
    %v591 = vmul.f32 %v589, %v267
    %v592 = vadd.f32 %v586, %v591
    %593 = vset.pattern.permute.xlu0 15
    %594 = vperm.xlu0 %593, %v574
    %v595 = vpop.permute.xlu0 %594
    %v597 = vmul.f32 %v595, %v274
    %v598 = vadd.f32 %v592, %v597
    %599 = vset.pattern.permute.xlu0 16
    %600 = vperm.xlu0 %599, %v574
    %v601 = vpop.permute.xlu0 %600
    %v603 = vmul.f32 %v601, %v281
    %v604 = vadd.f32 %v598, %v603
    %605 = vset.pattern.permute.xlu0 17
    %606 = vperm.xlu0 %605, %v574
    %v607 = vpop.permute.xlu0 %606
    %v609 = vmul.f32 %v607, %v288
    %v610 = vadd.f32 %v604, %v609
    %612 = vset.pattern.permute.xlu0 12
    %613 = vperm.xlu0 %612, %v519
    %v614 = vpop.permute.xlu0 %613
    %v616 = vmul.f32 %v614, %v291
    %617 = vset.pattern.permute.xlu0 13
    %618 = vperm.xlu0 %617, %v519
    %v619 = vpop.permute.xlu0 %618
    %v621 = vmul.f32 %v619, %v293
    %v622 = vadd.f32 %v616, %v621
    %623 = vset.pattern.permute.xlu0 14
    %624 = vperm.xlu0 %623, %v519
    %v625 = vpop.permute.xlu0 %624
    %v627 = vmul.f32 %v625, %v296
    %v628 = vadd.f32 %v622, %v627
    %629 = vset.pattern.permute.xlu0 15
    %630 = vperm.xlu0 %629, %v519
    %v631 = vpop.permute.xlu0 %630
    %v633 = vmul.f32 %v631, %v299
    %v634 = vadd.f32 %v628, %v633
    %635 = vset.pattern.permute.xlu0 16
    %636 = vperm.xlu0 %635, %v519
    %v637 = vpop.permute.xlu0 %636
    %v639 = vmul.f32 %v637, %v302
    %v640 = vadd.f32 %v634, %v639
    %641 = vset.pattern.permute.xlu0 17
    %642 = vperm.xlu0 %641, %v519
    %v643 = vpop.permute.xlu0 %642
    %v645 = vmul.f32 %v643, %v305
    %v646 = vadd.f32 %v640, %v645
    %v648 = vrot.slane %v646, 6
    %v650 = vadd.f32 %v610, %v648
    %v651 = vadd.f32 %v650, %v309
    %v652 = vxor.u32 %v651, 2147483648
    %v653 = vmul.f32 %v652, 1.442695
    %v654 = vpow.pop %v653
    %v655 = vadd.f32 %v654, 1.0
    %v656 = vrcp.pop %v655
    %v657 = vmul.f32 %v655, %v656
    %v658 = vsub.f32 1.0, %v657
    %v659 = vmul.f32 %v656, %v658
    %v660 = vadd.f32 %v656, %v659
    %vm661 = vweird.f32 %v655
    %vm662 = vweird.f32 %v656
    %vm663 = vmor %vm661, %vm662
    %v664 = vsel %vm663, %v656, %v660
    %v665 = vand.u32 2147483647, %v655
    %vm666 = vcmp.eq.f32.partialorder %v665, 8.507059e+37
    %v667 = vand.u32 %v655, 2147483648
    %v668 = vor.u32 1.1754944e-38, %v667
    %v669 = vsel %vm666, %v668, %v664
    %v670 = vmul.f32 1.0, %v669
    %v671 = vtanh.pop %v651
    %v673 = vrot.slane %v513, 6
    %v675 = vmul.f32 %v670, %v673
    %677 = vrot.lane.b32.xlu0 %v671, 110
    %v678 = vpop.permute.xlu0 %677
    %v680 = vmul.f32 %v670, %v678
    %682 = vrot.lane.b32.xlu0 %v680, 6
    %v683 = vpop.permute.xlu0 %682
    %v685 = vadd.f32 %v675, %v683
    %v686 = vtanh.pop %v685
    %688 = vrot.lane.b32.xlu0 %v686, 6
    %v689 = vpop.permute.xlu0 %688
    %v691 = vmul.f32 %v670, %v689
    %v692 = vmul.f32 %v578, %v194
    %v693 = vmul.f32 %v583, %v196
    %v694 = vadd.f32 %v692, %v693
    %v695 = vmul.f32 %v589, %v199
    %v696 = vadd.f32 %v694, %v695
    %v697 = vmul.f32 %v595, %v202
    %v698 = vadd.f32 %v696, %v697
    %v699 = vmul.f32 %v601, %v205
    %v700 = vadd.f32 %v698, %v699
    %v701 = vmul.f32 %v607, %v208
    %v702 = vadd.f32 %v700, %v701
    %v704 = vrot.slane %v702, 6
    %v706 = vadd.f32 %v171, %v704
    %v707 = vxor.u32 %v706, 2147483648
    %v708 = vmul.f32 %v707, 1.442695
    %v709 = vpow.pop %v708
    %v710 = vadd.f32 %v709, 1.0
    %v711 = vrcp.pop %v710
    %v712 = vmul.f32 %v710, %v711
    %v713 = vsub.f32 1.0, %v712
    %v714 = vmul.f32 %v711, %v713
    %v715 = vadd.f32 %v711, %v714
    %vm716 = vweird.f32 %v710
    %vm717 = vweird.f32 %v711
    %vm718 = vmor %vm716, %vm717
    %v719 = vsel %vm718, %v711, %v715
    %v720 = vand.u32 2147483647, %v710
    %vm721 = vcmp.eq.f32.partialorder %v720, 8.507059e+37
    %v722 = vand.u32 %v710, 2147483648
    %v723 = vor.u32 1.1754944e-38, %v722
    %v724 = vsel %vm721, %v723, %v719
    %v725 = vmul.f32 1.0, %v724
    %v726 = vtanh.pop %v706
    %v728 = vrot.slane %v568, 6
    %v730 = vmul.f32 %v725, %v728
    %732 = vrot.lane.b32.xlu0 %v726, 110
    %v733 = vpop.permute.xlu0 %732
    %v735 = vmul.f32 %v725, %v733
    %737 = vrot.lane.b32.xlu0 %v735, 6
    %v738 = vpop.permute.xlu0 %737
    %v740 = vadd.f32 %v730, %v738
    %v741 = vtanh.pop %v740
    %743 = vrot.lane.b32.xlu0 %v741, 6
    %v744 = vpop.permute.xlu0 %743
    %v746 = vmul.f32 %v725, %v744
    %748 = vset.pattern.permute.xlu0 12
    %749 = vperm.xlu0 %748, %v746
    %v750 = vpop.permute.xlu0 %749
    %v752 = vmul.f32 %v750, %v254
    %753 = vset.pattern.permute.xlu0 13
    %754 = vperm.xlu0 %753, %v746
    %v755 = vpop.permute.xlu0 %754
    %v757 = vmul.f32 %v755, %v260
    %v758 = vadd.f32 %v752, %v757
    %759 = vset.pattern.permute.xlu0 14
    %760 = vperm.xlu0 %759, %v746
    %v761 = vpop.permute.xlu0 %760
    %v763 = vmul.f32 %v761, %v267
    %v764 = vadd.f32 %v758, %v763
    %765 = vset.pattern.permute.xlu0 15
    %766 = vperm.xlu0 %765, %v746
    %v767 = vpop.permute.xlu0 %766
    %v769 = vmul.f32 %v767, %v274
    %v770 = vadd.f32 %v764, %v769
    %771 = vset.pattern.permute.xlu0 16
    %772 = vperm.xlu0 %771, %v746
    %v773 = vpop.permute.xlu0 %772
    %v775 = vmul.f32 %v773, %v281
    %v776 = vadd.f32 %v770, %v775
    %777 = vset.pattern.permute.xlu0 17
    %778 = vperm.xlu0 %777, %v746
    %v779 = vpop.permute.xlu0 %778
    %v781 = vmul.f32 %v779, %v288
    %v782 = vadd.f32 %v776, %v781
    %784 = vset.pattern.permute.xlu0 12
    %785 = vperm.xlu0 %784, %v691
    %v786 = vpop.permute.xlu0 %785
    %v788 = vmul.f32 %v786, %v291
    %789 = vset.pattern.permute.xlu0 13
    %790 = vperm.xlu0 %789, %v691
    %v791 = vpop.permute.xlu0 %790
    %v793 = vmul.f32 %v791, %v293
    %v794 = vadd.f32 %v788, %v793
    %795 = vset.pattern.permute.xlu0 14
    %796 = vperm.xlu0 %795, %v691
    %v797 = vpop.permute.xlu0 %796
    %v799 = vmul.f32 %v797, %v296
    %v800 = vadd.f32 %v794, %v799
    %801 = vset.pattern.permute.xlu0 15
    %802 = vperm.xlu0 %801, %v691
    %v803 = vpop.permute.xlu0 %802
    %v805 = vmul.f32 %v803, %v299
    %v806 = vadd.f32 %v800, %v805
    %807 = vset.pattern.permute.xlu0 16
    %808 = vperm.xlu0 %807, %v691
    %v809 = vpop.permute.xlu0 %808
    %v811 = vmul.f32 %v809, %v302
    %v812 = vadd.f32 %v806, %v811
    %813 = vset.pattern.permute.xlu0 17
    %814 = vperm.xlu0 %813, %v691
    %v815 = vpop.permute.xlu0 %814
    %v817 = vmul.f32 %v815, %v305
    %v818 = vadd.f32 %v812, %v817
    %v820 = vrot.slane %v818, 6
    %v822 = vadd.f32 %v782, %v820
    %v823 = vadd.f32 %v822, %v309
    %v824 = vxor.u32 %v823, 2147483648
    %v825 = vmul.f32 %v824, 1.442695
    %v826 = vpow.pop %v825
    %v827 = vadd.f32 %v826, 1.0
    %v828 = vrcp.pop %v827
    %v829 = vmul.f32 %v827, %v828
    %v830 = vsub.f32 1.0, %v829
    %v831 = vmul.f32 %v828, %v830
    %v832 = vadd.f32 %v828, %v831
    %vm833 = vweird.f32 %v827
    %vm834 = vweird.f32 %v828
    %vm835 = vmor %vm833, %vm834
    %v836 = vsel %vm835, %v828, %v832
    %v837 = vand.u32 2147483647, %v827
    %vm838 = vcmp.eq.f32.partialorder %v837, 8.507059e+37
    %v839 = vand.u32 %v827, 2147483648
    %v840 = vor.u32 1.1754944e-38, %v839
    %v841 = vsel %vm838, %v840, %v836
    %v842 = vmul.f32 1.0, %v841
    %v843 = vtanh.pop %v823
    %v845 = vrot.slane %v685, 6
    %v847 = vmul.f32 %v842, %v845
    %849 = vrot.lane.b32.xlu0 %v843, 110
    %v850 = vpop.permute.xlu0 %849
    %v852 = vmul.f32 %v842, %v850
    %854 = vrot.lane.b32.xlu0 %v852, 6
    %v855 = vpop.permute.xlu0 %854
    %v857 = vadd.f32 %v847, %v855
    %v858 = vtanh.pop %v857
    %860 = vrot.lane.b32.xlu0 %v858, 6
    %v861 = vpop.permute.xlu0 %860
    %v863 = vmul.f32 %v842, %v861
    %v864 = vmul.f32 %v750, %v194
    %v865 = vmul.f32 %v755, %v196
    %v866 = vadd.f32 %v864, %v865
    %v867 = vmul.f32 %v761, %v199
    %v868 = vadd.f32 %v866, %v867
    %v869 = vmul.f32 %v767, %v202
    %v870 = vadd.f32 %v868, %v869
    %v871 = vmul.f32 %v773, %v205
    %v872 = vadd.f32 %v870, %v871
    %v873 = vmul.f32 %v779, %v208
    %v874 = vadd.f32 %v872, %v873
    %v876 = vrot.slane %v874, 6
    %v878 = vadd.f32 %v174, %v876
    %v879 = vxor.u32 %v878, 2147483648
    %v880 = vmul.f32 %v879, 1.442695
    %v881 = vpow.pop %v880
    %v882 = vadd.f32 %v881, 1.0
    %v883 = vrcp.pop %v882
    %v884 = vmul.f32 %v882, %v883
    %v885 = vsub.f32 1.0, %v884
    %v886 = vmul.f32 %v883, %v885
    %v887 = vadd.f32 %v883, %v886
    %vm888 = vweird.f32 %v882
    %vm889 = vweird.f32 %v883
    %vm890 = vmor %vm888, %vm889
    %v891 = vsel %vm890, %v883, %v887
    %v892 = vand.u32 2147483647, %v882
    %vm893 = vcmp.eq.f32.partialorder %v892, 8.507059e+37
    %v894 = vand.u32 %v882, 2147483648
    %v895 = vor.u32 1.1754944e-38, %v894
    %v896 = vsel %vm893, %v895, %v891
    %v897 = vmul.f32 1.0, %v896
    %v898 = vtanh.pop %v878
    %v900 = vrot.slane %v740, 6
    %v902 = vmul.f32 %v897, %v900
    %904 = vrot.lane.b32.xlu0 %v898, 110
    %v905 = vpop.permute.xlu0 %904
    %v907 = vmul.f32 %v897, %v905
    %909 = vrot.lane.b32.xlu0 %v907, 6
    %v910 = vpop.permute.xlu0 %909
    %v912 = vadd.f32 %v902, %v910
    %v913 = vtanh.pop %v912
    %915 = vrot.lane.b32.xlu0 %v913, 6
    %v916 = vpop.permute.xlu0 %915
    %v918 = vmul.f32 %v897, %v916
    %920 = vset.pattern.permute.xlu0 12
    %921 = vperm.xlu0 %920, %v918
    %v922 = vpop.permute.xlu0 %921
    %v924 = vmul.f32 %v922, %v254
    %925 = vset.pattern.permute.xlu0 13
    %926 = vperm.xlu0 %925, %v918
    %v927 = vpop.permute.xlu0 %926
    %v929 = vmul.f32 %v927, %v260
    %v930 = vadd.f32 %v924, %v929
    %931 = vset.pattern.permute.xlu0 14
    %932 = vperm.xlu0 %931, %v918
    %v933 = vpop.permute.xlu0 %932
    %v935 = vmul.f32 %v933, %v267
    %v936 = vadd.f32 %v930, %v935
    %937 = vset.pattern.permute.xlu0 15
    %938 = vperm.xlu0 %937, %v918
    %v939 = vpop.permute.xlu0 %938
    %v941 = vmul.f32 %v939, %v274
    %v942 = vadd.f32 %v936, %v941
    %943 = vset.pattern.permute.xlu0 16
    %944 = vperm.xlu0 %943, %v918
    %v945 = vpop.permute.xlu0 %944
    %v947 = vmul.f32 %v945, %v281
    %v948 = vadd.f32 %v942, %v947
    %949 = vset.pattern.permute.xlu0 17
    %950 = vperm.xlu0 %949, %v918
    %v951 = vpop.permute.xlu0 %950
    %v953 = vmul.f32 %v951, %v288
    %v954 = vadd.f32 %v948, %v953
    %956 = vset.pattern.permute.xlu0 12
    %957 = vperm.xlu0 %956, %v863
    %v958 = vpop.permute.xlu0 %957
    %v960 = vmul.f32 %v958, %v291
    %961 = vset.pattern.permute.xlu0 13
    %962 = vperm.xlu0 %961, %v863
    %v963 = vpop.permute.xlu0 %962
    %v965 = vmul.f32 %v963, %v293
    %v966 = vadd.f32 %v960, %v965
    %967 = vset.pattern.permute.xlu0 14
    %968 = vperm.xlu0 %967, %v863
    %v969 = vpop.permute.xlu0 %968
    %v971 = vmul.f32 %v969, %v296
    %v972 = vadd.f32 %v966, %v971
    %973 = vset.pattern.permute.xlu0 15
    %974 = vperm.xlu0 %973, %v863
    %v975 = vpop.permute.xlu0 %974
    %v977 = vmul.f32 %v975, %v299
    %v978 = vadd.f32 %v972, %v977
    %979 = vset.pattern.permute.xlu0 16
    %980 = vperm.xlu0 %979, %v863
    %v981 = vpop.permute.xlu0 %980
    %v983 = vmul.f32 %v981, %v302
    %v984 = vadd.f32 %v978, %v983
    %985 = vset.pattern.permute.xlu0 17
    %986 = vperm.xlu0 %985, %v863
    %v987 = vpop.permute.xlu0 %986
    %v989 = vmul.f32 %v987, %v305
    %v990 = vadd.f32 %v984, %v989
    %v992 = vrot.slane %v990, 6
    %v994 = vadd.f32 %v954, %v992
    %v995 = vadd.f32 %v994, %v309
    %v996 = vxor.u32 %v995, 2147483648
    %v997 = vmul.f32 %v996, 1.442695
    %v998 = vpow.pop %v997
    %v999 = vadd.f32 %v998, 1.0
    %v1000 = vrcp.pop %v999
    %v1001 = vmul.f32 %v999, %v1000
    %v1002 = vsub.f32 1.0, %v1001
    %v1003 = vmul.f32 %v1000, %v1002
    %v1004 = vadd.f32 %v1000, %v1003
    %vm1005 = vweird.f32 %v999
    %vm1006 = vweird.f32 %v1000
    %vm1007 = vmor %vm1005, %vm1006
    %v1008 = vsel %vm1007, %v1000, %v1004
    %v1009 = vand.u32 2147483647, %v999
    %vm1010 = vcmp.eq.f32.partialorder %v1009, 8.507059e+37
    %v1011 = vand.u32 %v999, 2147483648
    %v1012 = vor.u32 1.1754944e-38, %v1011
    %v1013 = vsel %vm1010, %v1012, %v1008
    %v1014 = vmul.f32 1.0, %v1013
    %v1015 = vtanh.pop %v995
    %v1017 = vrot.slane %v857, 6
    %v1019 = vmul.f32 %v1014, %v1017
    %1021 = vrot.lane.b32.xlu0 %v1015, 110
    %v1022 = vpop.permute.xlu0 %1021
    %v1024 = vmul.f32 %v1014, %v1022
    %1026 = vrot.lane.b32.xlu0 %v1024, 6
    %v1027 = vpop.permute.xlu0 %1026
    %v1029 = vadd.f32 %v1019, %v1027
    %v1030 = vtanh.pop %v1029
    %1032 = vrot.lane.b32.xlu0 %v1030, 6
    %v1033 = vpop.permute.xlu0 %1032
    %v1035 = vmul.f32 %v1014, %v1033
    %v1036 = vmul.f32 %v922, %v194
    %v1037 = vmul.f32 %v927, %v196
    %v1038 = vadd.f32 %v1036, %v1037
    %v1039 = vmul.f32 %v933, %v199
    %v1040 = vadd.f32 %v1038, %v1039
    %v1041 = vmul.f32 %v939, %v202
    %v1042 = vadd.f32 %v1040, %v1041
    %v1043 = vmul.f32 %v945, %v205
    %v1044 = vadd.f32 %v1042, %v1043
    %v1045 = vmul.f32 %v951, %v208
    %v1046 = vadd.f32 %v1044, %v1045
    %v1048 = vrot.slane %v1046, 6
    %v1050 = vadd.f32 %v174, %v1048
    %v1051 = vxor.u32 %v1050, 2147483648
    %v1052 = vmul.f32 %v1051, 1.442695
    %v1053 = vpow.pop %v1052
    %v1054 = vadd.f32 %v1053, 1.0
    %v1055 = vrcp.pop %v1054
    %v1056 = vmul.f32 %v1054, %v1055
    %v1057 = vsub.f32 1.0, %v1056
    %v1058 = vmul.f32 %v1055, %v1057
    %v1059 = vadd.f32 %v1055, %v1058
    %vm1060 = vweird.f32 %v1054
    %vm1061 = vweird.f32 %v1055
    %vm1062 = vmor %vm1060, %vm1061
    %v1063 = vsel %vm1062, %v1055, %v1059
    %v1064 = vand.u32 2147483647, %v1054
    %vm1065 = vcmp.eq.f32.partialorder %v1064, 8.507059e+37
    %v1066 = vand.u32 %v1054, 2147483648
    %v1067 = vor.u32 1.1754944e-38, %v1066
    %v1068 = vsel %vm1065, %v1067, %v1063
    %v1069 = vmul.f32 1.0, %v1068
    %v1070 = vtanh.pop %v1050
    %v1072 = vrot.slane %v912, 6
    %v1074 = vmul.f32 %v1069, %v1072
    %1076 = vrot.lane.b32.xlu0 %v1070, 110
    %v1077 = vpop.permute.xlu0 %1076
    %v1079 = vmul.f32 %v1069, %v1077
    %1081 = vrot.lane.b32.xlu0 %v1079, 6
    %v1082 = vpop.permute.xlu0 %1081
    %v1084 = vadd.f32 %v1074, %v1082
    %v1085 = vtanh.pop %v1084
    %1087 = vrot.lane.b32.xlu0 %v1085, 6
    %v1088 = vpop.permute.xlu0 %1087
    %v1090 = vmul.f32 %v1069, %v1088
    %1092 = vset.pattern.permute.xlu0 12
    %1093 = vperm.xlu0 %1092, %v1090
    %v1094 = vpop.permute.xlu0 %1093
    %v1096 = vmul.f32 %v1094, %v254
    %1097 = vset.pattern.permute.xlu0 13
    %1098 = vperm.xlu0 %1097, %v1090
    %v1099 = vpop.permute.xlu0 %1098
    %v1101 = vmul.f32 %v1099, %v260
    %v1102 = vadd.f32 %v1096, %v1101
    %1103 = vset.pattern.permute.xlu0 14
    %1104 = vperm.xlu0 %1103, %v1090
    %v1105 = vpop.permute.xlu0 %1104
    %v1107 = vmul.f32 %v1105, %v267
    %v1108 = vadd.f32 %v1102, %v1107
    %1109 = vset.pattern.permute.xlu0 15
    %1110 = vperm.xlu0 %1109, %v1090
    %v1111 = vpop.permute.xlu0 %1110
    %v1113 = vmul.f32 %v1111, %v274
    %v1114 = vadd.f32 %v1108, %v1113
    %1115 = vset.pattern.permute.xlu0 16
    %1116 = vperm.xlu0 %1115, %v1090
    %v1117 = vpop.permute.xlu0 %1116
    %v1119 = vmul.f32 %v1117, %v281
    %v1120 = vadd.f32 %v1114, %v1119
    %1121 = vset.pattern.permute.xlu0 17
    %1122 = vperm.xlu0 %1121, %v1090
    %v1123 = vpop.permute.xlu0 %1122
    %v1125 = vmul.f32 %v1123, %v288
    %v1126 = vadd.f32 %v1120, %v1125
    %1128 = vset.pattern.permute.xlu0 12
    %1129 = vperm.xlu0 %1128, %v1035
    %v1130 = vpop.permute.xlu0 %1129
    %v1132 = vmul.f32 %v1130, %v291
    %1133 = vset.pattern.permute.xlu0 13
    %1134 = vperm.xlu0 %1133, %v1035
    %v1135 = vpop.permute.xlu0 %1134
    %v1137 = vmul.f32 %v1135, %v293
    %v1138 = vadd.f32 %v1132, %v1137
    %1139 = vset.pattern.permute.xlu0 14
    %1140 = vperm.xlu0 %1139, %v1035
    %v1141 = vpop.permute.xlu0 %1140
    %v1143 = vmul.f32 %v1141, %v296
    %v1144 = vadd.f32 %v1138, %v1143
    %1145 = vset.pattern.permute.xlu0 15
    %1146 = vperm.xlu0 %1145, %v1035
    %v1147 = vpop.permute.xlu0 %1146
    %v1149 = vmul.f32 %v1147, %v299
    %v1150 = vadd.f32 %v1144, %v1149
    %1151 = vset.pattern.permute.xlu0 16
    %1152 = vperm.xlu0 %1151, %v1035
    %v1153 = vpop.permute.xlu0 %1152
    %v1155 = vmul.f32 %v1153, %v302
    %v1156 = vadd.f32 %v1150, %v1155
    %1157 = vset.pattern.permute.xlu0 17
    %1158 = vperm.xlu0 %1157, %v1035
    %v1159 = vpop.permute.xlu0 %1158
    %v1161 = vmul.f32 %v1159, %v305
    %v1162 = vadd.f32 %v1156, %v1161
    %v1164 = vrot.slane %v1162, 6
    %v1166 = vadd.f32 %v1126, %v1164
    %v1167 = vadd.f32 %v1166, %v309
    %v1168 = vxor.u32 %v1167, 2147483648
    %v1169 = vmul.f32 %v1168, 1.442695
    %v1170 = vpow.pop %v1169
    %v1171 = vadd.f32 %v1170, 1.0
    %v1172 = vrcp.pop %v1171
    %v1173 = vmul.f32 %v1171, %v1172
    %v1174 = vsub.f32 1.0, %v1173
    %v1175 = vmul.f32 %v1172, %v1174
    %v1176 = vadd.f32 %v1172, %v1175
    %vm1177 = vweird.f32 %v1171
    %vm1178 = vweird.f32 %v1172
    %vm1179 = vmor %vm1177, %vm1178
    %v1180 = vsel %vm1179, %v1172, %v1176
    %v1181 = vand.u32 2147483647, %v1171
    %vm1182 = vcmp.eq.f32.partialorder %v1181, 8.507059e+37
    %v1183 = vand.u32 %v1171, 2147483648
    %v1184 = vor.u32 1.1754944e-38, %v1183
    %v1185 = vsel %vm1182, %v1184, %v1180
    %v1186 = vmul.f32 1.0, %v1185
    %v1187 = vtanh.pop %v1167
    %v1189 = vrot.slane %v1029, 6
    %v1191 = vmul.f32 %v1186, %v1189
    %1193 = vrot.lane.b32.xlu0 %v1187, 110
    %v1194 = vpop.permute.xlu0 %1193
    %v1196 = vmul.f32 %v1186, %v1194
    %1198 = vrot.lane.b32.xlu0 %v1196, 6
    %v1199 = vpop.permute.xlu0 %1198
    %v1201 = vadd.f32 %v1191, %v1199
    %v1202 = vtanh.pop %v1201
    %1204 = vrot.lane.b32.xlu0 %v1202, 6
    %v1205 = vpop.permute.xlu0 %1204
    %v1207 = vmul.f32 %v1186, %v1205
    %v1208 = vmul.f32 %v1094, %v194
    %v1209 = vmul.f32 %v1099, %v196
    %v1210 = vadd.f32 %v1208, %v1209
    %v1211 = vmul.f32 %v1105, %v199
    %v1212 = vadd.f32 %v1210, %v1211
    %v1213 = vmul.f32 %v1111, %v202
    %v1214 = vadd.f32 %v1212, %v1213
    %v1215 = vmul.f32 %v1117, %v205
    %v1216 = vadd.f32 %v1214, %v1215
    %v1217 = vmul.f32 %v1123, %v208
    %v1218 = vadd.f32 %v1216, %v1217
    %v1220 = vrot.slane %v1218, 6
    %v1222 = vadd.f32 %v174, %v1220
    %v1223 = vxor.u32 %v1222, 2147483648
    %v1224 = vmul.f32 %v1223, 1.442695
    %v1225 = vpow.pop %v1224
    %v1226 = vadd.f32 %v1225, 1.0
    %v1227 = vrcp.pop %v1226
    %v1228 = vmul.f32 %v1226, %v1227
    %v1229 = vsub.f32 1.0, %v1228
    %v1230 = vmul.f32 %v1227, %v1229
    %v1231 = vadd.f32 %v1227, %v1230
    %vm1232 = vweird.f32 %v1226
    %vm1233 = vweird.f32 %v1227
    %vm1234 = vmor %vm1232, %vm1233
    %v1235 = vsel %vm1234, %v1227, %v1231
    %v1236 = vand.u32 2147483647, %v1226
    %vm1237 = vcmp.eq.f32.partialorder %v1236, 8.507059e+37
    %v1238 = vand.u32 %v1226, 2147483648
    %v1239 = vor.u32 1.1754944e-38, %v1238
    %v1240 = vsel %vm1237, %v1239, %v1235
    %v1241 = vmul.f32 1.0, %v1240
    %v1242 = vtanh.pop %v1222
    %v1244 = vrot.slane %v1084, 6
    %v1246 = vmul.f32 %v1241, %v1244
    %1248 = vrot.lane.b32.xlu0 %v1242, 110
    %v1249 = vpop.permute.xlu0 %1248
    %v1251 = vmul.f32 %v1241, %v1249
    %1253 = vrot.lane.b32.xlu0 %v1251, 6
    %v1254 = vpop.permute.xlu0 %1253
    %v1256 = vadd.f32 %v1246, %v1254
    %v1257 = vtanh.pop %v1256
    %1259 = vrot.lane.b32.xlu0 %v1257, 6
    %v1260 = vpop.permute.xlu0 %1259
    %v1262 = vmul.f32 %v1241, %v1260
    %1264 = vset.pattern.permute.xlu0 12
    %1265 = vperm.xlu0 %1264, %v1262
    %v1266 = vpop.permute.xlu0 %1265
    %v1268 = vmul.f32 %v1266, %v254
    %1269 = vset.pattern.permute.xlu0 13
    %1270 = vperm.xlu0 %1269, %v1262
    %v1271 = vpop.permute.xlu0 %1270
    %v1273 = vmul.f32 %v1271, %v260
    %v1274 = vadd.f32 %v1268, %v1273
    %1275 = vset.pattern.permute.xlu0 14
    %1276 = vperm.xlu0 %1275, %v1262
    %v1277 = vpop.permute.xlu0 %1276
    %v1279 = vmul.f32 %v1277, %v267
    %v1280 = vadd.f32 %v1274, %v1279
    %1281 = vset.pattern.permute.xlu0 15
    %1282 = vperm.xlu0 %1281, %v1262
    %v1283 = vpop.permute.xlu0 %1282
    %v1285 = vmul.f32 %v1283, %v274
    %v1286 = vadd.f32 %v1280, %v1285
    %1287 = vset.pattern.permute.xlu0 16
    %1288 = vperm.xlu0 %1287, %v1262
    %v1289 = vpop.permute.xlu0 %1288
    %v1291 = vmul.f32 %v1289, %v281
    %v1292 = vadd.f32 %v1286, %v1291
    %1293 = vset.pattern.permute.xlu0 17
    %1294 = vperm.xlu0 %1293, %v1262
    %v1295 = vpop.permute.xlu0 %1294
    %v1297 = vmul.f32 %v1295, %v288
    %v1298 = vadd.f32 %v1292, %v1297
    %1300 = vset.pattern.permute.xlu0 12
    %1301 = vperm.xlu0 %1300, %v1207
    %v1302 = vpop.permute.xlu0 %1301
    %v1304 = vmul.f32 %v1302, %v291
    %1305 = vset.pattern.permute.xlu0 13
    %1306 = vperm.xlu0 %1305, %v1207
    %v1307 = vpop.permute.xlu0 %1306
    %v1309 = vmul.f32 %v1307, %v293
    %v1310 = vadd.f32 %v1304, %v1309
    %1311 = vset.pattern.permute.xlu0 14
    %1312 = vperm.xlu0 %1311, %v1207
    %v1313 = vpop.permute.xlu0 %1312
    %v1315 = vmul.f32 %v1313, %v296
    %v1316 = vadd.f32 %v1310, %v1315
    %1317 = vset.pattern.permute.xlu0 15
    %1318 = vperm.xlu0 %1317, %v1207
    %v1319 = vpop.permute.xlu0 %1318
    %v1321 = vmul.f32 %v1319, %v299
    %v1322 = vadd.f32 %v1316, %v1321
    %1323 = vset.pattern.permute.xlu0 16
    %1324 = vperm.xlu0 %1323, %v1207
    %v1325 = vpop.permute.xlu0 %1324
    %v1327 = vmul.f32 %v1325, %v302
    %v1328 = vadd.f32 %v1322, %v1327
    %1329 = vset.pattern.permute.xlu0 17
    %1330 = vperm.xlu0 %1329, %v1207
    %v1331 = vpop.permute.xlu0 %1330
    %v1333 = vmul.f32 %v1331, %v305
    %v1334 = vadd.f32 %v1328, %v1333
    %v1336 = vrot.slane %v1334, 6
    %v1338 = vadd.f32 %v1298, %v1336
    %v1339 = vadd.f32 %v1338, %v309
    %v1340 = vxor.u32 %v1339, 2147483648
    %v1341 = vmul.f32 %v1340, 1.442695
    %v1342 = vpow.pop %v1341
    %v1343 = vadd.f32 %v1342, 1.0
    %v1344 = vrcp.pop %v1343
    %v1345 = vmul.f32 %v1343, %v1344
    %v1346 = vsub.f32 1.0, %v1345
    %v1347 = vmul.f32 %v1344, %v1346
    %v1348 = vadd.f32 %v1344, %v1347
    %vm1349 = vweird.f32 %v1343
    %vm1350 = vweird.f32 %v1344
    %vm1351 = vmor %vm1349, %vm1350
    %v1352 = vsel %vm1351, %v1344, %v1348
    %v1353 = vand.u32 2147483647, %v1343
    %vm1354 = vcmp.eq.f32.partialorder %v1353, 8.507059e+37
    %v1355 = vand.u32 %v1343, 2147483648
    %v1356 = vor.u32 1.1754944e-38, %v1355
    %v1357 = vsel %vm1354, %v1356, %v1352
    %v1358 = vmul.f32 1.0, %v1357
    %v1359 = vtanh.pop %v1339
    %v1361 = vrot.slane %v1201, 6
    %v1363 = vmul.f32 %v1358, %v1361
    %1365 = vrot.lane.b32.xlu0 %v1359, 110
    %v1366 = vpop.permute.xlu0 %1365
    %v1368 = vmul.f32 %v1358, %v1366
    %1370 = vrot.lane.b32.xlu0 %v1368, 6
    %v1371 = vpop.permute.xlu0 %1370
    %v1373 = vadd.f32 %v1363, %v1371
    %v1374 = vtanh.pop %v1373
    %1376 = vrot.lane.b32.xlu0 %v1374, 6
    %v1377 = vpop.permute.xlu0 %1376
    %v1379 = vmul.f32 %v1358, %v1377
    %v1380 = vmul.f32 %v1266, %v194
    %v1381 = vmul.f32 %v1271, %v196
    %v1382 = vadd.f32 %v1380, %v1381
    %v1383 = vmul.f32 %v1277, %v199
    %v1384 = vadd.f32 %v1382, %v1383
    %v1385 = vmul.f32 %v1283, %v202
    %v1386 = vadd.f32 %v1384, %v1385
    %v1387 = vmul.f32 %v1289, %v205
    %v1388 = vadd.f32 %v1386, %v1387
    %v1389 = vmul.f32 %v1295, %v208
    %v1390 = vadd.f32 %v1388, %v1389
    %v1392 = vrot.slane %v1390, 6
    %v1394 = vadd.f32 %v174, %v1392
    %v1395 = vxor.u32 %v1394, 2147483648
    %v1396 = vmul.f32 %v1395, 1.442695
    %v1397 = vpow.pop %v1396
    %v1398 = vadd.f32 %v1397, 1.0
    %v1399 = vrcp.pop %v1398
    %v1400 = vmul.f32 %v1398, %v1399
    %v1401 = vsub.f32 1.0, %v1400
    %v1402 = vmul.f32 %v1399, %v1401
    %v1403 = vadd.f32 %v1399, %v1402
    %vm1404 = vweird.f32 %v1398
    %vm1405 = vweird.f32 %v1399
    %vm1406 = vmor %vm1404, %vm1405
    %v1407 = vsel %vm1406, %v1399, %v1403
    %v1408 = vand.u32 2147483647, %v1398
    %vm1409 = vcmp.eq.f32.partialorder %v1408, 8.507059e+37
    %v1410 = vand.u32 %v1398, 2147483648
    %v1411 = vor.u32 1.1754944e-38, %v1410
    %v1412 = vsel %vm1409, %v1411, %v1407
    %v1413 = vmul.f32 1.0, %v1412
    %v1414 = vtanh.pop %v1394
    %v1416 = vrot.slane %v1256, 6
    %v1418 = vmul.f32 %v1413, %v1416
    %1420 = vrot.lane.b32.xlu0 %v1414, 110
    %v1421 = vpop.permute.xlu0 %1420
    %v1423 = vmul.f32 %v1413, %v1421
    %1425 = vrot.lane.b32.xlu0 %v1423, 6
    %v1426 = vpop.permute.xlu0 %1425
    %v1428 = vadd.f32 %v1418, %v1426
    %v1429 = vtanh.pop %v1428
    %1431 = vrot.lane.b32.xlu0 %v1429, 6
    %v1432 = vpop.permute.xlu0 %1431
    %v1434 = vmul.f32 %v1413, %v1432
    %1436 = vset.pattern.permute.xlu0 12
    %1437 = vperm.xlu0 %1436, %v1434
    %v1438 = vpop.permute.xlu0 %1437
    %v1440 = vmul.f32 %v1438, %v254
    %1441 = vset.pattern.permute.xlu0 13
    %1442 = vperm.xlu0 %1441, %v1434
    %v1443 = vpop.permute.xlu0 %1442
    %v1445 = vmul.f32 %v1443, %v260
    %v1446 = vadd.f32 %v1440, %v1445
    %1447 = vset.pattern.permute.xlu0 14
    %1448 = vperm.xlu0 %1447, %v1434
    %v1449 = vpop.permute.xlu0 %1448
    %v1451 = vmul.f32 %v1449, %v267
    %v1452 = vadd.f32 %v1446, %v1451
    %1453 = vset.pattern.permute.xlu0 15
    %1454 = vperm.xlu0 %1453, %v1434
    %v1455 = vpop.permute.xlu0 %1454
    %v1457 = vmul.f32 %v1455, %v274
    %v1458 = vadd.f32 %v1452, %v1457
    %1459 = vset.pattern.permute.xlu0 16
    %1460 = vperm.xlu0 %1459, %v1434
    %v1461 = vpop.permute.xlu0 %1460
    %v1463 = vmul.f32 %v1461, %v281
    %v1464 = vadd.f32 %v1458, %v1463
    %1465 = vset.pattern.permute.xlu0 17
    %1466 = vperm.xlu0 %1465, %v1434
    %v1467 = vpop.permute.xlu0 %1466
    %v1469 = vmul.f32 %v1467, %v288
    %v1470 = vadd.f32 %v1464, %v1469
    %1472 = vset.pattern.permute.xlu0 12
    %1473 = vperm.xlu0 %1472, %v1379
    %v1474 = vpop.permute.xlu0 %1473
    %v1476 = vmul.f32 %v1474, %v291
    %1477 = vset.pattern.permute.xlu0 13
    %1478 = vperm.xlu0 %1477, %v1379
    %v1479 = vpop.permute.xlu0 %1478
    %v1481 = vmul.f32 %v1479, %v293
    %v1482 = vadd.f32 %v1476, %v1481
    %1483 = vset.pattern.permute.xlu0 14
    %1484 = vperm.xlu0 %1483, %v1379
    %v1485 = vpop.permute.xlu0 %1484
    %v1487 = vmul.f32 %v1485, %v296
    %v1488 = vadd.f32 %v1482, %v1487
    %1489 = vset.pattern.permute.xlu0 15
    %1490 = vperm.xlu0 %1489, %v1379
    %v1491 = vpop.permute.xlu0 %1490
    %v1493 = vmul.f32 %v1491, %v299
    %v1494 = vadd.f32 %v1488, %v1493
    %1495 = vset.pattern.permute.xlu0 16
    %1496 = vperm.xlu0 %1495, %v1379
    %v1497 = vpop.permute.xlu0 %1496
    %v1499 = vmul.f32 %v1497, %v302
    %v1500 = vadd.f32 %v1494, %v1499
    %1501 = vset.pattern.permute.xlu0 17
    %1502 = vperm.xlu0 %1501, %v1379
    %v1503 = vpop.permute.xlu0 %1502
    %v1505 = vmul.f32 %v1503, %v305
    %v1506 = vadd.f32 %v1500, %v1505
    %v1508 = vrot.slane %v1506, 6
    %v1510 = vadd.f32 %v1470, %v1508
    %v1511 = vadd.f32 %v1510, %v309
    %v1512 = vxor.u32 %v1511, 2147483648
    %v1513 = vmul.f32 %v1512, 1.442695
    %v1514 = vpow.pop %v1513
    %v1515 = vadd.f32 %v1514, 1.0
    %v1516 = vrcp.pop %v1515
    %v1517 = vmul.f32 %v1515, %v1516
    %v1518 = vsub.f32 1.0, %v1517
    %v1519 = vmul.f32 %v1516, %v1518
    %v1520 = vadd.f32 %v1516, %v1519
    %vm1521 = vweird.f32 %v1515
    %vm1522 = vweird.f32 %v1516
    %vm1523 = vmor %vm1521, %vm1522
    %v1524 = vsel %vm1523, %v1516, %v1520
    %v1525 = vand.u32 2147483647, %v1515
    %vm1526 = vcmp.eq.f32.partialorder %v1525, 8.507059e+37
    %v1527 = vand.u32 %v1515, 2147483648
    %v1528 = vor.u32 1.1754944e-38, %v1527
    %v1529 = vsel %vm1526, %v1528, %v1524
    %v1530 = vmul.f32 1.0, %v1529
    %v1531 = vtanh.pop %v1511
    %v1533 = vrot.slane %v1373, 6
    %v1535 = vmul.f32 %v1530, %v1533
    %1537 = vrot.lane.b32.xlu0 %v1531, 110
    %v1538 = vpop.permute.xlu0 %1537
    %v1540 = vmul.f32 %v1530, %v1538
    %1542 = vrot.lane.b32.xlu0 %v1540, 6
    %v1543 = vpop.permute.xlu0 %1542
    %v1545 = vadd.f32 %v1535, %v1543
    %v1546 = vtanh.pop %v1545
    %1548 = vrot.lane.b32.xlu0 %v1546, 6
    %v1549 = vpop.permute.xlu0 %1548
    %v1551 = vmul.f32 %v1530, %v1549
    %v1552 = vld [vmem:[%s4] sm:$0x3]
    %v1554 = vrot.slane %v1551, 6
    %1555 = vrot.lane.b32.xlu0 %v1554, 20
    %v1556 = vpop.permute.xlu0 %1555
    %1559 = vrot.lane.b32.xlu0 %v1552, 38
    %v1560 = vpop.permute.xlu0 %1559
    %vm1562 = vcmask 261120
    %v1563 = vsel %vm1562, %v136, %v1556
    %vm1564 = vcmask 310272
    %v1565 = vsel %vm1564, %v1563, %v1560
    %v1566 = vld [vmem:[%s5] sm:$0xff]
    %v1567 = vld [vmem:[%s5 + $0x8] sm:$0xff]
    %v1568 = vld [vmem:[%s5 + $0x10] sm:$0xff]
    %v1569 = vld [vmem:[%s5 + $0x18] sm:$0xff]
    %v1570 = vld [vmem:[%s5 + $0x20] sm:$0xff]
    %v1571 = vld [vmem:[%s5 + $0x28] sm:$0x1f]
    %v1572 = vld [vmem:[%s7] sm:$0x1]
    %v1573 = vperm.slane %v1572, 0
    %vm1574 = vcmask 367616
    %v1576 = vsel %vm1574, %v1565, 0
    %vm1578 = vcmask 1044480
    %v1580 = vsel %vm1578, %v1571, 0
    %1582 = vmatpush.msra.mxu0 0.0
    %1583 = vmatpush.msra.mxu0 0.0
    %1584 = vmatpush.msra.mxu0 0.0
    %1585 = vmatpush.msra.mxu0 0.0
    %1586 = vmatpush.msra.mxu0 0.0
    %1587 = vmatpush.msra.mxu0 0.0
    %1588 = vmatpush.msra.mxu0 0.0
    %1589 = vmatpush.msra.mxu0 0.0
    %1590 = vmatpush.msra.mxu0 0.0
    %1591 = vmatpush.msra.mxu0 0.0
    %1592 = vmatpush.msra.mxu0 %v1580
    %1593 = vmatpush.msra.mxu0 %v1570
    %1594 = vmatpush.msra.mxu0 %v1569
    %1595 = vmatpush.msra.mxu0 %v1568
    %1596 = vmatpush.msra.mxu0 %v1567
    %1597 = vmatpush.msra.mxu0 %v1566
    %1598 = vmatmul.f32.gmra.mxu0 %v1576
    %v1599 = vpop.f32.mrf.mxu0
    %v1600 = vadd.f32 %v1573, %v1599
    %1601 = vdwg.mxu0
    %v1602 = vxor.u32 %v1600, 2147483648
    %v1603 = vmul.f32 %v1602, 1.442695
    %v1604 = vpow.pop %v1603
    %v1605 = vadd.f32 %v1604, 1.0
    %v1606 = vrcp.pop %v1605
    %v1607 = vmul.f32 %v1605, %v1606
    %v1608 = vsub.f32 1.0, %v1607
    %v1609 = vmul.f32 %v1606, %v1608
    %v1610 = vadd.f32 %v1606, %v1609
    %vm1611 = vweird.f32 %v1605
    %vm1612 = vweird.f32 %v1606
    %vm1613 = vmor %vm1611, %vm1612
    %v1614 = vsel %vm1613, %v1606, %v1610
    %v1615 = vand.u32 2147483647, %v1605
    %vm1616 = vcmp.eq.f32.partialorder %v1615, 8.507059e+37
    %v1617 = vand.u32 %v1605, 2147483648
    %v1618 = vor.u32 1.1754944e-38, %v1617
    %v1619 = vsel %vm1616, %v1618, %v1614
    %v1620 = vmul.f32 1.0, %v1619
    %v1621 = vtanh.pop %v1600
    %v1622 = vmul.f32 %v1620, 0.0
    %1624 = vrot.lane.b32.xlu0 %v1621, 32
    %v1625 = vpop.permute.xlu0 %1624
    %v1627 = vmul.f32 %v1620, %v1625
    %1629 = vrot.lane.b32.xlu0 %v1627, 32
    %v1630 = vpop.permute.xlu0 %1629
    %v1632 = vadd.f32 %v1622, %v1630
    %v1633 = vtanh.pop %v1632
    %1635 = vrot.lane.b32.xlu0 %v1633, 32
    %v1636 = vpop.permute.xlu0 %1635
    %v1638 = vmul.f32 %v1620, %v1636
    %v1639 = vld [vmem:[%s6] sm:$0xff]
    %v1640 = vld [vmem:[%s6 + $0x8] sm:$0xff]
    %v1641 = vld [vmem:[%s6 + $0x10] sm:$0xff]
    %v1642 = vld [vmem:[%s6 + $0x18] sm:$0xff]
    %v1643 = vld [vmem:[%s7 + $0x1] sm:$0x1]
    %v1644 = vperm.slane %v1643, 0
    %1646 = vrot.lane.b32.xlu0 %v1638, 64
    %v1647 = vpop.permute.xlu0 %1646
    %v1648 = vsel %vm1562, %v1647, 0
    %1650 = vmatpush.msra.mxu0 0.0
    %1651 = vmatpush.msra.mxu0 0.0
    %1652 = vmatpush.msra.mxu0 0.0
    %1653 = vmatpush.msra.mxu0 0.0
    %1654 = vmatpush.msra.mxu0 0.0
    %1655 = vmatpush.msra.mxu0 0.0
    %1656 = vmatpush.msra.mxu0 0.0
    %1657 = vmatpush.msra.mxu0 0.0
    %1658 = vmatpush.msra.mxu0 0.0
    %1659 = vmatpush.msra.mxu0 0.0
    %1660 = vmatpush.msra.mxu0 0.0
    %1661 = vmatpush.msra.mxu0 0.0
    %1662 = vmatpush.msra.mxu0 %v1642
    %1663 = vmatpush.msra.mxu0 %v1641
    %1664 = vmatpush.msra.mxu0 %v1640
    %1665 = vmatpush.msra.mxu0 %v1639
    %1666 = vmatmul.f32.gmra.mxu0 %v1648
    %v1667 = vpop.f32.mrf.mxu0
    %v1668 = vadd.f32 %v1644, %v1667
    %1669 = vdwg.mxu0
    %v1670 = vxor.u32 %v1668, 2147483648
    %v1671 = vmul.f32 %v1670, 1.442695
    %v1672 = vpow.pop %v1671
    %v1673 = vadd.f32 %v1672, 1.0
    %v1674 = vrcp.pop %v1673
    %v1675 = vmul.f32 %v1673, %v1674
    %v1676 = vsub.f32 1.0, %v1675
    %v1677 = vmul.f32 %v1674, %v1676
    %v1678 = vadd.f32 %v1674, %v1677
    %vm1679 = vweird.f32 %v1673
    %vm1680 = vweird.f32 %v1674
    %vm1681 = vmor %vm1679, %vm1680
    %v1682 = vsel %vm1681, %v1674, %v1678
    %v1683 = vand.u32 2147483647, %v1673
    %vm1684 = vcmp.eq.f32.partialorder %v1683, 8.507059e+37
    %v1685 = vand.u32 %v1673, 2147483648
    %v1686 = vor.u32 1.1754944e-38, %v1685
    %v1687 = vsel %vm1684, %v1686, %v1682
    %v1688 = vmul.f32 1.0, %v1687
    %v1689 = vtanh.pop %v1668
    %v1690 = vmul.f32 %v1688, 0.0
    %1692 = vrot.lane.b32.xlu0 %v1689, 32
    %v1693 = vpop.permute.xlu0 %1692
    %v1695 = vmul.f32 %v1688, %v1693
    %1697 = vrot.lane.b32.xlu0 %v1695, 32
    %v1698 = vpop.permute.xlu0 %1697
    %v1700 = vadd.f32 %v1690, %v1698
    %v1701 = vtanh.pop %v1700
    %1703 = vrot.lane.b32.xlu0 %v1701, 32
    %v1704 = vpop.permute.xlu0 %1703
    %v1706 = vmul.f32 %v1688, %v1704
    %v1707 = vld [vmem:[%s8] sm:$0xff]
    %v1708 = vld [vmem:[%s8 + $0x8] sm:$0xff]
    %v1709 = vld [vmem:[%s8 + $0x10] sm:$0xff]
    %v1710 = vld [vmem:[%s8 + $0x18] sm:$0xff]
    %v1711 = vld [vmem:[%s9] sm:$0x1]
    %v1712 = vperm.slane %v1711, 0
    %1714 = vrot.lane.b32.xlu0 %v1706, 64
    %v1715 = vpop.permute.xlu0 %1714
    %v1716 = vsel %vm1562, %v1715, 0
    %1718 = vmatpush.msra.mxu0 0.0
    %1719 = vmatpush.msra.mxu0 0.0
    %1720 = vmatpush.msra.mxu0 0.0
    %1721 = vmatpush.msra.mxu0 0.0
    %1722 = vmatpush.msra.mxu0 0.0
    %1723 = vmatpush.msra.mxu0 0.0
    %1724 = vmatpush.msra.mxu0 0.0
    %1725 = vmatpush.msra.mxu0 0.0
    %1726 = vmatpush.msra.mxu0 0.0
    %1727 = vmatpush.msra.mxu0 0.0
    %1728 = vmatpush.msra.mxu0 0.0
    %1729 = vmatpush.msra.mxu0 0.0
    %1730 = vmatpush.msra.mxu0 %v1710
    %1731 = vmatpush.msra.mxu0 %v1709
    %1732 = vmatpush.msra.mxu0 %v1708
    %1733 = vmatpush.msra.mxu0 %v1707
    %1734 = vmatmul.f32.gmra.mxu0 %v1716
    %v1735 = vpop.f32.mrf.mxu0
    %v1736 = vadd.f32 %v1712, %v1735
    %1737 = vdwg.mxu0
    %v1738 = vld [vmem:[%s8 + $0x20] sm:$0xff]
    %v1739 = vld [vmem:[%s8 + $0x28] sm:$0xff]
    %v1740 = vld [vmem:[%s9 + $0x1] sm:$0x1]
    %v1741 = vperm.slane %v1740, 0
    %v1743 = vsel %vm125, %v1736, 0
    %1745 = vmatpush.msra.mxu0 0.0
    %1746 = vmatpush.msra.mxu0 0.0
    %1747 = vmatpush.msra.mxu0 0.0
    %1748 = vmatpush.msra.mxu0 0.0
    %1749 = vmatpush.msra.mxu0 0.0
    %1750 = vmatpush.msra.mxu0 0.0
    %1751 = vmatpush.msra.mxu0 0.0
    %1752 = vmatpush.msra.mxu0 0.0
    %1753 = vmatpush.msra.mxu0 0.0
    %1754 = vmatpush.msra.mxu0 0.0
    %1755 = vmatpush.msra.mxu0 0.0
    %1756 = vmatpush.msra.mxu0 0.0
    %1757 = vmatpush.msra.mxu0 0.0
    %1758 = vmatpush.msra.mxu0 0.0
    %1759 = vmatpush.msra.mxu0 %v1739
    %1760 = vmatpush.msra.mxu0 %v1738
    %1761 = vmatmul.f32.gmra.mxu0 %v1743
    %v1762 = vpop.f32.mrf.mxu0
    %v1763 = vadd.f32 %v1741, %v1762
    %1764 = vdwg.mxu0
    %vm1765 = vcmask 41984
    %1766 = vst.msk [vmem:[#allocation2] sm:$0x3] %vm1765, %v1763
    // Predicated region
    $region42: #{vinet_forward.1} parent=1 // pred_check
      _
    $region43: #{vinet_forward.1} parent=1 // pred_check_branch
      %1768 = sbr.rel (0) target = $region45
    $region44: #{vinet_forward.1} parent=1 // pred_region
      %1770 = vsyncadd [#allocation3], 0
      %s1772 = sshll.u32 [#allocation2], 4
      %s1773 = int_to_ptr.vmem [resolvable:$true] %s1772
      %s1774 = sshll.u32 %s10, 4
      %s1775 = int_to_ptr.hbm [resolvable:$true] %s1774
      %1777 = dma.vmem_to_hbm [thread:$0]  %s1773, 32, %s1775, [#allocation3]
    $region45: #{vinet_forward.1} parent=1 // pred_fallthru
      _
    // Predicated region
    $region46: #{vinet_forward.1} parent=1 // pred_check
      _
    $region47: #{vinet_forward.1} parent=1 // pred_check_branch
      %1779 = sbr.rel (0) target = $region49
    $region48: #{vinet_forward.1} parent=1 // pred_region
      %1781 = dma.done [#allocation3], 32
    $region49: #{vinet_forward.1} parent=1 // pred_fallthru
      _
    %1782 = vsyncpa [#allocation3], 1

</llo_original>
